<compile_context>
chip_gen: v7x
topology: tpu7x:2x2x1
jax: 0.10.0
libtpu: 0.0.40
codegen_flags: <defaults>
</compile_context>

<pallas_src>
import functools

import jax
import jax.numpy as jnp
from jax.experimental import pallas as pl
from jax.experimental.pallas import tpu as pltpu

# ---------------- scaled-down configuration (synthetic, small shapes) -------
FEATURE_CHANNELS = [32, 64, 128, 256]   # scaled down from [256, 512, 1024, 2048]
NUM_MANO_J = 16
NUM_SKELETON_J = 21
NUM_VERTS = 778
VERTS_PAD = 896                         # 7 * 128 : lane-padded vertex count
NUM_SHAPE = 10
NOISE_DIM = 32
S2_CTX_DIM = 64
WEAK_CAMERA_BASE = {'avg': [1.5, 120.0, 120.0], 'std': [0.25, 30.0, 30.0]}


# ============================= Pallas kernels ================================
def _linear_kernel(x_ref, w_ref, b_ref, o_ref, *, relu, use_fma):
    x = x_ref[...]
    w = w_ref[...]
    if use_fma:
        # K < 8: the MXU pass would be almost all padding; do K broadcast-FMAs
        # on the VPU instead (largest-M matmul of the net has K=3).
        xf = x.astype(jnp.float32)
        wf = w.astype(jnp.float32)
        y = xf[:, 0:1] * wf[0:1, :]
        for k in range(1, xf.shape[1]):
            y = y + xf[:, k:k + 1] * wf[k:k + 1, :]
    else:
        y = jnp.dot(x, w, preferred_element_type=jnp.float32)
    y = y + b_ref[...].astype(jnp.float32)
    if relu:
        y = jnp.maximum(y, 0.0)
    o_ref[...] = y.astype(o_ref.dtype)


def pallas_linear(x, w, b, relu=False, out_dtype=jnp.float32, block_m=256):
    """y = x @ w + b (optionally ReLU).  x:[M,K], w:[K,N], b:[N] -> [M,N].

    Rows tiled (tm <= block_m, "parallel" -> megacore sharding / pipelining).
    The output feature dim is zero-padded to a multiple of 128 (unmasked lane-
    dense stores) and sliced back after the call.  K < 8 uses VPU FMAs.
    TODO(synk): add a K grid axis + vmem_limit_bytes before scaling channel
    widths back to the original 1024/2048.
    """
    M, K = x.shape
    N = w.shape[1]
    Np = ((N + 127) // 128) * 128
    if Np != N:                          # zero-padded cols/bias -> same result
        w = jnp.pad(w, ((0, 0), (0, Np - N)))
        b = jnp.pad(b, ((0, Np - N),))
    use_fma = K < 8
    if M <= block_m:
        tm, grid_m = M, 1                # whole-array block (full-dim rule)
    else:
        tm, grid_m = block_m, pl.cdiv(M, block_m)
    kern = functools.partial(_linear_kernel, relu=relu, use_fma=use_fma)
    out = pl.pallas_call(
        kern,
        out_shape=jax.ShapeDtypeStruct((M, Np), out_dtype),
        grid=(grid_m,),
        in_specs=[pl.BlockSpec((tm, K), lambda i: (i, 0)),
                  pl.BlockSpec((K, Np), lambda i: (0, 0)),
                  pl.BlockSpec((1, Np), lambda i: (0, 0))],
        out_specs=pl.BlockSpec((tm, Np), lambda i: (i, 0)),
        compiler_params=pltpu.CompilerParams(
            dimension_semantics=("parallel",)),
    )(x, w, b.reshape(1, Np))
    return out[:, :N] if Np != N else out


def _mano_proj_kernel(beta_ref, rmt_ref, cam_ref, sd_ref, tmpl_ref, jregT_ref,
                      v_ref, j_ref, p_ref, *, bn, vp):
    """Fused MANO-lite: shape blend -> root rotation -> J-regression -> weak-cam
    projection, for ALL samples of BOTH stages in one invocation.

    Lane-dense layouts (vertex axis padded to vp = 896 = 7*128):
      beta_ref : (BN, 10)            rmt_ref : (BN, 9) row-major 3x3 root rmt
      cam_ref  : (BN, 3)             sd_ref  : (10, 3*vp)  coord-concat shapedirs
      tmpl_ref : (1, 3*vp)           jregT_ref : (vp, 21)  (padded rows are 0)
      v_ref : (3, BN, vp)   j_ref : (3*BN, 21)   p_ref : (2, BN, 21)
    """
    beta = beta_ref[...]                       # (BN, 10)
    R = rmt_ref[...]                           # (BN, 9)
    cam = cam_ref[...]                         # (BN, 3)

    # ---- shape blend: ONE wide matmul over all 3 coordinate planes ----------
    blend = (jnp.dot(beta, sd_ref[...], preferred_element_type=jnp.float32)
             + tmpl_ref[...])                  # (BN, 3*vp)
    s = [blend[:, c * vp:(c + 1) * vp] for c in range(3)]   # static lane slices

    # ---- root rotation: 9 VPU broadcast-FMAs, written straight into the -----
    # lane-padded output (which doubles as the stacked regression operand).
    for c in range(3):
        v_ref[c] = (R[:, 3 * c + 0:3 * c + 1] * s[0]
                    + R[:, 3 * c + 1:3 * c + 2] * s[1]
                    + R[:, 3 * c + 2:3 * c + 3] * s[2])      # (BN, vp)

    # ---- joint regression: ONE (3*BN, vp) @ (vp, 21) matmul -----------------
    vstack = v_ref[...].reshape(3 * bn, vp)
    j = jnp.dot(vstack, jregT_ref[...], preferred_element_type=jnp.float32)
    j_ref[...] = j                             # (3*BN, 21)

    # ---- weak-camera projection fused into the epilogue ---------------------
    scale = cam[:, 0:1] * 1000.0
    p_ref[0] = j[0 * bn:1 * bn] * scale + cam[:, 1:2]
    p_ref[1] = j[1 * bn:2 * bn] * scale + cam[:, 2:3]


def pallas_mano_project(beta, rmt_root, cam, sd_wide, tmpl_wide, jregT_p):
    """All-samples MANO-lite + projection.  Returns v3d [BN,778,3],
    j3d [BN,21,3], j2d [BN,21,2]."""
    BN = beta.shape[0]
    BNp = ((BN + 7) // 8) * 8                  # sublane-pad the sample axis
    if BNp != BN:
        pad = BNp - BN
        beta = jnp.pad(beta, ((0, pad), (0, 0)))
        rmt_root = jnp.pad(rmt_root, ((0, pad), (0, 0), (0, 0)))
        cam = jnp.pad(cam, ((0, pad), (0, 0)))
    rmt9 = rmt_root.reshape(BNp, 9)
    kern = functools.partial(_mano_proj_kernel, bn=BNp, vp=VERTS_PAD)
    v_t, j_t, p_t = pl.pallas_call(
        kern,
        out_shape=(jax.ShapeDtypeStruct((3, BNp, VERTS_PAD), jnp.float32),
                   jax.ShapeDtypeStruct((3 * BNp, NUM_SKELETON_J), jnp.float32),
                   jax.ShapeDtypeStruct((2, BNp, NUM_SKELETON_J), jnp.float32)),
        grid=(1,),
        in_specs=[pl.BlockSpec((BNp, NUM_SHAPE), lambda i: (0, 0)),
                  pl.BlockSpec((BNp, 9), lambda i: (0, 0)),
                  pl.BlockSpec((BNp, 3), lambda i: (0, 0)),
                  pl.BlockSpec((NUM_SHAPE, 3 * VERTS_PAD), lambda i: (0, 0)),
                  pl.BlockSpec((1, 3 * VERTS_PAD), lambda i: (0, 0)),
                  pl.BlockSpec((VERTS_PAD, NUM_SKELETON_J), lambda i: (0, 0))],
        out_specs=(pl.BlockSpec((3, BNp, VERTS_PAD), lambda i: (0, 0, 0)),
                   pl.BlockSpec((3 * BNp, NUM_SKELETON_J), lambda i: (0, 0)),
                   pl.BlockSpec((2, BNp, NUM_SKELETON_J), lambda i: (0, 0, 0))),
    )(beta, rmt9, cam, sd_wide, tmpl_wide, jregT_p)
    v3d = jnp.transpose(v_t, (1, 2, 0))[:BN, :NUM_VERTS]     # (BN, 778, 3)
    j3d = jnp.transpose(j_t.reshape(3, BNp, NUM_SKELETON_J), (1, 2, 0))[:BN]
    j2d = jnp.transpose(p_t, (1, 2, 0))[:BN]                  # (BN, 21, 2)
    return v3d, j3d, j2d


# ============================== glue helpers =================================
def avg_pool_nhwc(x, k):
    B, H, W, C = x.shape
    return x.reshape(B, H // k, k, W // k, k, C).mean(axis=(2, 4))


def conv1x1_nhwc(x, w, b, relu=False, out_dtype=jnp.float32):
    """1x1 conv on NHWC activations as a Pallas matmul over flattened pixels
    (channels already on the lane axis -> no transposes)."""
    B, H, W, C = x.shape
    y = pallas_linear(x.reshape(B * H * W, C), w, b, relu=relu, out_dtype=out_dtype)
    return y.reshape(B, H, W, w.shape[1])


def r6d_to_rmt(r6d):
    a1, a2 = r6d[..., :3], r6d[..., 3:]
    b1 = a1 / (jnp.linalg.norm(a1, axis=-1, keepdims=True) + 1e-8)
    a2p = a2 - jnp.sum(b1 * a2, axis=-1, keepdims=True) * b1
    b2 = a2p / (jnp.linalg.norm(a2p, axis=-1, keepdims=True) + 1e-8)
    b3 = jnp.cross(b1, b2)
    return jnp.stack([b1, b2, b3], axis=-1)


def get_peaks_uv(hm_nhwc):
    # TODO(synk): the real HeatmapPredictor.get_peaks_uv is not given; argmax
    # peak + sigmoid(max) confidence stand-in, uv normalized to [0, 1].
    B, H, W, J = hm_nhwc.shape
    flat = hm_nhwc.reshape(B, H * W, J)
    idx = jnp.argmax(flat, axis=1)                       # (B, J)
    cfd = jax.nn.sigmoid(jnp.max(flat, axis=1))          # (B, J)
    u = ((idx % W).astype(jnp.float32) + 0.5) / W
    v = ((idx // W).astype(jnp.float32) + 0.5) / H
    return jnp.stack([u, v], axis=-1), cfd


# ============================== model forward ================================
def amb_hand_forward(params, batch_data, key, *, num_samples):
    image = batch_data['image']                       # [B, 3, H, W] (PyTorch layout)
    B = image.shape[0]
    img_res = image.shape[-1]
    N = num_samples
    BN1 = B * N
    k1, k2 = jax.random.split(key)

    # ---------------- backbone ----------------
    # TODO(synk): torchvision resnet50 replaced by a tiny pool + 1x1-conv pyramid
    # producing the same list-of-feature-maps interface (NHWC, bf16 activations).
    x = jnp.transpose(image, (0, 2, 3, 1))            # single NCHW -> NHWC transpose
    feats = []
    for lvl, k in enumerate([4, 2, 2, 2]):
        x = avg_pool_nhwc(x, k)
        x = conv1x1_nhwc(x, params[f'bb_w{lvl}'], params[f'bb_b{lvl}'],
                         relu=True, out_dtype=jnp.bfloat16)
        feats.append(x)

    # ---------------- stage 1 heads ----------------
    context = feats[-1].astype(jnp.float32).mean(axis=(1, 2))   # GAP: [B, C]

    # HeatmapPredictor stand-in: 1x1 conv on the highest-resolution skip feature.
    # TODO(synk): real decoder upsamples/fuses FEATURE_CHANNELS[::-1][1:] maps.
    hm_nhwc = conv1x1_nhwc(feats[0], params['hm_w'], params['hm_b'],
                           out_dtype=jnp.float32)     # [B,16,16,21]
    heatmaps = jnp.transpose(hm_nhwc, (0, 3, 1, 2))   # NCHW for the output dict
    hm_uvs, hm_cfd = get_peaks_uv(hm_nhwc)
    hm_j2d = (hm_uvs * img_res).reshape(B, NUM_SKELETON_J, 2)
    hm_cfd = hm_cfd.reshape(B, NUM_SKELETON_J)

    # GlowRmtBetaCamPredictor.generate_random_samples stand-in: conditional
    # linear head on Gaussian noise.  M = B*N = 8 rows -> plain jnp.dot (XLA
    # fuses it with the epilogue; a Pallas launch would cost more than compute).
    z1 = jax.random.normal(k1, (B, N, NOISE_DIM), jnp.float32)
    ctx_rep = jnp.broadcast_to(context[:, None, :], (B, N, context.shape[-1]))
    flow_in = jnp.concatenate([ctx_rep, z1], axis=-1).reshape(B * N, -1)
    head = jnp.dot(flow_in, params['s1_flow_w'],
                   preferred_element_type=jnp.float32) + params['s1_flow_b']
    pred_r6d = head[:, :NUM_MANO_J * 6].reshape(B, N, NUM_MANO_J, 6)
    pred_shape = head[:, NUM_MANO_J * 6:NUM_MANO_J * 6 + NUM_SHAPE].reshape(B, N, NUM_SHAPE)
    cam_raw = head[:, -3:].reshape(B, N, 3)
    cam_avg = jnp.asarray(WEAK_CAMERA_BASE['avg'], jnp.float32)
    cam_std = jnp.asarray(WEAK_CAMERA_BASE['std'], jnp.float32)
    pred_weakcam = cam_raw * cam_std + cam_avg
    pred_rmt = r6d_to_rmt(pred_r6d)                   # [B,N,16,3,3]
    # TODO(synk): real sampled log-prob includes the flow Jacobian; stand-in is
    # the Gaussian base log-density of the noise.
    sampled_logp = -0.5 * jnp.sum(z1 ** 2, -1) - 0.5 * NOISE_DIM * jnp.log(2.0 * jnp.pi)
    pred_logp = jnp.zeros((B, N), jnp.float32)        # eval path (not self.training)

    # ---------------- stage 2 heads ----------------
    # JointWiseEnhanceLayer stand-in: nearest-neighbour gather of f3 features at
    # the heatmap joints + linear projection to a per-image context.
    # TODO(synk): real layer bilinearly resamples f3/f4 at the stage-1 sampled
    # j2ds as well as the heatmap joints.
    f3 = feats[2]                                     # [B, 4, 4, 128]  (NHWC, bf16)
    Hf, Wf = f3.shape[1:3]
    gx = jnp.clip((hm_j2d[..., 0] / img_res * Wf).astype(jnp.int32), 0, Wf - 1)
    gy = jnp.clip((hm_j2d[..., 1] / img_res * Hf).astype(jnp.int32), 0, Hf - 1)
    gathered = f3[jnp.arange(B)[:, None], gy, gx].astype(jnp.float32)  # [B,21,128]
    resamp_in = jnp.concatenate(
        [gathered, hm_uvs, hm_cfd[..., None]], axis=-1).reshape(B, -1)
    ctx2 = jnp.maximum(jnp.dot(resamp_in, params['s2_ctx_w'],
                               preferred_element_type=jnp.float32)
                       + params['s2_ctx_b'], 0.0)     # M = B = 2 -> jnp
    inner_j2d, inner_cfd = hm_j2d, hm_cfd

    z2 = jax.random.normal(k2, (B, N, NOISE_DIM), jnp.float32)
    ctx2_rep = jnp.broadcast_to(ctx2[:, None, :], (B, N, S2_CTX_DIM))
    flow2_in = jnp.concatenate([ctx2_rep, z2], axis=-1).reshape(B * N, -1)
    head2 = jnp.dot(flow2_in, params['s2_flow_w'],
                    preferred_element_type=jnp.float32) + params['s2_flow_b']
    r6d2 = head2.reshape(B, N, NUM_MANO_J, 6)
    rmt2 = r6d_to_rmt(r6d2)
    sampled_logp2 = -0.5 * jnp.sum(z2 ** 2, -1) - 0.5 * NOISE_DIM * jnp.log(2.0 * jnp.pi)
    logp2 = jnp.zeros((B, N), jnp.float32)

    # ---------------- ONE fused MANO + projection call for both stages -------
    # Stage-2 MANO inputs depend only on the flow heads / heatmaps, never on the
    # stage-1 MANO outputs, so both stages share a single kernel (BN = 2*B*N).
    # TODO(synk): finger forward-kinematics chain and LBS skinning of the real
    # MANO model are omitted; only the root/global rotation is applied.
    _amb_rmt = pred_rmt.reshape(-1, NUM_MANO_J, 3, 3)
    _amb_cam = pred_weakcam.reshape(-1, 3)
    _amb_shape = pred_shape.reshape(-1, NUM_SHAPE)
    cam2 = jnp.broadcast_to(pred_weakcam[:, 0][:, None, :], (B, N, 3)).reshape(-1, 3)
    shape2 = jnp.broadcast_to(pred_shape[:, 0][:, None, :],
                              (B, N, NUM_SHAPE)).reshape(-1, NUM_SHAPE)
    rmt2_flat = rmt2.reshape(-1, NUM_MANO_J, 3, 3)

    beta_all = jnp.concatenate([_amb_shape, shape2], axis=0)
    root_all = jnp.concatenate([_amb_rmt[:, 0], rmt2_flat[:, 0]], axis=0)
    cam_all = jnp.concatenate([_amb_cam, cam2], axis=0)
    v_all, j_all, p_all = pallas_mano_project(
        beta_all, root_all, cam_all,
        params['mano_sd_wide'], params['mano_tmpl_wide'], params['mano_jregT'])
    v3d, v3d2 = v_all[:BN1], v_all[BN1:]
    j3d, j3d2 = j_all[:BN1], j_all[BN1:]
    j2d, j2d2 = p_all[:BN1], p_all[BN1:]

    # ---------------- output dicts ----------------
    s1 = dict(
        log_p=pred_logp.reshape(B, -1),
        log_p_sampled=sampled_logp,
        amb_shape=pred_shape,
        amb_weakcam=pred_weakcam,
        amb_rmt=pred_rmt,
        amb_r6d=pred_r6d,
        amb_v3d=v3d.reshape(B, N, NUM_VERTS, 3),
        amb_j3d=j3d.reshape(B, N, NUM_SKELETON_J, 3),
        amb_j2d=j2d.reshape(B, N, NUM_SKELETON_J, 2),
        z0_shape=pred_shape[:, 0],
        z0_weakcam=pred_weakcam[:, 0],
        z0_rmt=pred_rmt[:, 0],
        z0_r6d=pred_r6d[:, 0],
        z0_v3d=v3d.reshape(B, N, NUM_VERTS, 3)[:, 0],
        z0_j3d=j3d.reshape(B, N, NUM_SKELETON_J, 3)[:, 0],
        z0_j2d=j2d.reshape(B, N, NUM_SKELETON_J, 2)[:, 0],
        heatmap=heatmaps,
        hm_j2d=hm_j2d,
        hm_cfd=hm_cfd,
    )
    s2 = dict(
        log_p=logp2.reshape(B, -1),
        log_p_sampled=sampled_logp2,
        amb_shape=shape2.reshape(B, N, NUM_SHAPE),
        amb_weakcam=cam2.reshape(B, N, 3),
        amb_rmt=rmt2,
        amb_r6d=r6d2,
        amb_v3d=v3d2.reshape(B, N, NUM_VERTS, 3),
        amb_j3d=j3d2.reshape(B, N, NUM_SKELETON_J, 3),
        amb_j2d=j2d2.reshape(B, N, NUM_SKELETON_J, 2),
        z0_shape=shape2.reshape(B, N, NUM_SHAPE)[:, 0],
        z0_weakcam=cam2.reshape(B, N, 3)[:, 0],
        z0_rmt=rmt2[:, 0],
        z0_r6d=r6d2[:, 0],
        z0_v3d=v3d2.reshape(B, N, NUM_VERTS, 3)[:, 0],
        z0_j3d=j3d2.reshape(B, N, NUM_SKELETON_J, 3)[:, 0],
        z0_j2d=j2d2.reshape(B, N, NUM_SKELETON_J, 2)[:, 0],
        inner_j2d=inner_j2d,
        inner_cfd=inner_cfd,
    )
    return s1, s2


# ============================== parameter init ===============================
def init_params(key):
    p = {}
    keys = list(jax.random.split(key, 16))
    it = iter(keys)

    def dense(k, shape, dtype=jnp.float32):
        w = jax.random.normal(k, shape, jnp.float32) / jnp.sqrt(float(shape[0]))
        return w.astype(dtype)

    cins = [3] + FEATURE_CHANNELS[:-1]
    for lvl, (cin, cout) in enumerate(zip(cins, FEATURE_CHANNELS)):
        wdt = jnp.float32 if lvl == 0 else jnp.bfloat16   # lvl0 takes the VPU-FMA path
        p[f'bb_w{lvl}'] = dense(next(it), (cin, cout), wdt)
        p[f'bb_b{lvl}'] = jnp.zeros((cout,), jnp.float32)

    p['hm_w'] = dense(next(it), (FEATURE_CHANNELS[0], NUM_SKELETON_J), jnp.bfloat16)
    p['hm_b'] = jnp.zeros((NUM_SKELETON_J,), jnp.float32)

    d1_in = FEATURE_CHANNELS[-1] + NOISE_DIM
    d1_out = NUM_MANO_J * 6 + NUM_SHAPE + 3
    p['s1_flow_w'] = dense(next(it), (d1_in, d1_out))
    p['s1_flow_b'] = jnp.zeros((d1_out,), jnp.float32)

    resamp_in = NUM_SKELETON_J * (FEATURE_CHANNELS[2] + 3)
    p['s2_ctx_w'] = dense(next(it), (resamp_in, S2_CTX_DIM))
    p['s2_ctx_b'] = jnp.zeros((S2_CTX_DIM,), jnp.float32)
    p['s2_flow_w'] = dense(next(it), (S2_CTX_DIM + NOISE_DIM, NUM_MANO_J * 6))
    p['s2_flow_b'] = jnp.zeros((NUM_MANO_J * 6,), jnp.float32)

    # MANO-lite parameters (deterministic synthetic, no checkpoint load).
    # Stored lane-padded (778 -> 896 = 7*128) and coordinate-concat along lanes,
    # i.e. column c*896+v of sd_wide/tmpl_wide is coordinate c of vertex v.
    vpad = VERTS_PAD - NUM_VERTS
    tmpl = 0.05 * jax.random.normal(next(it), (3, NUM_VERTS), jnp.float32)
    sd = 0.01 * jax.random.normal(next(it), (3, NUM_SHAPE, NUM_VERTS), jnp.float32)
    p['mano_tmpl_wide'] = jnp.pad(tmpl, ((0, 0), (0, vpad))).reshape(1, 3 * VERTS_PAD)
    p['mano_sd_wide'] = jnp.transpose(
        jnp.pad(sd, ((0, 0), (0, 0), (0, vpad))), (1, 0, 2)
    ).reshape(NUM_SHAPE, 3 * VERTS_PAD)
    jr = jnp.abs(jax.random.normal(next(it), (NUM_SKELETON_J, NUM_VERTS), jnp.float32))
    jr = jr / jnp.sum(jr, axis=-1, keepdims=True)
    p['mano_jregT'] = jnp.pad(jnp.transpose(jr), ((0, vpad), (0, 0)))  # (896, 21), zero pad rows
    return p


# ==================================== main ===================================
if __name__ == "__main__":
    key = jax.random.PRNGKey(0)
    pkey, dkey, skey = jax.random.split(key, 3)

    params = init_params(pkey)
    B, N = 2, 4
    image = jax.random.normal(dkey, (B, 3, 64, 64), jnp.float32)
    batch_data = {'image': image}

    fwd = jax.jit(functools.partial(amb_hand_forward, num_samples=N))
    s1_preds, s2_preds = fwd(params, batch_data, skey)
    jax.tree_util.tree_map(jax.block_until_ready, (s1_preds, s2_preds))

    assert s1_preds['amb_v3d'].shape == (B, N, NUM_VERTS, 3)
    assert s1_preds['amb_j3d'].shape == (B, N, NUM_SKELETON_J, 3)
    assert s1_preds['amb_j2d'].shape == (B, N, NUM_SKELETON_J, 2)
    assert s1_preds['heatmap'].shape == (B, NUM_SKELETON_J, 16, 16)
    assert s2_preds['amb_rmt'].shape == (B, N, NUM_MANO_J, 3, 3)
    assert s2_preds['amb_j2d'].shape == (B, N, NUM_SKELETON_J, 2)
    print("KERNEL_OK")
</pallas_src>

<mosaic_0001>
module attributes {stable_mosaic.version = 11 : i64} {
  func.func @_linear_kernel(%arg0: i32, %arg1: memref<256x3xf32, #tpu.memory_space<vmem>>, %arg2: memref<3x128xf32, #tpu.memory_space<vmem>>, %arg3: memref<1x128xf32, #tpu.memory_space<vmem>>, %arg4: memref<256x128xbf16, #tpu.memory_space<vmem>>) attributes {dimension_semantics = [#tpu.dimension_semantics<parallel>], iteration_bounds = array<i64: 2>, scalar_prefetch = 0 : i64, scratch_operands = 0 : i64, tpu.core_type = #tpu.core_type<tc>, window_params = [{transform_indices = @transform_0, window_bounds = array<i64: 256, 3>}, {pipeline_mode = #tpu.pipeline_mode<synchronous>, transform_indices = @transform_1, window_bounds = array<i64: 3, 128>}, {pipeline_mode = #tpu.pipeline_mode<synchronous>, transform_indices = @transform_2, window_bounds = array<i64: 1, 128>}, {transform_indices = @transform_3, window_bounds = array<i64: 256, 128>}]} {
    %c0 = arith.constant 0 : index
    %c0_0 = arith.constant 0 : index
    %0 = vector.load %arg1[%c0, %c0_0] : memref<256x3xf32, #tpu.memory_space<vmem>>, vector<256x3xf32>
    %c0_1 = arith.constant 0 : index
    %c0_2 = arith.constant 0 : index
    %1 = vector.load %arg2[%c0_1, %c0_2] : memref<3x128xf32, #tpu.memory_space<vmem>>, vector<3x128xf32>
    %2 = vector.extract_strided_slice %0 {offsets = [0, 0], sizes = [256, 1], strides = [1, 1]} : vector<256x3xf32> to vector<256x1xf32>
    %3 = vector.extract_strided_slice %1 {offsets = [0, 0], sizes = [1, 128], strides = [1, 1]} : vector<3x128xf32> to vector<1x128xf32>
    %4 = vector.broadcast %2 : vector<256x1xf32> to vector<256x128xf32>
    %5 = vector.broadcast %3 : vector<1x128xf32> to vector<256x128xf32>
    %6 = arith.mulf %4, %5 : vector<256x128xf32>
    %7 = vector.extract_strided_slice %0 {offsets = [0, 1], sizes = [256, 1], strides = [1, 1]} : vector<256x3xf32> to vector<256x1xf32>
    %8 = vector.extract_strided_slice %1 {offsets = [1, 0], sizes = [1, 128], strides = [1, 1]} : vector<3x128xf32> to vector<1x128xf32>
    %9 = vector.broadcast %7 : vector<256x1xf32> to vector<256x128xf32>
    %10 = vector.broadcast %8 : vector<1x128xf32> to vector<256x128xf32>
    %11 = arith.mulf %9, %10 : vector<256x128xf32>
    %12 = arith.addf %6, %11 : vector<256x128xf32>
    %13 = vector.extract_strided_slice %0 {offsets = [0, 2], sizes = [256, 1], strides = [1, 1]} : vector<256x3xf32> to vector<256x1xf32>
    %14 = vector.extract_strided_slice %1 {offsets = [2, 0], sizes = [1, 128], strides = [1, 1]} : vector<3x128xf32> to vector<1x128xf32>
    %15 = vector.broadcast %13 : vector<256x1xf32> to vector<256x128xf32>
    %16 = vector.broadcast %14 : vector<1x128xf32> to vector<256x128xf32>
    %17 = arith.mulf %15, %16 : vector<256x128xf32>
    %18 = arith.addf %12, %17 : vector<256x128xf32>
    %c0_3 = arith.constant 0 : index
    %c0_4 = arith.constant 0 : index
    %19 = vector.load %arg3[%c0_3, %c0_4] : memref<1x128xf32, #tpu.memory_space<vmem>>, vector<1x128xf32>
    %20 = vector.broadcast %19 : vector<1x128xf32> to vector<256x128xf32>
    %21 = arith.addf %18, %20 : vector<256x128xf32>
    %cst = arith.constant 0.000000e+00 : f32
    %22 = vector.broadcast %cst : f32 to vector<256x128xf32>
    %23 = arith.maximumf %21, %22 : vector<256x128xf32>
    %24 = arith.truncf %23 : vector<256x128xf32> to vector<256x128xbf16>
    %c0_5 = arith.constant 0 : index
    %c0_6 = arith.constant 0 : index
    %25 = vector.load %arg4[%c0_5, %c0_6] : memref<256x128xbf16, #tpu.memory_space<vmem>>, vector<256x128xbf16>
    tpu.vector_store %arg4[%c0_5, %c0_6], %24 {strides = array<i32>} : memref<256x128xbf16, #tpu.memory_space<vmem>>, vector<256x128xbf16>,
    return
  }
  func.func @transform_0(%arg0: i32) -> (i32, i32) {
    %c0_i32 = arith.constant 0 : i32
    %c0_i32_0 = arith.constant 0 : i32
    return %arg0, %c0_i32 : i32, i32
  }
  func.func @transform_1(%arg0: i32) -> (i32, i32) {
    %c0_i32 = arith.constant 0 : i32
    %c0_i32_0 = arith.constant 0 : i32
    %c0_i32_1 = arith.constant 0 : i32
    return %c0_i32, %c0_i32_0 : i32, i32
  }
  func.func @transform_2(%arg0: i32) -> (i32, i32) {
    %c0_i32 = arith.constant 0 : i32
    %c0_i32_0 = arith.constant 0 : i32
    %c0_i32_1 = arith.constant 0 : i32
    return %c0_i32, %c0_i32_0 : i32, i32
  }
  func.func @transform_3(%arg0: i32) -> (i32, i32) {
    %c0_i32 = arith.constant 0 : i32
    %c0_i32_0 = arith.constant 0 : i32
    return %arg0, %c0_i32 : i32, i32
  }
}

module attributes {stable_mosaic.version = 11 : i64} {
  func.func @_linear_kernel(%arg0: i32, %arg1: memref<256x32xbf16, #tpu.memory_space<vmem>>, %arg2: memref<32x128xbf16, #tpu.memory_space<vmem>>, %arg3: memref<1x128xf32, #tpu.memory_space<vmem>>, %arg4: memref<256x128xf32, #tpu.memory_space<vmem>>) attributes {dimension_semantics = [#tpu.dimension_semantics<parallel>], iteration_bounds = array<i64: 2>, scalar_prefetch = 0 : i64, scratch_operands = 0 : i64, tpu.core_type = #tpu.core_type<tc>, window_params = [{transform_indices = @transform_0, window_bounds = array<i64: 256, 32>}, {pipeline_mode = #tpu.pipeline_mode<synchronous>, transform_indices = @transform_1, window_bounds = array<i64: 32, 128>}, {pipeline_mode = #tpu.pipeline_mode<synchronous>, transform_indices = @transform_2, window_bounds = array<i64: 1, 128>}, {transform_indices = @transform_3, window_bounds = array<i64: 256, 128>}]} {
    %c0 = arith.constant 0 : index
    %c0_0 = arith.constant 0 : index
    %0 = vector.load %arg1[%c0, %c0_0] : memref<256x32xbf16, #tpu.memory_space<vmem>>, vector<256x32xbf16>
    %c0_1 = arith.constant 0 : index
    %c0_2 = arith.constant 0 : index
    %1 = vector.load %arg2[%c0_1, %c0_2] : memref<32x128xbf16, #tpu.memory_space<vmem>>, vector<32x128xbf16>
    %cst = arith.constant dense<0.000000e+00> : vector<256x128xf32>
    %2 = tpu.matmul %0, %1, %cst {dimension_numbers = #tpu.dot_dimension_numbers<[1], [0], [0], [1], [0, 0, 1, 1], [], []>} : vector<256x32xbf16>, vector<32x128xbf16>, vector<256x128xf32> -> vector<256x128xf32>
    %c0_3 = arith.constant 0 : index
    %c0_4 = arith.constant 0 : index
    %3 = vector.load %arg3[%c0_3, %c0_4] : memref<1x128xf32, #tpu.memory_space<vmem>>, vector<1x128xf32>
    %4 = vector.broadcast %3 : vector<1x128xf32> to vector<256x128xf32>
    %5 = arith.addf %2, %4 : vector<256x128xf32>
    %c0_5 = arith.constant 0 : index
    %c0_6 = arith.constant 0 : index
    %6 = vector.load %arg4[%c0_5, %c0_6] : memref<256x128xf32, #tpu.memory_space<vmem>>, vector<256x128xf32>
    tpu.vector_store %arg4[%c0_5, %c0_6], %5 {strides = array<i32>} : memref<256x128xf32, #tpu.memory_space<vmem>>, vector<256x128xf32>,
    return
  }
  func.func @transform_0(%arg0: i32) -> (i32, i32) {
    %c0_i32 = arith.constant 0 : i32
    %c0_i32_0 = arith.constant 0 : i32
    return %arg0, %c0_i32 : i32, i32
  }
  func.func @transform_1(%arg0: i32) -> (i32, i32) {
    %c0_i32 = arith.constant 0 : i32
    %c0_i32_0 = arith.constant 0 : i32
    %c0_i32_1 = arith.constant 0 : i32
    return %c0_i32, %c0_i32_0 : i32, i32
  }
  func.func @transform_2(%arg0: i32) -> (i32, i32) {
    %c0_i32 = arith.constant 0 : i32
    %c0_i32_0 = arith.constant 0 : i32
    %c0_i32_1 = arith.constant 0 : i32
    return %c0_i32, %c0_i32_0 : i32, i32
  }
  func.func @transform_3(%arg0: i32) -> (i32, i32) {
    %c0_i32 = arith.constant 0 : i32
    %c0_i32_0 = arith.constant 0 : i32
    return %arg0, %c0_i32 : i32, i32
  }
}

module attributes {stable_mosaic.version = 11 : i64} {
  func.func @_linear_kernel(%arg0: i32, %arg1: memref<128x32xbf16, #tpu.memory_space<vmem>>, %arg2: memref<32x128xbf16, #tpu.memory_space<vmem>>, %arg3: memref<1x128xf32, #tpu.memory_space<vmem>>, %arg4: memref<128x128xbf16, #tpu.memory_space<vmem>>) attributes {dimension_semantics = [#tpu.dimension_semantics<parallel>], iteration_bounds = array<i64: 1>, scalar_prefetch = 0 : i64, scratch_operands = 0 : i64, tpu.core_type = #tpu.core_type<tc>, window_params = [{transform_indices = @transform_0, window_bounds = array<i64: 128, 32>}, {pipeline_mode = #tpu.pipeline_mode<synchronous>, transform_indices = @transform_1, window_bounds = array<i64: 32, 128>}, {pipeline_mode = #tpu.pipeline_mode<synchronous>, transform_indices = @transform_2, window_bounds = array<i64: 1, 128>}, {transform_indices = @transform_3, window_bounds = array<i64: 128, 128>}]} {
    %c0 = arith.constant 0 : index
    %c0_0 = arith.constant 0 : index
    %0 = vector.load %arg1[%c0, %c0_0] : memref<128x32xbf16, #tpu.memory_space<vmem>>, vector<128x32xbf16>
    %c0_1 = arith.constant 0 : index
    %c0_2 = arith.constant 0 : index
    %1 = vector.load %arg2[%c0_1, %c0_2] : memref<32x128xbf16, #tpu.memory_space<vmem>>, vector<32x128xbf16>
    %cst = arith.constant dense<0.000000e+00> : vector<128x128xf32>
    %2 = tpu.matmul %0, %1, %cst {dimension_numbers = #tpu.dot_dimension_numbers<[1], [0], [0], [1], [0, 0, 1, 1], [], []>} : vector<128x32xbf16>, vector<32x128xbf16>, vector<128x128xf32> -> vector<128x128xf32>
    %c0_3 = arith.constant 0 : index
    %c0_4 = arith.constant 0 : index
    %3 = vector.load %arg3[%c0_3, %c0_4] : memref<1x128xf32, #tpu.memory_space<vmem>>, vector<1x128xf32>
    %4 = vector.broadcast %3 : vector<1x128xf32> to vector<128x128xf32>
    %5 = arith.addf %2, %4 : vector<128x128xf32>
    %cst_5 = arith.constant 0.000000e+00 : f32
    %6 = vector.broadcast %cst_5 : f32 to vector<128x128xf32>
    %7 = arith.maximumf %5, %6 : vector<128x128xf32>
    %8 = arith.truncf %7 : vector<128x128xf32> to vector<128x128xbf16>
    %c0_6 = arith.constant 0 : index
    %c0_7 = arith.constant 0 : index
    %9 = vector.load %arg4[%c0_6, %c0_7] : memref<128x128xbf16, #tpu.memory_space<vmem>>, vector<128x128xbf16>
    tpu.vector_store %arg4[%c0_6, %c0_7], %8 {strides = array<i32>} : memref<128x128xbf16, #tpu.memory_space<vmem>>, vector<128x128xbf16>,
    return
  }
  func.func @transform_0(%arg0: i32) -> (i32, i32) {
    %c0_i32 = arith.constant 0 : i32
    %c0_i32_0 = arith.constant 0 : i32
    return %arg0, %c0_i32 : i32, i32
  }
  func.func @transform_1(%arg0: i32) -> (i32, i32) {
    %c0_i32 = arith.constant 0 : i32
    %c0_i32_0 = arith.constant 0 : i32
    %c0_i32_1 = arith.constant 0 : i32
    return %c0_i32, %c0_i32_0 : i32, i32
  }
  func.func @transform_2(%arg0: i32) -> (i32, i32) {
    %c0_i32 = arith.constant 0 : i32
    %c0_i32_0 = arith.constant 0 : i32
    %c0_i32_1 = arith.constant 0 : i32
    return %c0_i32, %c0_i32_0 : i32, i32
  }
  func.func @transform_3(%arg0: i32) -> (i32, i32) {
    %c0_i32 = arith.constant 0 : i32
    %c0_i32_0 = arith.constant 0 : i32
    return %arg0, %c0_i32 : i32, i32
  }
}

module attributes {stable_mosaic.version = 11 : i64} {
  func.func @_linear_kernel(%arg0: i32, %arg1: memref<32x64xbf16, #tpu.memory_space<vmem>>, %arg2: memref<64x128xbf16, #tpu.memory_space<vmem>>, %arg3: memref<1x128xf32, #tpu.memory_space<vmem>>, %arg4: memref<32x128xbf16, #tpu.memory_space<vmem>>) attributes {dimension_semantics = [#tpu.dimension_semantics<parallel>], iteration_bounds = array<i64: 1>, scalar_prefetch = 0 : i64, scratch_operands = 0 : i64, tpu.core_type = #tpu.core_type<tc>, window_params = [{transform_indices = @transform_0, window_bounds = array<i64: 32, 64>}, {pipeline_mode = #tpu.pipeline_mode<synchronous>, transform_indices = @transform_1, window_bounds = array<i64: 64, 128>}, {pipeline_mode = #tpu.pipeline_mode<synchronous>, transform_indices = @transform_2, window_bounds = array<i64: 1, 128>}, {transform_indices = @transform_3, window_bounds = array<i64: 32, 128>}]} {
    %c0 = arith.constant 0 : index
    %c0_0 = arith.constant 0 : index
    %0 = vector.load %arg1[%c0, %c0_0] : memref<32x64xbf16, #tpu.memory_space<vmem>>, vector<32x64xbf16>
    %c0_1 = arith.constant 0 : index
    %c0_2 = arith.constant 0 : index
    %1 = vector.load %arg2[%c0_1, %c0_2] : memref<64x128xbf16, #tpu.memory_space<vmem>>, vector<64x128xbf16>
    %cst = arith.constant dense<0.000000e+00> : vector<32x128xf32>
    %2 = tpu.matmul %0, %1, %cst {dimension_numbers = #tpu.dot_dimension_numbers<[1], [0], [0], [1], [0, 0, 1, 1], [], []>} : vector<32x64xbf16>, vector<64x128xbf16>, vector<32x128xf32> -> vector<32x128xf32>
    %c0_3 = arith.constant 0 : index
    %c0_4 = arith.constant 0 : index
    %3 = vector.load %arg3[%c0_3, %c0_4] : memref<1x128xf32, #tpu.memory_space<vmem>>, vector<1x128xf32>
    %4 = vector.broadcast %3 : vector<1x128xf32> to vector<32x128xf32>
    %5 = arith.addf %2, %4 : vector<32x128xf32>
    %cst_5 = arith.constant 0.000000e+00 : f32
    %6 = vector.broadcast %cst_5 : f32 to vector<32x128xf32>
    %7 = arith.maximumf %5, %6 : vector<32x128xf32>
    %8 = arith.truncf %7 : vector<32x128xf32> to vector<32x128xbf16>
    %c0_6 = arith.constant 0 : index
    %c0_7 = arith.constant 0 : index
    %9 = vector.load %arg4[%c0_6, %c0_7] : memref<32x128xbf16, #tpu.memory_space<vmem>>, vector<32x128xbf16>
    tpu.vector_store %arg4[%c0_6, %c0_7], %8 {strides = array<i32>} : memref<32x128xbf16, #tpu.memory_space<vmem>>, vector<32x128xbf16>,
    return
  }
  func.func @transform_0(%arg0: i32) -> (i32, i32) {
    %c0_i32 = arith.constant 0 : i32
    %c0_i32_0 = arith.constant 0 : i32
    return %arg0, %c0_i32 : i32, i32
  }
  func.func @transform_1(%arg0: i32) -> (i32, i32) {
    %c0_i32 = arith.constant 0 : i32
    %c0_i32_0 = arith.constant 0 : i32
    %c0_i32_1 = arith.constant 0 : i32
    return %c0_i32, %c0_i32_0 : i32, i32
  }
  func.func @transform_2(%arg0: i32) -> (i32, i32) {
    %c0_i32 = arith.constant 0 : i32
    %c0_i32_0 = arith.constant 0 : i32
    %c0_i32_1 = arith.constant 0 : i32
    return %c0_i32, %c0_i32_0 : i32, i32
  }
  func.func @transform_3(%arg0: i32) -> (i32, i32) {
    %c0_i32 = arith.constant 0 : i32
    %c0_i32_0 = arith.constant 0 : i32
    return %arg0, %c0_i32 : i32, i32
  }
}

module attributes {stable_mosaic.version = 11 : i64} {
  func.func @_linear_kernel(%arg0: i32, %arg1: memref<8x128xbf16, #tpu.memory_space<vmem>>, %arg2: memref<128x256xbf16, #tpu.memory_space<vmem>>, %arg3: memref<1x256xf32, #tpu.memory_space<vmem>>, %arg4: memref<8x256xbf16, #tpu.memory_space<vmem>>) attributes {dimension_semantics = [#tpu.dimension_semantics<parallel>], iteration_bounds = array<i64: 1>, scalar_prefetch = 0 : i64, scratch_operands = 0 : i64, tpu.core_type = #tpu.core_type<tc>, window_params = [{transform_indices = @transform_0, window_bounds = array<i64: 8, 128>}, {pipeline_mode = #tpu.pipeline_mode<synchronous>, transform_indices = @transform_1, window_bounds = array<i64: 128, 256>}, {pipeline_mode = #tpu.pipeline_mode<synchronous>, transform_indices = @transform_2, window_bounds = array<i64: 1, 256>}, {transform_indices = @transform_3, window_bounds = array<i64: 8, 256>}]} {
    %c0 = arith.constant 0 : index
    %c0_0 = arith.constant 0 : index
    %0 = vector.load %arg1[%c0, %c0_0] : memref<8x128xbf16, #tpu.memory_space<vmem>>, vector<8x128xbf16>
    %c0_1 = arith.constant 0 : index
    %c0_2 = arith.constant 0 : index
    %1 = vector.load %arg2[%c0_1, %c0_2] : memref<128x256xbf16, #tpu.memory_space<vmem>>, vector<128x256xbf16>
    %cst = arith.constant dense<0.000000e+00> : vector<8x256xf32>
    %2 = tpu.matmul %0, %1, %cst {dimension_numbers = #tpu.dot_dimension_numbers<[1], [0], [0], [1], [0, 0, 1, 1], [], []>} : vector<8x128xbf16>, vector<128x256xbf16>, vector<8x256xf32> -> vector<8x256xf32>
    %c0_3 = arith.constant 0 : index
    %c0_4 = arith.constant 0 : index
    %3 = vector.load %arg3[%c0_3, %c0_4] : memref<1x256xf32, #tpu.memory_space<vmem>>, vector<1x256xf32>
    %4 = vector.broadcast %3 : vector<1x256xf32> to vector<8x256xf32>
    %5 = arith.addf %2, %4 : vector<8x256xf32>
    %cst_5 = arith.constant 0.000000e+00 : f32
    %6 = vector.broadcast %cst_5 : f32 to vector<8x256xf32>
    %7 = arith.maximumf %5, %6 : vector<8x256xf32>
    %8 = arith.truncf %7 : vector<8x256xf32> to vector<8x256xbf16>
    %c0_6 = arith.constant 0 : index
    %c0_7 = arith.constant 0 : index
    %9 = vector.load %arg4[%c0_6, %c0_7] : memref<8x256xbf16, #tpu.memory_space<vmem>>, vector<8x256xbf16>
    tpu.vector_store %arg4[%c0_6, %c0_7], %8 {strides = array<i32>} : memref<8x256xbf16, #tpu.memory_space<vmem>>, vector<8x256xbf16>,
    return
  }
  func.func @transform_0(%arg0: i32) -> (i32, i32) {
    %c0_i32 = arith.constant 0 : i32
    %c0_i32_0 = arith.constant 0 : i32
    return %arg0, %c0_i32 : i32, i32
  }
  func.func @transform_1(%arg0: i32) -> (i32, i32) {
    %c0_i32 = arith.constant 0 : i32
    %c0_i32_0 = arith.constant 0 : i32
    %c0_i32_1 = arith.constant 0 : i32
    return %c0_i32, %c0_i32_0 : i32, i32
  }
  func.func @transform_2(%arg0: i32) -> (i32, i32) {
    %c0_i32 = arith.constant 0 : i32
    %c0_i32_0 = arith.constant 0 : i32
    %c0_i32_1 = arith.constant 0 : i32
    return %c0_i32, %c0_i32_0 : i32, i32
  }
  func.func @transform_3(%arg0: i32) -> (i32, i32) {
    %c0_i32 = arith.constant 0 : i32
    %c0_i32_0 = arith.constant 0 : i32
    return %arg0, %c0_i32 : i32, i32
  }
}

module attributes {stable_mosaic.version = 11 : i64} {
  func.func @_mano_proj_kernel(%arg0: i32, %arg1: memref<16x10xf32, #tpu.memory_space<vmem>>, %arg2: memref<16x9xf32, #tpu.memory_space<vmem>>, %arg3: memref<16x3xf32, #tpu.memory_space<vmem>>, %arg4: memref<10x2688xf32, #tpu.memory_space<vmem>>, %arg5: memref<1x2688xf32, #tpu.memory_space<vmem>>, %arg6: memref<896x21xf32, #tpu.memory_space<vmem>>, %arg7: memref<3x16x896xf32, #tpu.memory_space<vmem>>, %arg8: memref<48x21xf32, #tpu.memory_space<vmem>>, %arg9: memref<2x16x21xf32, #tpu.memory_space<vmem>>) attributes {dimension_semantics = [#tpu.dimension_semantics<arbitrary>], iteration_bounds = array<i64: 1>, scalar_prefetch = 0 : i64, scratch_operands = 0 : i64, tpu.core_type = #tpu.core_type<tc>, window_params = [{pipeline_mode = #tpu.pipeline_mode<synchronous>, transform_indices = @transform_0, window_bounds = array<i64: 16, 10>}, {pipeline_mode = #tpu.pipeline_mode<synchronous>, transform_indices = @transform_1, window_bounds = array<i64: 16, 9>}, {pipeline_mode = #tpu.pipeline_mode<synchronous>, transform_indices = @transform_2, window_bounds = array<i64: 16, 3>}, {pipeline_mode = #tpu.pipeline_mode<synchronous>, transform_indices = @transform_3, window_bounds = array<i64: 10, 2688>}, {pipeline_mode = #tpu.pipeline_mode<synchronous>, transform_indices = @transform_4, window_bounds = array<i64: 1, 2688>}, {pipeline_mode = #tpu.pipeline_mode<synchronous>, transform_indices = @transform_5, window_bounds = array<i64: 896, 21>}, {pipeline_mode = #tpu.pipeline_mode<synchronous>, transform_indices = @transform_6, window_bounds = array<i64: 3, 16, 896>}, {pipeline_mode = #tpu.pipeline_mode<synchronous>, transform_indices = @transform_7, window_bounds = array<i64: 48, 21>}, {pipeline_mode = #tpu.pipeline_mode<synchronous>, transform_indices = @transform_8, window_bounds = array<i64: 2, 16, 21>}]} {
    %c0 = arith.constant 0 : index
    %c0_0 = arith.constant 0 : index
    %0 = vector.load %arg1[%c0, %c0_0] : memref<16x10xf32, #tpu.memory_space<vmem>>, vector<16x10xf32>
    %c0_1 = arith.constant 0 : index
    %c0_2 = arith.constant 0 : index
    %1 = vector.load %arg2[%c0_1, %c0_2] : memref<16x9xf32, #tpu.memory_space<vmem>>, vector<16x9xf32>
    %c0_3 = arith.constant 0 : index
    %c0_4 = arith.constant 0 : index
    %2 = vector.load %arg3[%c0_3, %c0_4] : memref<16x3xf32, #tpu.memory_space<vmem>>, vector<16x3xf32>
    %c0_5 = arith.constant 0 : index
    %c0_6 = arith.constant 0 : index
    %3 = vector.load %arg4[%c0_5, %c0_6] : memref<10x2688xf32, #tpu.memory_space<vmem>>, vector<10x2688xf32>
    %cst = arith.constant dense<0.000000e+00> : vector<16x2688xf32>
    %4 = tpu.matmul %0, %3, %cst {dimension_numbers = #tpu.dot_dimension_numbers<[1], [0], [0], [1], [0, 0, 1, 1], [], []>} : vector<16x10xf32>, vector<10x2688xf32>, vector<16x2688xf32> -> vector<16x2688xf32>
    %c0_7 = arith.constant 0 : index
    %c0_8 = arith.constant 0 : index
    %5 = vector.load %arg5[%c0_7, %c0_8] : memref<1x2688xf32, #tpu.memory_space<vmem>>, vector<1x2688xf32>
    %6 = vector.broadcast %5 : vector<1x2688xf32> to vector<16x2688xf32>
    %7 = arith.addf %4, %6 : vector<16x2688xf32>
    %8 = vector.extract_strided_slice %7 {offsets = [0, 0], sizes = [16, 896], strides = [1, 1]} : vector<16x2688xf32> to vector<16x896xf32>
    %9 = vector.extract_strided_slice %7 {offsets = [0, 896], sizes = [16, 896], strides = [1, 1]} : vector<16x2688xf32> to vector<16x896xf32>
    %10 = vector.extract_strided_slice %7 {offsets = [0, 1792], sizes = [16, 896], strides = [1, 1]} : vector<16x2688xf32> to vector<16x896xf32>
    %11 = vector.extract_strided_slice %1 {offsets = [0, 0], sizes = [16, 1], strides = [1, 1]} : vector<16x9xf32> to vector<16x1xf32>
    %12 = vector.broadcast %11 : vector<16x1xf32> to vector<16x896xf32>
    %13 = arith.mulf %12, %8 : vector<16x896xf32>
    %14 = vector.extract_strided_slice %1 {offsets = [0, 1], sizes = [16, 1], strides = [1, 1]} : vector<16x9xf32> to vector<16x1xf32>
    %15 = vector.broadcast %14 : vector<16x1xf32> to vector<16x896xf32>
    %16 = arith.mulf %15, %9 : vector<16x896xf32>
    %17 = arith.addf %13, %16 : vector<16x896xf32>
    %18 = vector.extract_strided_slice %1 {offsets = [0, 2], sizes = [16, 1], strides = [1, 1]} : vector<16x9xf32> to vector<16x1xf32>
    %19 = vector.broadcast %18 : vector<16x1xf32> to vector<16x896xf32>
    %20 = arith.mulf %19, %10 : vector<16x896xf32>
    %21 = arith.addf %17, %20 : vector<16x896xf32>
    %c0_9 = arith.constant 0 : index
    %c0_10 = arith.constant 0 : index
    %c0_11 = arith.constant 0 : index
    %22 = vector.load %arg7[%c0_9, %c0_10, %c0_11] : memref<3x16x896xf32, #tpu.memory_space<vmem>>, vector<1x16x896xf32>
    %23 = vector.shape_cast %22 : vector<1x16x896xf32> to vector<16x896xf32>
    %24 = vector.shape_cast %21 : vector<16x896xf32> to vector<1x16x896xf32>
    tpu.vector_store %arg7[%c0_9, %c0_10, %c0_11], %24 {strides = array<i32>} : memref<3x16x896xf32, #tpu.memory_space<vmem>>, vector<1x16x896xf32>,
    %25 = vector.extract_strided_slice %1 {offsets = [0, 3], sizes = [16, 1], strides = [1, 1]} : vector<16x9xf32> to vector<16x1xf32>
    %26 = vector.broadcast %25 : vector<16x1xf32> to vector<16x896xf32>
    %27 = arith.mulf %26, %8 : vector<16x896xf32>
    %28 = vector.extract_strided_slice %1 {offsets = [0, 4], sizes = [16, 1], strides = [1, 1]} : vector<16x9xf32> to vector<16x1xf32>
    %29 = vector.broadcast %28 : vector<16x1xf32> to vector<16x896xf32>
    %30 = arith.mulf %29, %9 : vector<16x896xf32>
    %31 = arith.addf %27, %30 : vector<16x896xf32>
    %32 = vector.extract_strided_slice %1 {offsets = [0, 5], sizes = [16, 1], strides = [1, 1]} : vector<16x9xf32> to vector<16x1xf32>
    %33 = vector.broadcast %32 : vector<16x1xf32> to vector<16x896xf32>
    %34 = arith.mulf %33, %10 : vector<16x896xf32>
    %35 = arith.addf %31, %34 : vector<16x896xf32>
    %c1 = arith.constant 1 : index
    %c0_12 = arith.constant 0 : index
    %c0_13 = arith.constant 0 : index
    %36 = vector.load %arg7[%c1, %c0_12, %c0_13] : memref<3x16x896xf32, #tpu.memory_space<vmem>>, vector<1x16x896xf32>
    %37 = vector.shape_cast %36 : vector<1x16x896xf32> to vector<16x896xf32>
    %38 = vector.shape_cast %35 : vector<16x896xf32> to vector<1x16x896xf32>
    tpu.vector_store %arg7[%c1, %c0_12, %c0_13], %38 {strides = array<i32>} : memref<3x16x896xf32, #tpu.memory_space<vmem>>, vector<1x16x896xf32>,
    %39 = vector.extract_strided_slice %1 {offsets = [0, 6], sizes = [16, 1], strides = [1, 1]} : vector<16x9xf32> to vector<16x1xf32>
    %40 = vector.broadcast %39 : vector<16x1xf32> to vector<16x896xf32>
    %41 = arith.mulf %40, %8 : vector<16x896xf32>
    %42 = vector.extract_strided_slice %1 {offsets = [0, 7], sizes = [16, 1], strides = [1, 1]} : vector<16x9xf32> to vector<16x1xf32>
    %43 = vector.broadcast %42 : vector<16x1xf32> to vector<16x896xf32>
    %44 = arith.mulf %43, %9 : vector<16x896xf32>
    %45 = arith.addf %41, %44 : vector<16x896xf32>
    %46 = vector.extract_strided_slice %1 {offsets = [0, 8], sizes = [16, 1], strides = [1, 1]} : vector<16x9xf32> to vector<16x1xf32>
    %47 = vector.broadcast %46 : vector<16x1xf32> to vector<16x896xf32>
    %48 = arith.mulf %47, %10 : vector<16x896xf32>
    %49 = arith.addf %45, %48 : vector<16x896xf32>
    %c2 = arith.constant 2 : index
    %c0_14 = arith.constant 0 : index
    %c0_15 = arith.constant 0 : index
    %50 = vector.load %arg7[%c2, %c0_14, %c0_15] : memref<3x16x896xf32, #tpu.memory_space<vmem>>, vector<1x16x896xf32>
    %51 = vector.shape_cast %50 : vector<1x16x896xf32> to vector<16x896xf32>
    %52 = vector.shape_cast %49 : vector<16x896xf32> to vector<1x16x896xf32>
    tpu.vector_store %arg7[%c2, %c0_14, %c0_15], %52 {strides = array<i32>} : memref<3x16x896xf32, #tpu.memory_space<vmem>>, vector<1x16x896xf32>,
    %c0_16 = arith.constant 0 : index
    %c0_17 = arith.constant 0 : index
    %c0_18 = arith.constant 0 : index
    %53 = vector.load %arg7[%c0_16, %c0_17, %c0_18] : memref<3x16x896xf32, #tpu.memory_space<vmem>>, vector<3x16x896xf32>
    %54 = vector.shape_cast %53 : vector<3x16x896xf32> to vector<48x896xf32>
    %c0_19 = arith.constant 0 : index
    %c0_20 = arith.constant 0 : index
    %55 = vector.load %arg6[%c0_19, %c0_20] : memref<896x21xf32, #tpu.memory_space<vmem>>, vector<896x21xf32>
    %cst_21 = arith.constant dense<0.000000e+00> : vector<48x21xf32>
    %56 = tpu.matmul %54, %55, %cst_21 {dimension_numbers = #tpu.dot_dimension_numbers<[1], [0], [0], [1], [0, 0, 1, 1], [], []>} : vector<48x896xf32>, vector<896x21xf32>, vector<48x21xf32> -> vector<48x21xf32>
    %c0_22 = arith.constant 0 : index
    %c0_23 = arith.constant 0 : index
    %57 = vector.load %arg8[%c0_22, %c0_23] : memref<48x21xf32, #tpu.memory_space<vmem>>, vector<48x21xf32>
    tpu.vector_store %arg8[%c0_22, %c0_23], %56 {strides = array<i32>} : memref<48x21xf32, #tpu.memory_space<vmem>>, vector<48x21xf32>,
    %58 = vector.extract_strided_slice %2 {offsets = [0, 0], sizes = [16, 1], strides = [1, 1]} : vector<16x3xf32> to vector<16x1xf32>
    %cst_24 = arith.constant 1.000000e+03 : f32
    %59 = vector.broadcast %cst_24 : f32 to vector<16x1xf32>
    %60 = arith.mulf %58, %59 : vector<16x1xf32>
    %61 = vector.extract_strided_slice %56 {offsets = [0, 0], sizes = [16, 21], strides = [1, 1]} : vector<48x21xf32> to vector<16x21xf32>
    %62 = vector.broadcast %60 : vector<16x1xf32> to vector<16x21xf32>
    %63 = arith.mulf %61, %62 : vector<16x21xf32>
    %64 = vector.extract_strided_slice %2 {offsets = [0, 1], sizes = [16, 1], strides = [1, 1]} : vector<16x3xf32> to vector<16x1xf32>
    %65 = vector.broadcast %64 : vector<16x1xf32> to vector<16x21xf32>
    %66 = arith.addf %63, %65 : vector<16x21xf32>
    %c0_25 = arith.constant 0 : index
    %c0_26 = arith.constant 0 : index
    %c0_27 = arith.constant 0 : index
    %67 = vector.load %arg9[%c0_25, %c0_26, %c0_27] : memref<2x16x21xf32, #tpu.memory_space<vmem>>, vector<1x16x21xf32>
    %68 = vector.shape_cast %67 : vector<1x16x21xf32> to vector<16x21xf32>
    %69 = vector.shape_cast %66 : vector<16x21xf32> to vector<1x16x21xf32>
    tpu.vector_store %arg9[%c0_25, %c0_26, %c0_27], %69 {strides = array<i32>} : memref<2x16x21xf32, #tpu.memory_space<vmem>>, vector<1x16x21xf32>,
    %70 = vector.extract_strided_slice %56 {offsets = [16, 0], sizes = [16, 21], strides = [1, 1]} : vector<48x21xf32> to vector<16x21xf32>
    %71 = vector.broadcast %60 : vector<16x1xf32> to vector<16x21xf32>
    %72 = arith.mulf %70, %71 : vector<16x21xf32>
    %73 = vector.extract_strided_slice %2 {offsets = [0, 2], sizes = [16, 1], strides = [1, 1]} : vector<16x3xf32> to vector<16x1xf32>
    %74 = vector.broadcast %73 : vector<16x1xf32> to vector<16x21xf32>
    %75 = arith.addf %72, %74 : vector<16x21xf32>
    %c1_28 = arith.constant 1 : index
    %c0_29 = arith.constant 0 : index
    %c0_30 = arith.constant 0 : index
    %76 = vector.load %arg9[%c1_28, %c0_29, %c0_30] : memref<2x16x21xf32, #tpu.memory_space<vmem>>, vector<1x16x21xf32>
    %77 = vector.shape_cast %76 : vector<1x16x21xf32> to vector<16x21xf32>
    %78 = vector.shape_cast %75 : vector<16x21xf32> to vector<1x16x21xf32>
    tpu.vector_store %arg9[%c1_28, %c0_29, %c0_30], %78 {strides = array<i32>} : memref<2x16x21xf32, #tpu.memory_space<vmem>>, vector<1x16x21xf32>,
    return
  }
  func.func @transform_0(%arg0: i32) -> (i32, i32) {
    %c0_i32 = arith.constant 0 : i32
    %c0_i32_0 = arith.constant 0 : i32
    %c0_i32_1 = arith.constant 0 : i32
    return %c0_i32, %c0_i32_0 : i32, i32
  }
  func.func @transform_1(%arg0: i32) -> (i32, i32) {
    %c0_i32 = arith.constant 0 : i32
    %c0_i32_0 = arith.constant 0 : i32
    %c0_i32_1 = arith.constant 0 : i32
    return %c0_i32, %c0_i32_0 : i32, i32
  }
  func.func @transform_2(%arg0: i32) -> (i32, i32) {
    %c0_i32 = arith.constant 0 : i32
    %c0_i32_0 = arith.constant 0 : i32
    %c0_i32_1 = arith.constant 0 : i32
    return %c0_i32, %c0_i32_0 : i32, i32
  }
  func.func @transform_3(%arg0: i32) -> (i32, i32) {
    %c0_i32 = arith.constant 0 : i32
    %c0_i32_0 = arith.constant 0 : i32
    %c0_i32_1 = arith.constant 0 : i32
    return %c0_i32, %c0_i32_0 : i32, i32
  }
  func.func @transform_4(%arg0: i32) -> (i32, i32) {
    %c0_i32 = arith.constant 0 : i32
    %c0_i32_0 = arith.constant 0 : i32
    %c0_i32_1 = arith.constant 0 : i32
    return %c0_i32, %c0_i32_0 : i32, i32
  }
  func.func @transform_5(%arg0: i32) -> (i32, i32) {
    %c0_i32 = arith.constant 0 : i32
    %c0_i32_0 = arith.constant 0 : i32
    %c0_i32_1 = arith.constant 0 : i32
    return %c0_i32, %c0_i32_0 : i32, i32
  }
  func.func @transform_6(%arg0: i32) -> (i32, i32, i32) {
    %c0_i32 = arith.constant 0 : i32
    %c0_i32_0 = arith.constant 0 : i32
    %c0_i32_1 = arith.constant 0 : i32
    %c0_i32_2 = arith.constant 0 : i32
    return %c0_i32, %c0_i32_0, %c0_i32_1 : i32, i32, i32
  }
  func.func @transform_7(%arg0: i32) -> (i32, i32) {
    %c0_i32 = arith.constant 0 : i32
    %c0_i32_0 = arith.constant 0 : i32
    %c0_i32_1 = arith.constant 0 : i32
    return %c0_i32, %c0_i32_0 : i32, i32
  }
  func.func @transform_8(%arg0: i32) -> (i32, i32, i32) {
    %c0_i32 = arith.constant 0 : i32
    %c0_i32_0 = arith.constant 0 : i32
    %c0_i32_1 = arith.constant 0 : i32
    %c0_i32_2 = arith.constant 0 : i32
    return %c0_i32, %c0_i32_0, %c0_i32_1 : i32, i32, i32
  }
}

</mosaic_0001>

<llo_original>
// kernel: amb_hand_forward.8
$region0: #{amb_hand_forward.8}
  #allocation0 [shape = 'u32[]', space=smem, size = 0x4, offset = 0x4, fixed_abs, tag = 'smem constant byte address 0x4 - core index']
  #allocation1 [shape = 'u32[144,128]{1,0:T(1,128)}', space=vmem, size = 0x12000, scoped, tag = 'internal scratch']
  %s0 = inlined_call_operand.vmem [shape: f32[512,3], index: 0, kind: input, shape index: {}]
  %s1 = inlined_call_operand.vmem [shape: f32[3,128], index: 1, kind: input, shape index: {}]
  %s2 = inlined_call_operand.vmem [shape: f32[1,128], index: 2, kind: input, shape index: {}]
  %s3 = inlined_call_operand.vmem [shape: bf16[512,128], index: 3, kind: output, shape index: {}]
  %s4 = sld [smem:[#allocation0]]
  $region45: #{amb_hand_forward.8} parent=0
    _
  %s6 = ssub.s32 1, %s4
  %s7 = scalar_select 0, %s6, %s4
  loop: start=0, step=1, limit=4
  $region2: #{amb_hand_forward.8} parent=0 // loop_pre_header
    _
  $region3: #{amb_hand_forward.8} parent=0 // loop_header
    %s9 = sphi 0, %s13
    %p10 = scmp.ge.s32.totalorder %s9, 4
    %s19 = sphi 0, %s21
    %s22 = sphi 0, %s19
    %s23 = sphi 0, %s22
    %s39 = sphi 0, %s23
    %s43 = sphi 0, %s43
    %s45 = sphi 0, %s43
    %s46 = sphi 0, %s45
    %s60 = sphi 0, %s46
    %s64 = sphi 0, %s64
    %s66 = sphi 0, %s64
    %s67 = sphi 0, %s66
    %s81 = sphi 0, %s67
    %s87 = sphi 0, %s89
    %s90 = sphi 0, %s87
    %s91 = sphi 0, %s90
    %s107 = sphi 0, %s91
  $region4: #{amb_hand_forward.8} parent=0 // loop_header_branch
    %12 = sbr.rel (%p10) target = $region8
  $region5: #{amb_hand_forward.8} parent=0 // loop_body
    %s14 = ssub.s32 %s9, 1
    %s15 = ssub.s32 %s9, 2
    %s16 = sadd.s32 %s9, 1
    %s17 = ssub.s32 %s9, %s16
    %p18 = scmp.eq.s32.totalorder %s17, 0
    %s20 = sadd.s32 %s19, 1
    %s21 = scalar_select %p18, %s19, %s20
    %p24 = pneg %p18
    %p25 = scmp.eq.s32.totalorder %s9, 1
    %p26 = por %p24, %p25
    %p27 = scmp.ne.s32.totalorder %s19, %s22
    %p28 = scmp.eq.s32.totalorder %s9, 0
    %p29 = por %p27, %p28
    %p30 = scmp.ne.s32.totalorder %s19, %s22
    %p31 = scmp.eq.s32.totalorder %s14, 1
    %p32 = por %p30, %p31
    %p33 = scmp.ne.s32.totalorder %s22, %s23
    %p34 = scmp.eq.s32.totalorder %s14, 0
    %p35 = por %p33, %p34
    %p36 = scmp.ne.s32.totalorder %s22, %s23
    %p37 = scmp.eq.s32.totalorder %s15, 1
    %p38 = por %p36, %p37
    %p40 = scmp.ne.s32.totalorder %s23, %s39
    %p41 = scmp.eq.s32.totalorder %s15, 0
    %p42 = por %p40, %p41
    %s44 = sadd.s32 %s43, 1
    %p47 = scmp.eq.s32.totalorder %s9, 1
    %p48 = scmp.ne.s32.totalorder %s43, %s45
    %p49 = scmp.eq.s32.totalorder %s9, 0
    %p50 = por %p48, %p49
    %p51 = scmp.ne.s32.totalorder %s43, %s45
    %p52 = scmp.eq.s32.totalorder %s14, 1
    %p53 = por %p51, %p52
    %p54 = scmp.ne.s32.totalorder %s45, %s46
    %p55 = scmp.eq.s32.totalorder %s14, 0
    %p56 = por %p54, %p55
    %p57 = scmp.ne.s32.totalorder %s45, %s46
    %p58 = scmp.eq.s32.totalorder %s15, 1
    %p59 = por %p57, %p58
    %p61 = scmp.ne.s32.totalorder %s46, %s60
    %p62 = scmp.eq.s32.totalorder %s15, 0
    %p63 = por %p61, %p62
    %s65 = sadd.s32 %s64, 1
    %p68 = scmp.eq.s32.totalorder %s9, 1
    %p69 = scmp.ne.s32.totalorder %s64, %s66
    %p70 = scmp.eq.s32.totalorder %s9, 0
    %p71 = por %p69, %p70
    %p72 = scmp.ne.s32.totalorder %s64, %s66
    %p73 = scmp.eq.s32.totalorder %s14, 1
    %p74 = por %p72, %p73
    %p75 = scmp.ne.s32.totalorder %s66, %s67
    %p76 = scmp.eq.s32.totalorder %s14, 0
    %p77 = por %p75, %p76
    %p78 = scmp.ne.s32.totalorder %s66, %s67
    %p79 = scmp.eq.s32.totalorder %s15, 1
    %p80 = por %p78, %p79
    %p82 = scmp.ne.s32.totalorder %s67, %s81
    %p83 = scmp.eq.s32.totalorder %s15, 0
    %p84 = por %p82, %p83
    %s85 = ssub.s32 %s9, %s16
    %p86 = scmp.eq.s32.totalorder %s85, 0
    %s88 = sadd.s32 %s87, 1
    %s89 = scalar_select %p86, %s87, %s88
    %p92 = pneg %p86
    %p93 = scmp.eq.s32.totalorder %s9, 1
    %p94 = por %p92, %p93
    %p95 = scmp.ne.s32.totalorder %s87, %s90
    %p96 = scmp.eq.s32.totalorder %s9, 0
    %p97 = por %p95, %p96
    %p98 = scmp.ne.s32.totalorder %s87, %s90
    %p99 = scmp.eq.s32.totalorder %s14, 1
    %p100 = por %p98, %p99
    %p101 = scmp.ne.s32.totalorder %s90, %s91
    %p102 = scmp.eq.s32.totalorder %s14, 0
    %p103 = por %p101, %p102
    %p104 = scmp.ne.s32.totalorder %s90, %s91
    %p105 = scmp.eq.s32.totalorder %s15, 1
    %p106 = por %p104, %p105
    %p108 = scmp.ne.s32.totalorder %s91, %s107
    %p109 = scmp.eq.s32.totalorder %s15, 0
    %p110 = por %p108, %p109
    %p111 = scmp.le.s32.totalorder 1, %s9
    %p112 = scmp.lt.s32.totalorder %s9, 3
    %p113 = pnand %p111, %p112
    %p114 = pneg %p113
    // Predicated region
    $region9: #{amb_hand_forward.8} parent=5 // pred_check
      _
    $region10: #{amb_hand_forward.8} parent=5 // pred_check_branch
      %116 = sbr.rel (%p113) target = $region12
    $region11: #{amb_hand_forward.8} parent=5 // pred_region
      %s117 = ssub.s32 %s9, 1
      // Predicated region
      $region13: #{amb_hand_forward.8} parent=11 // pred_check
        %p118 = pneg %p56
      $region14: #{amb_hand_forward.8} parent=11 // pred_check_branch
        %120 = sbr.rel (%p118) target = $region16
      $region15: #{amb_hand_forward.8} parent=11 // pred_region
        _
      $region16: #{amb_hand_forward.8} parent=11 // pred_fallthru
        _
      // Predicated region
      $region17: #{amb_hand_forward.8} parent=11 // pred_check
        %p121 = pneg %p77
      $region18: #{amb_hand_forward.8} parent=11 // pred_check_branch
        %123 = sbr.rel (%p121) target = $region20
      $region19: #{amb_hand_forward.8} parent=11 // pred_region
        _
      $region20: #{amb_hand_forward.8} parent=11 // pred_fallthru
        _
    $region12: #{amb_hand_forward.8} parent=5 // pred_fallthru
      _
    %p124 = scmp.lt.s32.totalorder %s9, 2
    // Predicated region
    $region21: #{amb_hand_forward.8} parent=5 // pred_check
      %p125 = pneg %p124
    $region22: #{amb_hand_forward.8} parent=5 // pred_check_branch
      %127 = sbr.rel (%p125) target = $region24
    $region23: #{amb_hand_forward.8} parent=5 // pred_region
      // Predicated region
      $region25: #{amb_hand_forward.8} parent=23 // pred_check
        %p128 = pneg %p29
      $region26: #{amb_hand_forward.8} parent=23 // pred_check_branch
        %130 = sbr.rel (%p128) target = $region28
      $region27: #{amb_hand_forward.8} parent=23 // pred_region
        %s131 = smul.u32 32, %s9
        %p132 = scmp.lt.s32.totalorder %s131, 63
        %s133 = scalar_select %p132, %s131, 63
        %s134 = smul.addr %s133, 8
        %s135 = scalar_lea.vmem %s0, %s134
        %s136 = smul.u32 32, %s9
      $region28: #{amb_hand_forward.8} parent=23 // pred_fallthru
        _
    $region24: #{amb_hand_forward.8} parent=5 // pred_fallthru
      _
    %p137 = scmp.le.s32.totalorder 1, %s9
    %p138 = scmp.lt.s32.totalorder %s9, 3
    %p139 = pnand %p137, %p138
    %p140 = pneg %p139
    // Predicated region
    $region29: #{amb_hand_forward.8} parent=5 // pred_check
      _
    $region30: #{amb_hand_forward.8} parent=5 // pred_check_branch
      %142 = sbr.rel (%p139) target = $region32
    $region31: #{amb_hand_forward.8} parent=5 // pred_region
      %s143 = ssub.s32 %s9, 1
      %s144 = smul.u32 32, %s14
      %p145 = scmp.lt.s32.totalorder %s144, 63
      %s146 = scalar_select %p145, %s144, 63
      %s147 = smul.addr %s146, 8
      %s148 = scalar_lea.vmem %s0, %s147
      %p149 = pneg %p35
      %p150 = pneg %p32
      %p151 = pneg %p56
      %p152 = pneg %p53
      %p153 = pneg %p77
      %p154 = pneg %p74
      %p155 = pneg %p103
      %p156 = pneg %p100
      %s157 = smul.u32 32, %s14
      %p158 = scmp.lt.s32.totalorder %s157, 63
      %s159 = scalar_select %p158, %s157, 63
      %s160 = smul.addr %s159, 4
      %s161 = scalar_lea.vmem %s3, %s160
      %s162 = smul.u32 32, %s14
      %p163 = scmp.lt.s32.totalorder %s162, 63
      %s164 = scalar_select %p163, %s162, 63
      %s165 = smul.addr %s164, 8
      %s166 = scalar_lea.vmem %s0, %s165
      %s167 = smul.u32 32, %s14
      %s168 = smul.u32 32, %s14
      %p169 = scmp.lt.s32.totalorder %s168, 63
      %s170 = scalar_select %p169, %s168, 63
      %s171 = smul.addr %s170, 4
      %s172 = scalar_lea.vmem %s3, %s171
      %s173 = smul.u32 32, %s14
      %v174 = vld [vmem:[%s166] sm:$0xff]
      %v175 = vld [vmem:[%s166 + $0x8] sm:$0xff]
      %v176 = vld [vmem:[%s166 + $0x10] sm:$0xff]
      %v177 = vld [vmem:[%s166 + $0x18] sm:$0xff]
      %v178 = vld [vmem:[%s166 + $0x20] sm:$0xff]
      %v179 = vld [vmem:[%s166 + $0x28] sm:$0xff]
      %v180 = vld [vmem:[%s166 + $0x30] sm:$0xff]
      %v181 = vld [vmem:[%s166 + $0x38] sm:$0xff]
      %v182 = vld [vmem:[%s166 + $0x40] sm:$0xff]
      %v183 = vld [vmem:[%s166 + $0x48] sm:$0xff]
      %v184 = vld [vmem:[%s166 + $0x50] sm:$0xff]
      %v185 = vld [vmem:[%s166 + $0x58] sm:$0xff]
      %v186 = vld [vmem:[%s166 + $0x60] sm:$0xff]
      %v187 = vld [vmem:[%s166 + $0x68] sm:$0xff]
      %v188 = vld [vmem:[%s166 + $0x70] sm:$0xff]
      %v189 = vld [vmem:[%s166 + $0x78] sm:$0xff]
      %v190 = vld [vmem:[%s166 + $0x80] sm:$0xff]
      %v191 = vld [vmem:[%s166 + $0x88] sm:$0xff]
      %v192 = vld [vmem:[%s166 + $0x90] sm:$0xff]
      %v193 = vld [vmem:[%s166 + $0x98] sm:$0xff]
      %v194 = vld [vmem:[%s166 + $0xa0] sm:$0xff]
      %v195 = vld [vmem:[%s166 + $0xa8] sm:$0xff]
      %v196 = vld [vmem:[%s166 + $0xb0] sm:$0xff]
      %v197 = vld [vmem:[%s166 + $0xb8] sm:$0xff]
      %v198 = vld [vmem:[%s166 + $0xc0] sm:$0xff]
      %v199 = vld [vmem:[%s166 + $0xc8] sm:$0xff]
      %v200 = vld [vmem:[%s166 + $0xd0] sm:$0xff]
      %v201 = vld [vmem:[%s166 + $0xd8] sm:$0xff]
      %v202 = vld [vmem:[%s166 + $0xe0] sm:$0xff]
      %v203 = vld [vmem:[%s166 + $0xe8] sm:$0xff]
      %v204 = vld [vmem:[%s166 + $0xf0] sm:$0xff]
      %v205 = vld [vmem:[%s166 + $0xf8] sm:$0xff]
      %v206 = vld [vmem:[%s1] sm:$0x7]
      %208 = vset.pattern.permute.xlu0 0
      %209 = vperm.xlu0 %208, %v174
      %v210 = vpop.permute.xlu0 %209
      %213 = vset.pattern.permute.xlu0 0
      %214 = vperm.xlu0 %213, %v175
      %v215 = vpop.permute.xlu0 %214
      %218 = vset.pattern.permute.xlu0 0
      %219 = vperm.xlu0 %218, %v176
      %v220 = vpop.permute.xlu0 %219
      %223 = vset.pattern.permute.xlu0 0
      %224 = vperm.xlu0 %223, %v177
      %v225 = vpop.permute.xlu0 %224
      %228 = vset.pattern.permute.xlu0 0
      %229 = vperm.xlu0 %228, %v178
      %v230 = vpop.permute.xlu0 %229
      %233 = vset.pattern.permute.xlu0 0
      %234 = vperm.xlu0 %233, %v179
      %v235 = vpop.permute.xlu0 %234
      %238 = vset.pattern.permute.xlu0 0
      %239 = vperm.xlu0 %238, %v180
      %v240 = vpop.permute.xlu0 %239
      %243 = vset.pattern.permute.xlu0 0
      %244 = vperm.xlu0 %243, %v181
      %v245 = vpop.permute.xlu0 %244
      %248 = vset.pattern.permute.xlu0 0
      %249 = vperm.xlu0 %248, %v182
      %v250 = vpop.permute.xlu0 %249
      %253 = vset.pattern.permute.xlu0 0
      %254 = vperm.xlu0 %253, %v183
      %v255 = vpop.permute.xlu0 %254
      %258 = vset.pattern.permute.xlu0 0
      %259 = vperm.xlu0 %258, %v184
      %v260 = vpop.permute.xlu0 %259
      %263 = vset.pattern.permute.xlu0 0
      %264 = vperm.xlu0 %263, %v185
      %v265 = vpop.permute.xlu0 %264
      %268 = vset.pattern.permute.xlu0 0
      %269 = vperm.xlu0 %268, %v186
      %v270 = vpop.permute.xlu0 %269
      %273 = vset.pattern.permute.xlu0 0
      %274 = vperm.xlu0 %273, %v187
      %v275 = vpop.permute.xlu0 %274
      %278 = vset.pattern.permute.xlu0 0
      %279 = vperm.xlu0 %278, %v188
      %v280 = vpop.permute.xlu0 %279
      %283 = vset.pattern.permute.xlu0 0
      %284 = vperm.xlu0 %283, %v189
      %v285 = vpop.permute.xlu0 %284
      %288 = vset.pattern.permute.xlu0 0
      %289 = vperm.xlu0 %288, %v190
      %v290 = vpop.permute.xlu0 %289
      %293 = vset.pattern.permute.xlu0 0
      %294 = vperm.xlu0 %293, %v191
      %v295 = vpop.permute.xlu0 %294
      %298 = vset.pattern.permute.xlu0 0
      %299 = vperm.xlu0 %298, %v192
      %v300 = vpop.permute.xlu0 %299
      %303 = vset.pattern.permute.xlu0 0
      %304 = vperm.xlu0 %303, %v193
      %v305 = vpop.permute.xlu0 %304
      %308 = vset.pattern.permute.xlu0 0
      %309 = vperm.xlu0 %308, %v194
      %v310 = vpop.permute.xlu0 %309
      %313 = vset.pattern.permute.xlu0 0
      %314 = vperm.xlu0 %313, %v195
      %v315 = vpop.permute.xlu0 %314
      %318 = vset.pattern.permute.xlu0 0
      %319 = vperm.xlu0 %318, %v196
      %v320 = vpop.permute.xlu0 %319
      %323 = vset.pattern.permute.xlu0 0
      %324 = vperm.xlu0 %323, %v197
      %v325 = vpop.permute.xlu0 %324
      %328 = vset.pattern.permute.xlu0 0
      %329 = vperm.xlu0 %328, %v198
      %v330 = vpop.permute.xlu0 %329
      %333 = vset.pattern.permute.xlu0 0
      %334 = vperm.xlu0 %333, %v199
      %v335 = vpop.permute.xlu0 %334
      %338 = vset.pattern.permute.xlu0 0
      %339 = vperm.xlu0 %338, %v200
      %v340 = vpop.permute.xlu0 %339
      %343 = vset.pattern.permute.xlu0 0
      %344 = vperm.xlu0 %343, %v201
      %v345 = vpop.permute.xlu0 %344
      %348 = vset.pattern.permute.xlu0 0
      %349 = vperm.xlu0 %348, %v202
      %v350 = vpop.permute.xlu0 %349
      %353 = vset.pattern.permute.xlu0 0
      %354 = vperm.xlu0 %353, %v203
      %v355 = vpop.permute.xlu0 %354
      %358 = vset.pattern.permute.xlu0 0
      %359 = vperm.xlu0 %358, %v204
      %v360 = vpop.permute.xlu0 %359
      %363 = vset.pattern.permute.xlu0 0
      %364 = vperm.xlu0 %363, %v205
      %v365 = vpop.permute.xlu0 %364
      %v367 = vlaneseq
      %v368 = vshrl.u32 %v367, 7
      %v369 = vsub.s32 0, %v368
      %v370 = vrot.slane %v206, %v369
      %v371 = vmul.f32 %v210, %v370
      %v372 = vmul.f32 %v215, %v370
      %v373 = vmul.f32 %v220, %v370
      %v374 = vmul.f32 %v225, %v370
      %v375 = vmul.f32 %v230, %v370
      %v376 = vmul.f32 %v235, %v370
      %v377 = vmul.f32 %v240, %v370
      %v378 = vmul.f32 %v245, %v370
      %v379 = vmul.f32 %v250, %v370
      %v380 = vmul.f32 %v255, %v370
      %v381 = vmul.f32 %v260, %v370
      %v382 = vmul.f32 %v265, %v370
      %v383 = vmul.f32 %v270, %v370
      %v384 = vmul.f32 %v275, %v370
      %v385 = vmul.f32 %v280, %v370
      %v386 = vmul.f32 %v285, %v370
      %v387 = vmul.f32 %v290, %v370
      %v388 = vmul.f32 %v295, %v370
      %v389 = vmul.f32 %v300, %v370
      %v390 = vmul.f32 %v305, %v370
      %v391 = vmul.f32 %v310, %v370
      %v392 = vmul.f32 %v315, %v370
      %v393 = vmul.f32 %v320, %v370
      %v394 = vmul.f32 %v325, %v370
      %v395 = vmul.f32 %v330, %v370
      %v396 = vmul.f32 %v335, %v370
      %v397 = vmul.f32 %v340, %v370
      %v398 = vmul.f32 %v345, %v370
      %v399 = vmul.f32 %v350, %v370
      %v400 = vmul.f32 %v355, %v370
      %v401 = vmul.f32 %v360, %v370
      %v402 = vmul.f32 %v365, %v370
      %403 = vset.pattern.permute.xlu0 1
      %404 = vperm.xlu0 %403, %v174
      %v405 = vpop.permute.xlu0 %404
      %407 = vset.pattern.permute.xlu0 1
      %408 = vperm.xlu0 %407, %v175
      %v409 = vpop.permute.xlu0 %408
      %411 = vset.pattern.permute.xlu0 1
      %412 = vperm.xlu0 %411, %v176
      %v413 = vpop.permute.xlu0 %412
      %415 = vset.pattern.permute.xlu0 1
      %416 = vperm.xlu0 %415, %v177
      %v417 = vpop.permute.xlu0 %416
      %419 = vset.pattern.permute.xlu0 1
      %420 = vperm.xlu0 %419, %v178
      %v421 = vpop.permute.xlu0 %420
      %423 = vset.pattern.permute.xlu0 1
      %424 = vperm.xlu0 %423, %v179
      %v425 = vpop.permute.xlu0 %424
      %427 = vset.pattern.permute.xlu0 1
      %428 = vperm.xlu0 %427, %v180
      %v429 = vpop.permute.xlu0 %428
      %431 = vset.pattern.permute.xlu0 1
      %432 = vperm.xlu0 %431, %v181
      %v433 = vpop.permute.xlu0 %432
      %435 = vset.pattern.permute.xlu0 1
      %436 = vperm.xlu0 %435, %v182
      %v437 = vpop.permute.xlu0 %436
      %439 = vset.pattern.permute.xlu0 1
      %440 = vperm.xlu0 %439, %v183
      %v441 = vpop.permute.xlu0 %440
      %443 = vset.pattern.permute.xlu0 1
      %444 = vperm.xlu0 %443, %v184
      %v445 = vpop.permute.xlu0 %444
      %447 = vset.pattern.permute.xlu0 1
      %448 = vperm.xlu0 %447, %v185
      %v449 = vpop.permute.xlu0 %448
      %451 = vset.pattern.permute.xlu0 1
      %452 = vperm.xlu0 %451, %v186
      %v453 = vpop.permute.xlu0 %452
      %455 = vset.pattern.permute.xlu0 1
      %456 = vperm.xlu0 %455, %v187
      %v457 = vpop.permute.xlu0 %456
      %459 = vset.pattern.permute.xlu0 1
      %460 = vperm.xlu0 %459, %v188
      %v461 = vpop.permute.xlu0 %460
      %463 = vset.pattern.permute.xlu0 1
      %464 = vperm.xlu0 %463, %v189
      %v465 = vpop.permute.xlu0 %464
      %467 = vset.pattern.permute.xlu0 1
      %468 = vperm.xlu0 %467, %v190
      %v469 = vpop.permute.xlu0 %468
      %471 = vset.pattern.permute.xlu0 1
      %472 = vperm.xlu0 %471, %v191
      %v473 = vpop.permute.xlu0 %472
      %475 = vset.pattern.permute.xlu0 1
      %476 = vperm.xlu0 %475, %v192
      %v477 = vpop.permute.xlu0 %476
      %479 = vset.pattern.permute.xlu0 1
      %480 = vperm.xlu0 %479, %v193
      %v481 = vpop.permute.xlu0 %480
      %483 = vset.pattern.permute.xlu0 1
      %484 = vperm.xlu0 %483, %v194
      %v485 = vpop.permute.xlu0 %484
      %487 = vset.pattern.permute.xlu0 1
      %488 = vperm.xlu0 %487, %v195
      %v489 = vpop.permute.xlu0 %488
      %491 = vset.pattern.permute.xlu0 1
      %492 = vperm.xlu0 %491, %v196
      %v493 = vpop.permute.xlu0 %492
      %495 = vset.pattern.permute.xlu0 1
      %496 = vperm.xlu0 %495, %v197
      %v497 = vpop.permute.xlu0 %496
      %499 = vset.pattern.permute.xlu0 1
      %500 = vperm.xlu0 %499, %v198
      %v501 = vpop.permute.xlu0 %500
      %503 = vset.pattern.permute.xlu0 1
      %504 = vperm.xlu0 %503, %v199
      %v505 = vpop.permute.xlu0 %504
      %507 = vset.pattern.permute.xlu0 1
      %508 = vperm.xlu0 %507, %v200
      %v509 = vpop.permute.xlu0 %508
      %511 = vset.pattern.permute.xlu0 1
      %512 = vperm.xlu0 %511, %v201
      %v513 = vpop.permute.xlu0 %512
      %515 = vset.pattern.permute.xlu0 1
      %516 = vperm.xlu0 %515, %v202
      %v517 = vpop.permute.xlu0 %516
      %519 = vset.pattern.permute.xlu0 1
      %520 = vperm.xlu0 %519, %v203
      %v521 = vpop.permute.xlu0 %520
      %523 = vset.pattern.permute.xlu0 1
      %524 = vperm.xlu0 %523, %v204
      %v525 = vpop.permute.xlu0 %524
      %527 = vset.pattern.permute.xlu0 1
      %528 = vperm.xlu0 %527, %v205
      %v529 = vpop.permute.xlu0 %528
      %v531 = vlaneseq
      %v532 = vshrl.u32 %v531, 7
      %v533 = vsub.s32 1, %v532
      %v534 = vrot.slane %v206, %v533
      %v535 = vmul.f32 %v405, %v534
      %v536 = vmul.f32 %v409, %v534
      %v537 = vmul.f32 %v413, %v534
      %v538 = vmul.f32 %v417, %v534
      %v539 = vmul.f32 %v421, %v534
      %v540 = vmul.f32 %v425, %v534
      %v541 = vmul.f32 %v429, %v534
      %v542 = vmul.f32 %v433, %v534
      %v543 = vmul.f32 %v437, %v534
      %v544 = vmul.f32 %v441, %v534
      %v545 = vmul.f32 %v445, %v534
      %v546 = vmul.f32 %v449, %v534
      %v547 = vmul.f32 %v453, %v534
      %v548 = vmul.f32 %v457, %v534
      %v549 = vmul.f32 %v461, %v534
      %v550 = vmul.f32 %v465, %v534
      %v551 = vmul.f32 %v469, %v534
      %v552 = vmul.f32 %v473, %v534
      %v553 = vmul.f32 %v477, %v534
      %v554 = vmul.f32 %v481, %v534
      %v555 = vmul.f32 %v485, %v534
      %v556 = vmul.f32 %v489, %v534
      %v557 = vmul.f32 %v493, %v534
      %v558 = vmul.f32 %v497, %v534
      %v559 = vmul.f32 %v501, %v534
      %v560 = vmul.f32 %v505, %v534
      %v561 = vmul.f32 %v509, %v534
      %v562 = vmul.f32 %v513, %v534
      %v563 = vmul.f32 %v517, %v534
      %v564 = vmul.f32 %v521, %v534
      %v565 = vmul.f32 %v525, %v534
      %v566 = vmul.f32 %v529, %v534
      %v567 = vadd.f32 %v371, %v535
      %v568 = vadd.f32 %v372, %v536
      %v569 = vadd.f32 %v373, %v537
      %v570 = vadd.f32 %v374, %v538
      %v571 = vadd.f32 %v375, %v539
      %v572 = vadd.f32 %v376, %v540
      %v573 = vadd.f32 %v377, %v541
      %v574 = vadd.f32 %v378, %v542
      %v575 = vadd.f32 %v379, %v543
      %v576 = vadd.f32 %v380, %v544
      %v577 = vadd.f32 %v381, %v545
      %v578 = vadd.f32 %v382, %v546
      %v579 = vadd.f32 %v383, %v547
      %v580 = vadd.f32 %v384, %v548
      %v581 = vadd.f32 %v385, %v549
      %v582 = vadd.f32 %v386, %v550
      %v583 = vadd.f32 %v387, %v551
      %v584 = vadd.f32 %v388, %v552
      %v585 = vadd.f32 %v389, %v553
      %v586 = vadd.f32 %v390, %v554
      %v587 = vadd.f32 %v391, %v555
      %v588 = vadd.f32 %v392, %v556
      %v589 = vadd.f32 %v393, %v557
      %v590 = vadd.f32 %v394, %v558
      %v591 = vadd.f32 %v395, %v559
      %v592 = vadd.f32 %v396, %v560
      %v593 = vadd.f32 %v397, %v561
      %v594 = vadd.f32 %v398, %v562
      %v595 = vadd.f32 %v399, %v563
      %v596 = vadd.f32 %v400, %v564
      %v597 = vadd.f32 %v401, %v565
      %v598 = vadd.f32 %v402, %v566
      %599 = vset.pattern.permute.xlu0 2
      %600 = vperm.xlu0 %599, %v174
      %v601 = vpop.permute.xlu0 %600
      %603 = vset.pattern.permute.xlu0 2
      %604 = vperm.xlu0 %603, %v175
      %v605 = vpop.permute.xlu0 %604
      %607 = vset.pattern.permute.xlu0 2
      %608 = vperm.xlu0 %607, %v176
      %v609 = vpop.permute.xlu0 %608
      %611 = vset.pattern.permute.xlu0 2
      %612 = vperm.xlu0 %611, %v177
      %v613 = vpop.permute.xlu0 %612
      %615 = vset.pattern.permute.xlu0 2
      %616 = vperm.xlu0 %615, %v178
      %v617 = vpop.permute.xlu0 %616
      %619 = vset.pattern.permute.xlu0 2
      %620 = vperm.xlu0 %619, %v179
      %v621 = vpop.permute.xlu0 %620
      %623 = vset.pattern.permute.xlu0 2
      %624 = vperm.xlu0 %623, %v180
      %v625 = vpop.permute.xlu0 %624
      %627 = vset.pattern.permute.xlu0 2
      %628 = vperm.xlu0 %627, %v181
      %v629 = vpop.permute.xlu0 %628
      %631 = vset.pattern.permute.xlu0 2
      %632 = vperm.xlu0 %631, %v182
      %v633 = vpop.permute.xlu0 %632
      %635 = vset.pattern.permute.xlu0 2
      %636 = vperm.xlu0 %635, %v183
      %v637 = vpop.permute.xlu0 %636
      %639 = vset.pattern.permute.xlu0 2
      %640 = vperm.xlu0 %639, %v184
      %v641 = vpop.permute.xlu0 %640
      %643 = vset.pattern.permute.xlu0 2
      %644 = vperm.xlu0 %643, %v185
      %v645 = vpop.permute.xlu0 %644
      %647 = vset.pattern.permute.xlu0 2
      %648 = vperm.xlu0 %647, %v186
      %v649 = vpop.permute.xlu0 %648
      %651 = vset.pattern.permute.xlu0 2
      %652 = vperm.xlu0 %651, %v187
      %v653 = vpop.permute.xlu0 %652
      %655 = vset.pattern.permute.xlu0 2
      %656 = vperm.xlu0 %655, %v188
      %v657 = vpop.permute.xlu0 %656
      %659 = vset.pattern.permute.xlu0 2
      %660 = vperm.xlu0 %659, %v189
      %v661 = vpop.permute.xlu0 %660
      %663 = vset.pattern.permute.xlu0 2
      %664 = vperm.xlu0 %663, %v190
      %v665 = vpop.permute.xlu0 %664
      %667 = vset.pattern.permute.xlu0 2
      %668 = vperm.xlu0 %667, %v191
      %v669 = vpop.permute.xlu0 %668
      %671 = vset.pattern.permute.xlu0 2
      %672 = vperm.xlu0 %671, %v192
      %v673 = vpop.permute.xlu0 %672
      %675 = vset.pattern.permute.xlu0 2
      %676 = vperm.xlu0 %675, %v193
      %v677 = vpop.permute.xlu0 %676
      %679 = vset.pattern.permute.xlu0 2
      %680 = vperm.xlu0 %679, %v194
      %v681 = vpop.permute.xlu0 %680
      %683 = vset.pattern.permute.xlu0 2
      %684 = vperm.xlu0 %683, %v195
      %v685 = vpop.permute.xlu0 %684
      %687 = vset.pattern.permute.xlu0 2
      %688 = vperm.xlu0 %687, %v196
      %v689 = vpop.permute.xlu0 %688
      %691 = vset.pattern.permute.xlu0 2
      %692 = vperm.xlu0 %691, %v197
      %v693 = vpop.permute.xlu0 %692
      %695 = vset.pattern.permute.xlu0 2
      %696 = vperm.xlu0 %695, %v198
      %v697 = vpop.permute.xlu0 %696
      %699 = vset.pattern.permute.xlu0 2
      %700 = vperm.xlu0 %699, %v199
      %v701 = vpop.permute.xlu0 %700
      %703 = vset.pattern.permute.xlu0 2
      %704 = vperm.xlu0 %703, %v200
      %v705 = vpop.permute.xlu0 %704
      %707 = vset.pattern.permute.xlu0 2
      %708 = vperm.xlu0 %707, %v201
      %v709 = vpop.permute.xlu0 %708
      %711 = vset.pattern.permute.xlu0 2
      %712 = vperm.xlu0 %711, %v202
      %v713 = vpop.permute.xlu0 %712
      %715 = vset.pattern.permute.xlu0 2
      %716 = vperm.xlu0 %715, %v203
      %v717 = vpop.permute.xlu0 %716
      %719 = vset.pattern.permute.xlu0 2
      %720 = vperm.xlu0 %719, %v204
      %v721 = vpop.permute.xlu0 %720
      %723 = vset.pattern.permute.xlu0 2
      %724 = vperm.xlu0 %723, %v205
      %v725 = vpop.permute.xlu0 %724
      %v727 = vlaneseq
      %v728 = vshrl.u32 %v727, 7
      %v729 = vsub.s32 2, %v728
      %v730 = vrot.slane %v206, %v729
      %v731 = vmul.f32 %v601, %v730
      %v732 = vmul.f32 %v605, %v730
      %v733 = vmul.f32 %v609, %v730
      %v734 = vmul.f32 %v613, %v730
      %v735 = vmul.f32 %v617, %v730
      %v736 = vmul.f32 %v621, %v730
      %v737 = vmul.f32 %v625, %v730
      %v738 = vmul.f32 %v629, %v730
      %v739 = vmul.f32 %v633, %v730
      %v740 = vmul.f32 %v637, %v730
      %v741 = vmul.f32 %v641, %v730
      %v742 = vmul.f32 %v645, %v730
      %v743 = vmul.f32 %v649, %v730
      %v744 = vmul.f32 %v653, %v730
      %v745 = vmul.f32 %v657, %v730
      %v746 = vmul.f32 %v661, %v730
      %v747 = vmul.f32 %v665, %v730
      %v748 = vmul.f32 %v669, %v730
      %v749 = vmul.f32 %v673, %v730
      %v750 = vmul.f32 %v677, %v730
      %v751 = vmul.f32 %v681, %v730
      %v752 = vmul.f32 %v685, %v730
      %v753 = vmul.f32 %v689, %v730
      %v754 = vmul.f32 %v693, %v730
      %v755 = vmul.f32 %v697, %v730
      %v756 = vmul.f32 %v701, %v730
      %v757 = vmul.f32 %v705, %v730
      %v758 = vmul.f32 %v709, %v730
      %v759 = vmul.f32 %v713, %v730
      %v760 = vmul.f32 %v717, %v730
      %v761 = vmul.f32 %v721, %v730
      %v762 = vmul.f32 %v725, %v730
      %v763 = vadd.f32 %v567, %v731
      %v764 = vadd.f32 %v568, %v732
      %v765 = vadd.f32 %v569, %v733
      %v766 = vadd.f32 %v570, %v734
      %v767 = vadd.f32 %v571, %v735
      %v768 = vadd.f32 %v572, %v736
      %v769 = vadd.f32 %v573, %v737
      %v770 = vadd.f32 %v574, %v738
      %v771 = vadd.f32 %v575, %v739
      %v772 = vadd.f32 %v576, %v740
      %v773 = vadd.f32 %v577, %v741
      %v774 = vadd.f32 %v578, %v742
      %v775 = vadd.f32 %v579, %v743
      %v776 = vadd.f32 %v580, %v744
      %v777 = vadd.f32 %v581, %v745
      %v778 = vadd.f32 %v582, %v746
      %v779 = vadd.f32 %v583, %v747
      %v780 = vadd.f32 %v584, %v748
      %v781 = vadd.f32 %v585, %v749
      %v782 = vadd.f32 %v586, %v750
      %v783 = vadd.f32 %v587, %v751
      %v784 = vadd.f32 %v588, %v752
      %v785 = vadd.f32 %v589, %v753
      %v786 = vadd.f32 %v590, %v754
      %v787 = vadd.f32 %v591, %v755
      %v788 = vadd.f32 %v592, %v756
      %v789 = vadd.f32 %v593, %v757
      %v790 = vadd.f32 %v594, %v758
      %v791 = vadd.f32 %v595, %v759
      %v792 = vadd.f32 %v596, %v760
      %v793 = vadd.f32 %v597, %v761
      %v794 = vadd.f32 %v598, %v762
      %v795 = vld [vmem:[%s2] sm:$0x1]
      %v797 = vlaneseq
      %v798 = vshrl.u32 %v797, 7
      %v799 = vsub.s32 0, %v798
      %v800 = vrot.slane %v795, %v799
      %v802 = vadd.f32 %v763, %v800
      %v803 = vadd.f32 %v764, %v800
      %v804 = vadd.f32 %v765, %v800
      %v805 = vadd.f32 %v766, %v800
      %v806 = vadd.f32 %v767, %v800
      %v807 = vadd.f32 %v768, %v800
      %v808 = vadd.f32 %v769, %v800
      %v809 = vadd.f32 %v770, %v800
      %v810 = vadd.f32 %v771, %v800
      %v811 = vadd.f32 %v772, %v800
      %v812 = vadd.f32 %v773, %v800
      %v813 = vadd.f32 %v774, %v800
      %v814 = vadd.f32 %v775, %v800
      %v815 = vadd.f32 %v776, %v800
      %v816 = vadd.f32 %v777, %v800
      %v817 = vadd.f32 %v778, %v800
      %v818 = vadd.f32 %v779, %v800
      %v819 = vadd.f32 %v780, %v800
      %v820 = vadd.f32 %v781, %v800
      %v821 = vadd.f32 %v782, %v800
      %v822 = vadd.f32 %v783, %v800
      %v823 = vadd.f32 %v784, %v800
      %v824 = vadd.f32 %v785, %v800
      %v825 = vadd.f32 %v786, %v800
      %v826 = vadd.f32 %v787, %v800
      %v827 = vadd.f32 %v788, %v800
      %v828 = vadd.f32 %v789, %v800
      %v829 = vadd.f32 %v790, %v800
      %v830 = vadd.f32 %v791, %v800
      %v831 = vadd.f32 %v792, %v800
      %v832 = vadd.f32 %v793, %v800
      %v833 = vadd.f32 %v794, %v800
      %v834 = vmax.f32 %v802, 0.0
      %v835 = vmax.f32 %v803, 0.0
      %v836 = vmax.f32 %v804, 0.0
      %v837 = vmax.f32 %v805, 0.0
      %v838 = vmax.f32 %v806, 0.0
      %v839 = vmax.f32 %v807, 0.0
      %v840 = vmax.f32 %v808, 0.0
      %v841 = vmax.f32 %v809, 0.0
      %v842 = vmax.f32 %v810, 0.0
      %v843 = vmax.f32 %v811, 0.0
      %v844 = vmax.f32 %v812, 0.0
      %v845 = vmax.f32 %v813, 0.0
      %v846 = vmax.f32 %v814, 0.0
      %v847 = vmax.f32 %v815, 0.0
      %v848 = vmax.f32 %v816, 0.0
      %v849 = vmax.f32 %v817, 0.0
      %v850 = vmax.f32 %v818, 0.0
      %v851 = vmax.f32 %v819, 0.0
      %v852 = vmax.f32 %v820, 0.0
      %v853 = vmax.f32 %v821, 0.0
      %v854 = vmax.f32 %v822, 0.0
      %v855 = vmax.f32 %v823, 0.0
      %v856 = vmax.f32 %v824, 0.0
      %v857 = vmax.f32 %v825, 0.0
      %v858 = vmax.f32 %v826, 0.0
      %v859 = vmax.f32 %v827, 0.0
      %v860 = vmax.f32 %v828, 0.0
      %v861 = vmax.f32 %v829, 0.0
      %v862 = vmax.f32 %v830, 0.0
      %v863 = vmax.f32 %v831, 0.0
      %v864 = vmax.f32 %v832, 0.0
      %v865 = vmax.f32 %v833, 0.0
      %v866 = vpack.c.bf16 %v835, %v834
      %v867 = vpack.c.bf16 %v837, %v836
      %v868 = vpack.c.bf16 %v839, %v838
      %v869 = vpack.c.bf16 %v841, %v840
      %v870 = vpack.c.bf16 %v843, %v842
      %v871 = vpack.c.bf16 %v845, %v844
      %v872 = vpack.c.bf16 %v847, %v846
      %v873 = vpack.c.bf16 %v849, %v848
      %v874 = vpack.c.bf16 %v851, %v850
      %v875 = vpack.c.bf16 %v853, %v852
      %v876 = vpack.c.bf16 %v855, %v854
      %v877 = vpack.c.bf16 %v857, %v856
      %v878 = vpack.c.bf16 %v859, %v858
      %v879 = vpack.c.bf16 %v861, %v860
      %v880 = vpack.c.bf16 %v863, %v862
      %v881 = vpack.c.bf16 %v865, %v864
      %v898 = vunpack.c.l.b16 %v866
      %v899 = vunpack.c.h.b16 %v866
      %v900 = vunpack.c.l.b16 %v867
      %v901 = vunpack.c.h.b16 %v867
      %v902 = vunpack.c.l.b16 %v868
      %v903 = vunpack.c.h.b16 %v868
      %v904 = vunpack.c.l.b16 %v869
      %v905 = vunpack.c.h.b16 %v869
      %v906 = vunpack.c.l.b16 %v870
      %v907 = vunpack.c.h.b16 %v870
      %v908 = vunpack.c.l.b16 %v871
      %v909 = vunpack.c.h.b16 %v871
      %v910 = vunpack.c.l.b16 %v872
      %v911 = vunpack.c.h.b16 %v872
      %v912 = vunpack.c.l.b16 %v873
      %v913 = vunpack.c.h.b16 %v873
      %v914 = vunpack.c.l.b16 %v874
      %v915 = vunpack.c.h.b16 %v874
      %v916 = vunpack.c.l.b16 %v875
      %v917 = vunpack.c.h.b16 %v875
      %v918 = vunpack.c.l.b16 %v876
      %v919 = vunpack.c.h.b16 %v876
      %v920 = vunpack.c.l.b16 %v877
      %v921 = vunpack.c.h.b16 %v877
      %v922 = vunpack.c.l.b16 %v878
      %v923 = vunpack.c.h.b16 %v878
      %v924 = vunpack.c.l.b16 %v879
      %v925 = vunpack.c.h.b16 %v879
      %v926 = vunpack.c.l.b16 %v880
      %v927 = vunpack.c.h.b16 %v880
      %v928 = vunpack.c.l.b16 %v881
      %v929 = vunpack.c.h.b16 %v881
      %v930 = vpack.c.b16 %v898, %v898
      %v931 = vpack.c.b16 %v899, %v899
      %v932 = vpack.c.b16 %v900, %v900
      %v933 = vpack.c.b16 %v901, %v901
      %v934 = vpack.c.b16 %v902, %v902
      %v935 = vpack.c.b16 %v903, %v903
      %v936 = vpack.c.b16 %v904, %v904
      %v937 = vpack.c.b16 %v905, %v905
      %v938 = vpack.c.b16 %v906, %v906
      %v939 = vpack.c.b16 %v907, %v907
      %v940 = vpack.c.b16 %v908, %v908
      %v941 = vpack.c.b16 %v909, %v909
      %v942 = vpack.c.b16 %v910, %v910
      %v943 = vpack.c.b16 %v911, %v911
      %v944 = vpack.c.b16 %v912, %v912
      %v945 = vpack.c.b16 %v913, %v913
      %v946 = vpack.c.b16 %v914, %v914
      %v947 = vpack.c.b16 %v915, %v915
      %v948 = vpack.c.b16 %v916, %v916
      %v949 = vpack.c.b16 %v917, %v917
      %v950 = vpack.c.b16 %v918, %v918
      %v951 = vpack.c.b16 %v919, %v919
      %v952 = vpack.c.b16 %v920, %v920
      %v953 = vpack.c.b16 %v921, %v921
      %v954 = vpack.c.b16 %v922, %v922
      %v955 = vpack.c.b16 %v923, %v923
      %v956 = vpack.c.b16 %v924, %v924
      %v957 = vpack.c.b16 %v925, %v925
      %v958 = vpack.c.b16 %v926, %v926
      %v959 = vpack.c.b16 %v927, %v927
      %v960 = vpack.c.b16 %v928, %v928
      %v961 = vpack.c.b16 %v929, %v929
      %994 = vst [vmem:[%s172] sm:$0xf] %v930
      %995 = vst [vmem:[%s172 + $0x4] sm:$0xf] %v931
      %996 = vst [vmem:[%s172 + $0x8] sm:$0xf] %v932
      %997 = vst [vmem:[%s172 + $0xc] sm:$0xf] %v933
      %998 = vst [vmem:[%s172 + $0x10] sm:$0xf] %v934
      %999 = vst [vmem:[%s172 + $0x14] sm:$0xf] %v935
      %1000 = vst [vmem:[%s172 + $0x18] sm:$0xf] %v936
      %1001 = vst [vmem:[%s172 + $0x1c] sm:$0xf] %v937
      %1002 = vst [vmem:[%s172 + $0x20] sm:$0xf] %v938
      %1003 = vst [vmem:[%s172 + $0x24] sm:$0xf] %v939
      %1004 = vst [vmem:[%s172 + $0x28] sm:$0xf] %v940
      %1005 = vst [vmem:[%s172 + $0x2c] sm:$0xf] %v941
      %1006 = vst [vmem:[%s172 + $0x30] sm:$0xf] %v942
      %1007 = vst [vmem:[%s172 + $0x34] sm:$0xf] %v943
      %1008 = vst [vmem:[%s172 + $0x38] sm:$0xf] %v944
      %1009 = vst [vmem:[%s172 + $0x3c] sm:$0xf] %v945
      %1010 = vst [vmem:[%s172 + $0x40] sm:$0xf] %v946
      %1011 = vst [vmem:[%s172 + $0x44] sm:$0xf] %v947
      %1012 = vst [vmem:[%s172 + $0x48] sm:$0xf] %v948
      %1013 = vst [vmem:[%s172 + $0x4c] sm:$0xf] %v949
      %1014 = vst [vmem:[%s172 + $0x50] sm:$0xf] %v950
      %1015 = vst [vmem:[%s172 + $0x54] sm:$0xf] %v951
      %1016 = vst [vmem:[%s172 + $0x58] sm:$0xf] %v952
      %1017 = vst [vmem:[%s172 + $0x5c] sm:$0xf] %v953
      %1018 = vst [vmem:[%s172 + $0x60] sm:$0xf] %v954
      %1019 = vst [vmem:[%s172 + $0x64] sm:$0xf] %v955
      %1020 = vst [vmem:[%s172 + $0x68] sm:$0xf] %v956
      %1021 = vst [vmem:[%s172 + $0x6c] sm:$0xf] %v957
      %1022 = vst [vmem:[%s172 + $0x70] sm:$0xf] %v958
      %1023 = vst [vmem:[%s172 + $0x74] sm:$0xf] %v959
      %1024 = vst [vmem:[%s172 + $0x78] sm:$0xf] %v960
      %1025 = vst [vmem:[%s172 + $0x7c] sm:$0xf] %v961
      %s1026 = smul.u32 32, %s14
      %p1027 = scmp.lt.s32.totalorder %s1026, 63
      %s1028 = scalar_select %p1027, %s1026, 63
      %s1029 = smul.addr %s1028, 4
      %s1030 = scalar_lea.vmem %s3, %s1029
      // Predicated region
      $region33: #{amb_hand_forward.8} parent=31 // pred_check
        %p1031 = pneg %p100
      $region34: #{amb_hand_forward.8} parent=31 // pred_check_branch
        %1033 = sbr.rel (%p1031) target = $region36
      $region35: #{amb_hand_forward.8} parent=31 // pred_region
        %s1034 = smul.u32 32, %s14
      $region36: #{amb_hand_forward.8} parent=31 // pred_fallthru
        _
    $region32: #{amb_hand_forward.8} parent=5 // pred_fallthru
      _
    %p1035 = scmp.le.s32.totalorder 2, %s9
    // Predicated region
    $region37: #{amb_hand_forward.8} parent=5 // pred_check
      %p1036 = pneg %p1035
    $region38: #{amb_hand_forward.8} parent=5 // pred_check_branch
      %1038 = sbr.rel (%p1036) target = $region40
    $region39: #{amb_hand_forward.8} parent=5 // pred_region
      %s1039 = ssub.s32 %s9, 2
      // Predicated region
      $region41: #{amb_hand_forward.8} parent=39 // pred_check
        %p1040 = pneg %p106
      $region42: #{amb_hand_forward.8} parent=39 // pred_check_branch
        %1042 = sbr.rel (%p1040) target = $region44
      $region43: #{amb_hand_forward.8} parent=39 // pred_region
        %s1043 = smul.u32 32, %s15
        %p1044 = scmp.lt.s32.totalorder %s1043, 63
        %s1045 = scalar_select %p1044, %s1043, 63
        %s1046 = smul.addr %s1045, 4
        %s1047 = scalar_lea.vmem %s3, %s1046
      $region44: #{amb_hand_forward.8} parent=39 // pred_fallthru
        _
    $region40: #{amb_hand_forward.8} parent=5 // pred_fallthru
      _
  $region6: #{amb_hand_forward.8} parent=0 // loop_footer
    %s13 = sadd.s32 1, %s9
  $region7: #{amb_hand_forward.8} parent=0 // loop_footer_branch
    %8 = sbr.rel target = $region3
  $region8: #{amb_hand_forward.8} parent=0 // loop_exit
    _

// kernel: amb_hand_forward.12
$region0: #{amb_hand_forward.12}
  #allocation0 [shape = 'u32[]', space=smem, size = 0x4, offset = 0x4, fixed_abs, tag = 'smem constant byte address 0x4 - core index']
  #allocation1 [shape = 'u32[144,128]{1,0:T(1,128)}', space=vmem, size = 0x12000, scoped, tag = 'internal scratch']
  %s0 = inlined_call_operand.vmem [shape: bf16[512,32], index: 0, kind: input, shape index: {}]
  %s1 = inlined_call_operand.vmem [shape: bf16[32,128], index: 1, kind: input, shape index: {}]
  %s2 = inlined_call_operand.vmem [shape: f32[1,128], index: 2, kind: input, shape index: {}]
  %s3 = inlined_call_operand.vmem [shape: f32[512,128], index: 3, kind: output, shape index: {}]
  %s4 = sld [smem:[#allocation0]]
  $region45: #{amb_hand_forward.12} parent=0
    _
  %s6 = ssub.s32 1, %s4
  %s7 = scalar_select 0, %s6, %s4
  loop: start=0, step=1, limit=4
  $region2: #{amb_hand_forward.12} parent=0 // loop_pre_header
    _
  $region3: #{amb_hand_forward.12} parent=0 // loop_header
    %s9 = sphi 0, %s13
    %p10 = scmp.ge.s32.totalorder %s9, 4
    %s19 = sphi 0, %s21
    %s22 = sphi 0, %s19
    %s23 = sphi 0, %s22
    %s39 = sphi 0, %s23
    %s43 = sphi 0, %s43
    %s45 = sphi 0, %s43
    %s46 = sphi 0, %s45
    %s60 = sphi 0, %s46
    %s64 = sphi 0, %s64
    %s66 = sphi 0, %s64
    %s67 = sphi 0, %s66
    %s81 = sphi 0, %s67
    %s87 = sphi 0, %s89
    %s90 = sphi 0, %s87
    %s91 = sphi 0, %s90
    %s107 = sphi 0, %s91
  $region4: #{amb_hand_forward.12} parent=0 // loop_header_branch
    %12 = sbr.rel (%p10) target = $region8
  $region5: #{amb_hand_forward.12} parent=0 // loop_body
    %s14 = ssub.s32 %s9, 1
    %s15 = ssub.s32 %s9, 2
    %s16 = sadd.s32 %s9, 1
    %s17 = ssub.s32 %s9, %s16
    %p18 = scmp.eq.s32.totalorder %s17, 0
    %s20 = sadd.s32 %s19, 1
    %s21 = scalar_select %p18, %s19, %s20
    %p24 = pneg %p18
    %p25 = scmp.eq.s32.totalorder %s9, 1
    %p26 = por %p24, %p25
    %p27 = scmp.ne.s32.totalorder %s19, %s22
    %p28 = scmp.eq.s32.totalorder %s9, 0
    %p29 = por %p27, %p28
    %p30 = scmp.ne.s32.totalorder %s19, %s22
    %p31 = scmp.eq.s32.totalorder %s14, 1
    %p32 = por %p30, %p31
    %p33 = scmp.ne.s32.totalorder %s22, %s23
    %p34 = scmp.eq.s32.totalorder %s14, 0
    %p35 = por %p33, %p34
    %p36 = scmp.ne.s32.totalorder %s22, %s23
    %p37 = scmp.eq.s32.totalorder %s15, 1
    %p38 = por %p36, %p37
    %p40 = scmp.ne.s32.totalorder %s23, %s39
    %p41 = scmp.eq.s32.totalorder %s15, 0
    %p42 = por %p40, %p41
    %s44 = sadd.s32 %s43, 1
    %p47 = scmp.eq.s32.totalorder %s9, 1
    %p48 = scmp.ne.s32.totalorder %s43, %s45
    %p49 = scmp.eq.s32.totalorder %s9, 0
    %p50 = por %p48, %p49
    %p51 = scmp.ne.s32.totalorder %s43, %s45
    %p52 = scmp.eq.s32.totalorder %s14, 1
    %p53 = por %p51, %p52
    %p54 = scmp.ne.s32.totalorder %s45, %s46
    %p55 = scmp.eq.s32.totalorder %s14, 0
    %p56 = por %p54, %p55
    %p57 = scmp.ne.s32.totalorder %s45, %s46
    %p58 = scmp.eq.s32.totalorder %s15, 1
    %p59 = por %p57, %p58
    %p61 = scmp.ne.s32.totalorder %s46, %s60
    %p62 = scmp.eq.s32.totalorder %s15, 0
    %p63 = por %p61, %p62
    %s65 = sadd.s32 %s64, 1
    %p68 = scmp.eq.s32.totalorder %s9, 1
    %p69 = scmp.ne.s32.totalorder %s64, %s66
    %p70 = scmp.eq.s32.totalorder %s9, 0
    %p71 = por %p69, %p70
    %p72 = scmp.ne.s32.totalorder %s64, %s66
    %p73 = scmp.eq.s32.totalorder %s14, 1
    %p74 = por %p72, %p73
    %p75 = scmp.ne.s32.totalorder %s66, %s67
    %p76 = scmp.eq.s32.totalorder %s14, 0
    %p77 = por %p75, %p76
    %p78 = scmp.ne.s32.totalorder %s66, %s67
    %p79 = scmp.eq.s32.totalorder %s15, 1
    %p80 = por %p78, %p79
    %p82 = scmp.ne.s32.totalorder %s67, %s81
    %p83 = scmp.eq.s32.totalorder %s15, 0
    %p84 = por %p82, %p83
    %s85 = ssub.s32 %s9, %s16
    %p86 = scmp.eq.s32.totalorder %s85, 0
    %s88 = sadd.s32 %s87, 1
    %s89 = scalar_select %p86, %s87, %s88
    %p92 = pneg %p86
    %p93 = scmp.eq.s32.totalorder %s9, 1
    %p94 = por %p92, %p93
    %p95 = scmp.ne.s32.totalorder %s87, %s90
    %p96 = scmp.eq.s32.totalorder %s9, 0
    %p97 = por %p95, %p96
    %p98 = scmp.ne.s32.totalorder %s87, %s90
    %p99 = scmp.eq.s32.totalorder %s14, 1
    %p100 = por %p98, %p99
    %p101 = scmp.ne.s32.totalorder %s90, %s91
    %p102 = scmp.eq.s32.totalorder %s14, 0
    %p103 = por %p101, %p102
    %p104 = scmp.ne.s32.totalorder %s90, %s91
    %p105 = scmp.eq.s32.totalorder %s15, 1
    %p106 = por %p104, %p105
    %p108 = scmp.ne.s32.totalorder %s91, %s107
    %p109 = scmp.eq.s32.totalorder %s15, 0
    %p110 = por %p108, %p109
    %p111 = scmp.le.s32.totalorder 1, %s9
    %p112 = scmp.lt.s32.totalorder %s9, 3
    %p113 = pnand %p111, %p112
    %p114 = pneg %p113
    // Predicated region
    $region9: #{amb_hand_forward.12} parent=5 // pred_check
      _
    $region10: #{amb_hand_forward.12} parent=5 // pred_check_branch
      %116 = sbr.rel (%p113) target = $region12
    $region11: #{amb_hand_forward.12} parent=5 // pred_region
      %s117 = ssub.s32 %s9, 1
      // Predicated region
      $region13: #{amb_hand_forward.12} parent=11 // pred_check
        %p118 = pneg %p56
      $region14: #{amb_hand_forward.12} parent=11 // pred_check_branch
        %120 = sbr.rel (%p118) target = $region16
      $region15: #{amb_hand_forward.12} parent=11 // pred_region
        _
      $region16: #{amb_hand_forward.12} parent=11 // pred_fallthru
        _
      // Predicated region
      $region17: #{amb_hand_forward.12} parent=11 // pred_check
        %p121 = pneg %p77
      $region18: #{amb_hand_forward.12} parent=11 // pred_check_branch
        %123 = sbr.rel (%p121) target = $region20
      $region19: #{amb_hand_forward.12} parent=11 // pred_region
        _
      $region20: #{amb_hand_forward.12} parent=11 // pred_fallthru
        _
    $region12: #{amb_hand_forward.12} parent=5 // pred_fallthru
      _
    %p124 = scmp.lt.s32.totalorder %s9, 2
    // Predicated region
    $region21: #{amb_hand_forward.12} parent=5 // pred_check
      %p125 = pneg %p124
    $region22: #{amb_hand_forward.12} parent=5 // pred_check_branch
      %127 = sbr.rel (%p125) target = $region24
    $region23: #{amb_hand_forward.12} parent=5 // pred_region
      // Predicated region
      $region25: #{amb_hand_forward.12} parent=23 // pred_check
        %p128 = pneg %p29
      $region26: #{amb_hand_forward.12} parent=23 // pred_check_branch
        %130 = sbr.rel (%p128) target = $region28
      $region27: #{amb_hand_forward.12} parent=23 // pred_region
        %s131 = smul.u32 32, %s9
        %p132 = scmp.lt.s32.totalorder %s131, 63
        %s133 = scalar_select %p132, %s131, 63
        %s134 = smul.addr %s133, 4
        %s135 = scalar_lea.vmem %s0, %s134
        %s136 = smul.u32 32, %s9
      $region28: #{amb_hand_forward.12} parent=23 // pred_fallthru
        _
    $region24: #{amb_hand_forward.12} parent=5 // pred_fallthru
      _
    %p137 = scmp.le.s32.totalorder 1, %s9
    %p138 = scmp.lt.s32.totalorder %s9, 3
    %p139 = pnand %p137, %p138
    %p140 = pneg %p139
    // Predicated region
    $region29: #{amb_hand_forward.12} parent=5 // pred_check
      _
    $region30: #{amb_hand_forward.12} parent=5 // pred_check_branch
      %142 = sbr.rel (%p139) target = $region32
    $region31: #{amb_hand_forward.12} parent=5 // pred_region
      %s143 = ssub.s32 %s9, 1
      %s144 = smul.u32 32, %s14
      %p145 = scmp.lt.s32.totalorder %s144, 63
      %s146 = scalar_select %p145, %s144, 63
      %s147 = smul.addr %s146, 4
      %s148 = scalar_lea.vmem %s0, %s147
      %p149 = pneg %p35
      %p150 = pneg %p32
      %p151 = pneg %p56
      %p152 = pneg %p53
      %p153 = pneg %p77
      %p154 = pneg %p74
      %p155 = pneg %p103
      %p156 = pneg %p100
      %s157 = smul.u32 32, %s14
      %p158 = scmp.lt.s32.totalorder %s157, 63
      %s159 = scalar_select %p158, %s157, 63
      %s160 = smul.addr %s159, 8
      %s161 = scalar_lea.vmem %s3, %s160
      %s162 = smul.u32 32, %s14
      %p163 = scmp.lt.s32.totalorder %s162, 63
      %s164 = scalar_select %p163, %s162, 63
      %s165 = smul.addr %s164, 4
      %s166 = scalar_lea.vmem %s0, %s165
      %s167 = smul.u32 32, %s14
      %s168 = smul.u32 32, %s14
      %p169 = scmp.lt.s32.totalorder %s168, 63
      %s170 = scalar_select %p169, %s168, 63
      %s171 = smul.addr %s170, 8
      %s172 = scalar_lea.vmem %s3, %s171
      %s173 = smul.u32 32, %s14
      %v175 = vld [vmem:[%s166] sm:$0xf]
      %v176 = vld [vmem:[%s166 + $0x4] sm:$0xf]
      %v177 = vld [vmem:[%s166 + $0x8] sm:$0xf]
      %v178 = vld [vmem:[%s166 + $0xc] sm:$0xf]
      %v179 = vld [vmem:[%s166 + $0x10] sm:$0xf]
      %v180 = vld [vmem:[%s166 + $0x14] sm:$0xf]
      %v181 = vld [vmem:[%s166 + $0x18] sm:$0xf]
      %v182 = vld [vmem:[%s166 + $0x1c] sm:$0xf]
      %v183 = vld [vmem:[%s166 + $0x20] sm:$0xf]
      %v184 = vld [vmem:[%s166 + $0x24] sm:$0xf]
      %v185 = vld [vmem:[%s166 + $0x28] sm:$0xf]
      %v186 = vld [vmem:[%s166 + $0x2c] sm:$0xf]
      %v187 = vld [vmem:[%s166 + $0x30] sm:$0xf]
      %v188 = vld [vmem:[%s166 + $0x34] sm:$0xf]
      %v189 = vld [vmem:[%s166 + $0x38] sm:$0xf]
      %v190 = vld [vmem:[%s166 + $0x3c] sm:$0xf]
      %v191 = vld [vmem:[%s166 + $0x40] sm:$0xf]
      %v192 = vld [vmem:[%s166 + $0x44] sm:$0xf]
      %v193 = vld [vmem:[%s166 + $0x48] sm:$0xf]
      %v194 = vld [vmem:[%s166 + $0x4c] sm:$0xf]
      %v195 = vld [vmem:[%s166 + $0x50] sm:$0xf]
      %v196 = vld [vmem:[%s166 + $0x54] sm:$0xf]
      %v197 = vld [vmem:[%s166 + $0x58] sm:$0xf]
      %v198 = vld [vmem:[%s166 + $0x5c] sm:$0xf]
      %v199 = vld [vmem:[%s166 + $0x60] sm:$0xf]
      %v200 = vld [vmem:[%s166 + $0x64] sm:$0xf]
      %v201 = vld [vmem:[%s166 + $0x68] sm:$0xf]
      %v202 = vld [vmem:[%s166 + $0x6c] sm:$0xf]
      %v203 = vld [vmem:[%s166 + $0x70] sm:$0xf]
      %v204 = vld [vmem:[%s166 + $0x74] sm:$0xf]
      %v205 = vld [vmem:[%s166 + $0x78] sm:$0xf]
      %v206 = vld [vmem:[%s166 + $0x7c] sm:$0xf]
      %v207 = vld [vmem:[%s1] sm:$0xf]
      %v208 = vld [vmem:[%s1 + $0x4] sm:$0xf]
      %v209 = vld [vmem:[%s1 + $0x8] sm:$0xf]
      %v210 = vld [vmem:[%s1 + $0xc] sm:$0xf]
      %v211 = vld [vmem:[%s2] sm:$0x1]
      %v213 = vlaneseq
      %v214 = vshrl.u32 %v213, 7
      %v215 = vsub.s32 0, %v214
      %v216 = vrot.slane %v211, %v215
      %v250 = vunpack.c.l.b16 %v175
      %v251 = vunpack.c.l.b16 %v176
      %v252 = vunpack.c.l.b16 %v177
      %v253 = vunpack.c.l.b16 %v178
      %v254 = vunpack.c.l.b16 %v179
      %v255 = vunpack.c.l.b16 %v180
      %v256 = vunpack.c.l.b16 %v181
      %v257 = vunpack.c.l.b16 %v182
      %v258 = vunpack.c.l.b16 %v183
      %v259 = vunpack.c.l.b16 %v184
      %v260 = vunpack.c.l.b16 %v185
      %v261 = vunpack.c.l.b16 %v186
      %v262 = vunpack.c.l.b16 %v187
      %v263 = vunpack.c.l.b16 %v188
      %v264 = vunpack.c.l.b16 %v189
      %v265 = vunpack.c.l.b16 %v190
      %v266 = vunpack.c.l.b16 %v191
      %v267 = vunpack.c.l.b16 %v192
      %v268 = vunpack.c.l.b16 %v193
      %v269 = vunpack.c.l.b16 %v194
      %v270 = vunpack.c.l.b16 %v195
      %v271 = vunpack.c.l.b16 %v196
      %v272 = vunpack.c.l.b16 %v197
      %v273 = vunpack.c.l.b16 %v198
      %v274 = vunpack.c.l.b16 %v199
      %v275 = vunpack.c.l.b16 %v200
      %v276 = vunpack.c.l.b16 %v201
      %v277 = vunpack.c.l.b16 %v202
      %v278 = vunpack.c.l.b16 %v203
      %v279 = vunpack.c.l.b16 %v204
      %v280 = vunpack.c.l.b16 %v205
      %v281 = vunpack.c.l.b16 %v206
      %v282 = vpack.c.b16 %v251, %v250
      %v283 = vpack.c.b16 %v253, %v252
      %v284 = vpack.c.b16 %v255, %v254
      %v285 = vpack.c.b16 %v257, %v256
      %v286 = vpack.c.b16 %v259, %v258
      %v287 = vpack.c.b16 %v261, %v260
      %v288 = vpack.c.b16 %v263, %v262
      %v289 = vpack.c.b16 %v265, %v264
      %v290 = vpack.c.b16 %v267, %v266
      %v291 = vpack.c.b16 %v269, %v268
      %v292 = vpack.c.b16 %v271, %v270
      %v293 = vpack.c.b16 %v273, %v272
      %v294 = vpack.c.b16 %v275, %v274
      %v295 = vpack.c.b16 %v277, %v276
      %v296 = vpack.c.b16 %v279, %v278
      %v297 = vpack.c.b16 %v281, %v280
      %v302 = vunpack.c.l.b16 %v207
      %v303 = vunpack.c.l.b16 %v208
      %v304 = vunpack.c.l.b16 %v209
      %v305 = vunpack.c.l.b16 %v210
      %v306 = vpack.c.b16 %v303, %v302
      %v307 = vpack.c.b16 %v305, %v304
      %vm310 = vcmask 261120
      %v312 = vsel %vm310, %v282, 0
      %v315 = vsel %vm310, %v283, 0
      %v318 = vsel %vm310, %v284, 0
      %v321 = vsel %vm310, %v285, 0
      %v324 = vsel %vm310, %v286, 0
      %v327 = vsel %vm310, %v287, 0
      %v330 = vsel %vm310, %v288, 0
      %v333 = vsel %vm310, %v289, 0
      %v336 = vsel %vm310, %v290, 0
      %v339 = vsel %vm310, %v291, 0
      %v342 = vsel %vm310, %v292, 0
      %v345 = vsel %vm310, %v293, 0
      %v348 = vsel %vm310, %v294, 0
      %v351 = vsel %vm310, %v295, 0
      %v354 = vsel %vm310, %v296, 0
      %v357 = vsel %vm310, %v297, 0
      %359 = vmatprep.subr.bf16.mxu0 0
      %360 = vmatpush1.bf16.msra.mxu0 %v306
      %361 = vmatprep.subr.bf16.mxu0 0
      %362 = vmatpush1.bf16.msra.mxu0 %v307
      %363 = vmatprep.subr.bf16.mxu0 0
      %364 = vmatpush1.bf16.msra.mxu0 0
      %365 = vmatprep.subr.bf16.mxu0 0
      %366 = vmatpush1.bf16.msra.mxu0 0
      %367 = vmatprep.subr.bf16.mxu0 0
      %368 = vmatpush1.bf16.msra.mxu0 0
      %369 = vmatprep.subr.bf16.mxu0 0
      %370 = vmatpush1.bf16.msra.mxu0 0
      %371 = vmatprep.subr.bf16.mxu0 0
      %372 = vmatpush1.bf16.msra.mxu0 0
      %373 = vmatprep.subr.bf16.mxu0 0
      %374 = vmatpush1.bf16.msra.mxu0 0
      %375 = vmatprep.subr.bf16.mxu0 0
      %376 = vmatpush1.bf16.msra.mxu0 0
      %377 = vmatprep.subr.bf16.mxu0 0
      %378 = vmatpush1.bf16.msra.mxu0 0
      %379 = vmatprep.subr.bf16.mxu0 0
      %380 = vmatpush1.bf16.msra.mxu0 0
      %381 = vmatprep.subr.bf16.mxu0 0
      %382 = vmatpush1.bf16.msra.mxu0 0
      %383 = vmatprep.subr.bf16.mxu0 0
      %384 = vmatpush1.bf16.msra.mxu0 0
      %385 = vmatprep.subr.bf16.mxu0 0
      %386 = vmatpush1.bf16.msra.mxu0 0
      %387 = vmatprep.subr.bf16.mxu0 0
      %388 = vmatpush1.bf16.msra.mxu0 0
      %389 = vmatprep.subr.bf16.mxu0 0
      %390 = vmatpush1.bf16.msra.mxu0 0
      %391 = vmatprep.mubr.bf16.mxu0 0
      %392 = vmatmul.mubr.bf16.gmra.mrb[0].mxu0 %v312
      %v393 = vpop.f32.mrb[0].mxu0
      %v394 = vadd.f32 %v216, %v393
      %v395 = vpop.f32.mrb[0].mxu0
      %v396 = vpop.f32.mrb[0].mxu0
      %v397 = vadd.f32 %v216, %v396
      %v398 = vpop.f32.mrb[0].mxu0
      %399 = vmatprep.mubr.bf16.mxu0 0
      %400 = vmatmul.mubr.bf16.gmra.mrb[0].mxu0 %v315
      %v401 = vpop.f32.mrb[0].mxu0
      %v402 = vadd.f32 %v216, %v401
      %v403 = vpop.f32.mrb[0].mxu0
      %v404 = vpop.f32.mrb[0].mxu0
      %v405 = vadd.f32 %v216, %v404
      %v406 = vpop.f32.mrb[0].mxu0
      %407 = vmatprep.mubr.bf16.mxu0 0
      %408 = vmatmul.mubr.bf16.gmra.mrb[0].mxu0 %v318
      %v409 = vpop.f32.mrb[0].mxu0
      %v410 = vadd.f32 %v216, %v409
      %v411 = vpop.f32.mrb[0].mxu0
      %v412 = vpop.f32.mrb[0].mxu0
      %v413 = vadd.f32 %v216, %v412
      %v414 = vpop.f32.mrb[0].mxu0
      %415 = vmatprep.mubr.bf16.mxu0 0
      %416 = vmatmul.mubr.bf16.gmra.mrb[0].mxu0 %v321
      %v417 = vpop.f32.mrb[0].mxu0
      %v418 = vadd.f32 %v216, %v417
      %v419 = vpop.f32.mrb[0].mxu0
      %v420 = vpop.f32.mrb[0].mxu0
      %v421 = vadd.f32 %v216, %v420
      %v422 = vpop.f32.mrb[0].mxu0
      %423 = vmatprep.mubr.bf16.mxu0 0
      %424 = vmatmul.mubr.bf16.gmra.mrb[0].mxu0 %v324
      %v425 = vpop.f32.mrb[0].mxu0
      %v426 = vadd.f32 %v216, %v425
      %v427 = vpop.f32.mrb[0].mxu0
      %v428 = vpop.f32.mrb[0].mxu0
      %v429 = vadd.f32 %v216, %v428
      %v430 = vpop.f32.mrb[0].mxu0
      %431 = vmatprep.mubr.bf16.mxu0 0
      %432 = vmatmul.mubr.bf16.gmra.mrb[0].mxu0 %v327
      %v433 = vpop.f32.mrb[0].mxu0
      %v434 = vadd.f32 %v216, %v433
      %v435 = vpop.f32.mrb[0].mxu0
      %v436 = vpop.f32.mrb[0].mxu0
      %v437 = vadd.f32 %v216, %v436
      %v438 = vpop.f32.mrb[0].mxu0
      %439 = vmatprep.mubr.bf16.mxu0 0
      %440 = vmatmul.mubr.bf16.gmra.mrb[0].mxu0 %v330
      %v441 = vpop.f32.mrb[0].mxu0
      %v442 = vadd.f32 %v216, %v441
      %v443 = vpop.f32.mrb[0].mxu0
      %v444 = vpop.f32.mrb[0].mxu0
      %v445 = vadd.f32 %v216, %v444
      %v446 = vpop.f32.mrb[0].mxu0
      %447 = vmatprep.mubr.bf16.mxu0 0
      %448 = vmatmul.mubr.bf16.gmra.mrb[0].mxu0 %v333
      %v449 = vpop.f32.mrb[0].mxu0
      %v450 = vadd.f32 %v216, %v449
      %v451 = vpop.f32.mrb[0].mxu0
      %v452 = vpop.f32.mrb[0].mxu0
      %v453 = vadd.f32 %v216, %v452
      %v454 = vpop.f32.mrb[0].mxu0
      %455 = vmatprep.mubr.bf16.mxu0 0
      %456 = vmatmul.mubr.bf16.gmra.mrb[0].mxu0 %v336
      %v457 = vpop.f32.mrb[0].mxu0
      %v458 = vadd.f32 %v216, %v457
      %v459 = vpop.f32.mrb[0].mxu0
      %v460 = vpop.f32.mrb[0].mxu0
      %v461 = vadd.f32 %v216, %v460
      %v462 = vpop.f32.mrb[0].mxu0
      %463 = vmatprep.mubr.bf16.mxu0 0
      %464 = vmatmul.mubr.bf16.gmra.mrb[0].mxu0 %v339
      %v465 = vpop.f32.mrb[0].mxu0
      %v466 = vadd.f32 %v216, %v465
      %v467 = vpop.f32.mrb[0].mxu0
      %v468 = vpop.f32.mrb[0].mxu0
      %v469 = vadd.f32 %v216, %v468
      %v470 = vpop.f32.mrb[0].mxu0
      %471 = vmatprep.mubr.bf16.mxu0 0
      %472 = vmatmul.mubr.bf16.gmra.mrb[0].mxu0 %v342
      %v473 = vpop.f32.mrb[0].mxu0
      %v474 = vadd.f32 %v216, %v473
      %v475 = vpop.f32.mrb[0].mxu0
      %v476 = vpop.f32.mrb[0].mxu0
      %v477 = vadd.f32 %v216, %v476
      %v478 = vpop.f32.mrb[0].mxu0
      %479 = vmatprep.mubr.bf16.mxu0 0
      %480 = vmatmul.mubr.bf16.gmra.mrb[0].mxu0 %v345
      %v481 = vpop.f32.mrb[0].mxu0
      %v482 = vadd.f32 %v216, %v481
      %v483 = vpop.f32.mrb[0].mxu0
      %v484 = vpop.f32.mrb[0].mxu0
      %v485 = vadd.f32 %v216, %v484
      %v486 = vpop.f32.mrb[0].mxu0
      %487 = vmatprep.mubr.bf16.mxu0 0
      %488 = vmatmul.mubr.bf16.gmra.mrb[0].mxu0 %v348
      %v489 = vpop.f32.mrb[0].mxu0
      %v490 = vadd.f32 %v216, %v489
      %v491 = vpop.f32.mrb[0].mxu0
      %v492 = vpop.f32.mrb[0].mxu0
      %v493 = vadd.f32 %v216, %v492
      %v494 = vpop.f32.mrb[0].mxu0
      %495 = vmatprep.mubr.bf16.mxu0 0
      %496 = vmatmul.mubr.bf16.gmra.mrb[0].mxu0 %v351
      %v497 = vpop.f32.mrb[0].mxu0
      %v498 = vadd.f32 %v216, %v497
      %v499 = vpop.f32.mrb[0].mxu0
      %v500 = vpop.f32.mrb[0].mxu0
      %v501 = vadd.f32 %v216, %v500
      %v502 = vpop.f32.mrb[0].mxu0
      %503 = vmatprep.mubr.bf16.mxu0 0
      %504 = vmatmul.mubr.bf16.gmra.mrb[0].mxu0 %v354
      %v505 = vpop.f32.mrb[0].mxu0
      %v506 = vadd.f32 %v216, %v505
      %v507 = vpop.f32.mrb[0].mxu0
      %v508 = vpop.f32.mrb[0].mxu0
      %v509 = vadd.f32 %v216, %v508
      %v510 = vpop.f32.mrb[0].mxu0
      %511 = vmatprep.mubr.bf16.mxu0 0
      %512 = vmatmul.mubr.bf16.gmra.mrb[0].mxu0 %v357
      %v513 = vpop.f32.mrb[0].mxu0
      %v514 = vadd.f32 %v216, %v513
      %v515 = vpop.f32.mrb[0].mxu0
      %v516 = vpop.f32.mrb[0].mxu0
      %v517 = vadd.f32 %v216, %v516
      %v518 = vpop.f32.mrb[0].mxu0
      %519 = vdwg.mxu0
      %520 = vst [vmem:[%s172] sm:$0xff] %v394
      %521 = vst [vmem:[%s172 + $0x8] sm:$0xff] %v397
      %522 = vst [vmem:[%s172 + $0x10] sm:$0xff] %v402
      %523 = vst [vmem:[%s172 + $0x18] sm:$0xff] %v405
      %524 = vst [vmem:[%s172 + $0x20] sm:$0xff] %v410
      %525 = vst [vmem:[%s172 + $0x28] sm:$0xff] %v413
      %526 = vst [vmem:[%s172 + $0x30] sm:$0xff] %v418
      %527 = vst [vmem:[%s172 + $0x38] sm:$0xff] %v421
      %528 = vst [vmem:[%s172 + $0x40] sm:$0xff] %v426
      %529 = vst [vmem:[%s172 + $0x48] sm:$0xff] %v429
      %530 = vst [vmem:[%s172 + $0x50] sm:$0xff] %v434
      %531 = vst [vmem:[%s172 + $0x58] sm:$0xff] %v437
      %532 = vst [vmem:[%s172 + $0x60] sm:$0xff] %v442
      %533 = vst [vmem:[%s172 + $0x68] sm:$0xff] %v445
      %534 = vst [vmem:[%s172 + $0x70] sm:$0xff] %v450
      %535 = vst [vmem:[%s172 + $0x78] sm:$0xff] %v453
      %536 = vst [vmem:[%s172 + $0x80] sm:$0xff] %v458
      %537 = vst [vmem:[%s172 + $0x88] sm:$0xff] %v461
      %538 = vst [vmem:[%s172 + $0x90] sm:$0xff] %v466
      %539 = vst [vmem:[%s172 + $0x98] sm:$0xff] %v469
      %540 = vst [vmem:[%s172 + $0xa0] sm:$0xff] %v474
      %541 = vst [vmem:[%s172 + $0xa8] sm:$0xff] %v477
      %542 = vst [vmem:[%s172 + $0xb0] sm:$0xff] %v482
      %543 = vst [vmem:[%s172 + $0xb8] sm:$0xff] %v485
      %544 = vst [vmem:[%s172 + $0xc0] sm:$0xff] %v490
      %545 = vst [vmem:[%s172 + $0xc8] sm:$0xff] %v493
      %546 = vst [vmem:[%s172 + $0xd0] sm:$0xff] %v498
      %547 = vst [vmem:[%s172 + $0xd8] sm:$0xff] %v501
      %548 = vst [vmem:[%s172 + $0xe0] sm:$0xff] %v506
      %549 = vst [vmem:[%s172 + $0xe8] sm:$0xff] %v509
      %550 = vst [vmem:[%s172 + $0xf0] sm:$0xff] %v514
      %551 = vst [vmem:[%s172 + $0xf8] sm:$0xff] %v517
      %s552 = smul.u32 32, %s14
      %p553 = scmp.lt.s32.totalorder %s552, 63
      %s554 = scalar_select %p553, %s552, 63
      %s555 = smul.addr %s554, 8
      %s556 = scalar_lea.vmem %s3, %s555
      // Predicated region
      $region33: #{amb_hand_forward.12} parent=31 // pred_check
        %p557 = pneg %p100
      $region34: #{amb_hand_forward.12} parent=31 // pred_check_branch
        %559 = sbr.rel (%p557) target = $region36
      $region35: #{amb_hand_forward.12} parent=31 // pred_region
        %s560 = smul.u32 32, %s14
      $region36: #{amb_hand_forward.12} parent=31 // pred_fallthru
        _
    $region32: #{amb_hand_forward.12} parent=5 // pred_fallthru
      _
    %p561 = scmp.le.s32.totalorder 2, %s9
    // Predicated region
    $region37: #{amb_hand_forward.12} parent=5 // pred_check
      %p562 = pneg %p561
    $region38: #{amb_hand_forward.12} parent=5 // pred_check_branch
      %564 = sbr.rel (%p562) target = $region40
    $region39: #{amb_hand_forward.12} parent=5 // pred_region
      %s565 = ssub.s32 %s9, 2
      // Predicated region
      $region41: #{amb_hand_forward.12} parent=39 // pred_check
        %p566 = pneg %p106
      $region42: #{amb_hand_forward.12} parent=39 // pred_check_branch
        %568 = sbr.rel (%p566) target = $region44
      $region43: #{amb_hand_forward.12} parent=39 // pred_region
        %s569 = smul.u32 32, %s15
        %p570 = scmp.lt.s32.totalorder %s569, 63
        %s571 = scalar_select %p570, %s569, 63
        %s572 = smul.addr %s571, 8
        %s573 = scalar_lea.vmem %s3, %s572
      $region44: #{amb_hand_forward.12} parent=39 // pred_fallthru
        _
    $region40: #{amb_hand_forward.12} parent=5 // pred_fallthru
      _
  $region6: #{amb_hand_forward.12} parent=0 // loop_footer
    %s13 = sadd.s32 1, %s9
  $region7: #{amb_hand_forward.12} parent=0 // loop_footer_branch
    %8 = sbr.rel target = $region3
  $region8: #{amb_hand_forward.12} parent=0 // loop_exit
    _

// kernel: amb_hand_forward.9
$region0: #{amb_hand_forward.9}
  #allocation0 [shape = 'u32[]', space=smem, size = 0x4, offset = 0x4, fixed_abs, tag = 'smem constant byte address 0x4 - core index']
  #allocation1 [shape = 'u32[144,128]{1,0:T(1,128)}', space=vmem, size = 0x12000, scoped, tag = 'internal scratch']
  %s0 = inlined_call_operand.vmem [shape: bf16[128,32], index: 0, kind: input, shape index: {}]
  %s1 = inlined_call_operand.vmem [shape: bf16[32,128], index: 1, kind: input, shape index: {}]
  %s2 = inlined_call_operand.vmem [shape: f32[1,128], index: 2, kind: input, shape index: {}]
  %s3 = inlined_call_operand.vmem [shape: bf16[128,128], index: 3, kind: output, shape index: {}]
  %s4 = sld [smem:[#allocation0]]
  $region22: #{amb_hand_forward.9} parent=0
    _
  %s6 = ssub.s32 1, %s4
  %s7 = scalar_select 0, %s6, %s4
  // Predicated region
  $region2: #{amb_hand_forward.9} parent=0 // pred_check
    _
  $region3: #{amb_hand_forward.9} parent=0 // pred_check_branch
    %9 = sbr.rel (0) target = $region5
  $region4: #{amb_hand_forward.9} parent=0 // pred_region
    _
  $region5: #{amb_hand_forward.9} parent=0 // pred_fallthru
    _
  // Predicated region
  $region6: #{amb_hand_forward.9} parent=0 // pred_check
    _
  $region7: #{amb_hand_forward.9} parent=0 // pred_check_branch
    %11 = sbr.rel (0) target = $region9
  $region8: #{amb_hand_forward.9} parent=0 // pred_region
    _
  $region9: #{amb_hand_forward.9} parent=0 // pred_fallthru
    _
  // Predicated region
  $region10: #{amb_hand_forward.9} parent=0 // pred_check
    _
  $region11: #{amb_hand_forward.9} parent=0 // pred_check_branch
    %13 = sbr.rel (0) target = $region13
  $region12: #{amb_hand_forward.9} parent=0 // pred_region
    _
  $region13: #{amb_hand_forward.9} parent=0 // pred_fallthru
    _
  %v15 = vld [vmem:[%s0] sm:$0xf]
  %v16 = vld [vmem:[%s0 + $0x4] sm:$0xf]
  %v17 = vld [vmem:[%s0 + $0x8] sm:$0xf]
  %v18 = vld [vmem:[%s0 + $0xc] sm:$0xf]
  %v19 = vld [vmem:[%s0 + $0x10] sm:$0xf]
  %v20 = vld [vmem:[%s0 + $0x14] sm:$0xf]
  %v21 = vld [vmem:[%s0 + $0x18] sm:$0xf]
  %v22 = vld [vmem:[%s0 + $0x1c] sm:$0xf]
  %v23 = vld [vmem:[%s0 + $0x20] sm:$0xf]
  %v24 = vld [vmem:[%s0 + $0x24] sm:$0xf]
  %v25 = vld [vmem:[%s0 + $0x28] sm:$0xf]
  %v26 = vld [vmem:[%s0 + $0x2c] sm:$0xf]
  %v27 = vld [vmem:[%s0 + $0x30] sm:$0xf]
  %v28 = vld [vmem:[%s0 + $0x34] sm:$0xf]
  %v29 = vld [vmem:[%s0 + $0x38] sm:$0xf]
  %v30 = vld [vmem:[%s0 + $0x3c] sm:$0xf]
  %v31 = vld [vmem:[%s1] sm:$0xf]
  %v32 = vld [vmem:[%s1 + $0x4] sm:$0xf]
  %v33 = vld [vmem:[%s1 + $0x8] sm:$0xf]
  %v34 = vld [vmem:[%s1 + $0xc] sm:$0xf]
  %v35 = vld [vmem:[%s2] sm:$0x1]
  %v37 = vlaneseq
  %v38 = vshrl.u32 %v37, 7
  %v39 = vsub.s32 0, %v38
  %v40 = vrot.slane %v35, %v39
  %v58 = vunpack.c.l.b16 %v15
  %v59 = vunpack.c.l.b16 %v16
  %v60 = vunpack.c.l.b16 %v17
  %v61 = vunpack.c.l.b16 %v18
  %v62 = vunpack.c.l.b16 %v19
  %v63 = vunpack.c.l.b16 %v20
  %v64 = vunpack.c.l.b16 %v21
  %v65 = vunpack.c.l.b16 %v22
  %v66 = vunpack.c.l.b16 %v23
  %v67 = vunpack.c.l.b16 %v24
  %v68 = vunpack.c.l.b16 %v25
  %v69 = vunpack.c.l.b16 %v26
  %v70 = vunpack.c.l.b16 %v27
  %v71 = vunpack.c.l.b16 %v28
  %v72 = vunpack.c.l.b16 %v29
  %v73 = vunpack.c.l.b16 %v30
  %v74 = vpack.c.b16 %v59, %v58
  %v75 = vpack.c.b16 %v61, %v60
  %v76 = vpack.c.b16 %v63, %v62
  %v77 = vpack.c.b16 %v65, %v64
  %v78 = vpack.c.b16 %v67, %v66
  %v79 = vpack.c.b16 %v69, %v68
  %v80 = vpack.c.b16 %v71, %v70
  %v81 = vpack.c.b16 %v73, %v72
  %v86 = vunpack.c.l.b16 %v31
  %v87 = vunpack.c.l.b16 %v32
  %v88 = vunpack.c.l.b16 %v33
  %v89 = vunpack.c.l.b16 %v34
  %v90 = vpack.c.b16 %v87, %v86
  %v91 = vpack.c.b16 %v89, %v88
  %vm94 = vcmask 261120
  %v96 = vsel %vm94, %v74, 0
  %v99 = vsel %vm94, %v75, 0
  %v102 = vsel %vm94, %v76, 0
  %v105 = vsel %vm94, %v77, 0
  %v108 = vsel %vm94, %v78, 0
  %v111 = vsel %vm94, %v79, 0
  %v114 = vsel %vm94, %v80, 0
  %v117 = vsel %vm94, %v81, 0
  %119 = vmatprep.subr.bf16.mxu0 0
  %120 = vmatpush1.bf16.msra.mxu0 %v90
  %121 = vmatprep.subr.bf16.mxu0 0
  %122 = vmatpush1.bf16.msra.mxu0 %v91
  %123 = vmatprep.subr.bf16.mxu0 0
  %124 = vmatpush1.bf16.msra.mxu0 0
  %125 = vmatprep.subr.bf16.mxu0 0
  %126 = vmatpush1.bf16.msra.mxu0 0
  %127 = vmatprep.subr.bf16.mxu0 0
  %128 = vmatpush1.bf16.msra.mxu0 0
  %129 = vmatprep.subr.bf16.mxu0 0
  %130 = vmatpush1.bf16.msra.mxu0 0
  %131 = vmatprep.subr.bf16.mxu0 0
  %132 = vmatpush1.bf16.msra.mxu0 0
  %133 = vmatprep.subr.bf16.mxu0 0
  %134 = vmatpush1.bf16.msra.mxu0 0
  %135 = vmatprep.subr.bf16.mxu0 0
  %136 = vmatpush1.bf16.msra.mxu0 0
  %137 = vmatprep.subr.bf16.mxu0 0
  %138 = vmatpush1.bf16.msra.mxu0 0
  %139 = vmatprep.subr.bf16.mxu0 0
  %140 = vmatpush1.bf16.msra.mxu0 0
  %141 = vmatprep.subr.bf16.mxu0 0
  %142 = vmatpush1.bf16.msra.mxu0 0
  %143 = vmatprep.subr.bf16.mxu0 0
  %144 = vmatpush1.bf16.msra.mxu0 0
  %145 = vmatprep.subr.bf16.mxu0 0
  %146 = vmatpush1.bf16.msra.mxu0 0
  %147 = vmatprep.subr.bf16.mxu0 0
  %148 = vmatpush1.bf16.msra.mxu0 0
  %149 = vmatprep.subr.bf16.mxu0 0
  %150 = vmatpush1.bf16.msra.mxu0 0
  %151 = vmatprep.mubr.bf16.mxu0 0
  %152 = vmatmul.mubr.bf16.gmra.mrb[0].mxu0 %v96
  %v153 = vpop.f32.mrb[0].mxu0
  %v154 = vadd.f32 %v40, %v153
  %v155 = vpop.f32.mrb[0].mxu0
  %v156 = vpop.f32.mrb[0].mxu0
  %v157 = vadd.f32 %v40, %v156
  %v158 = vpop.f32.mrb[0].mxu0
  %159 = vmatprep.mubr.bf16.mxu0 0
  %160 = vmatmul.mubr.bf16.gmra.mrb[0].mxu0 %v99
  %v161 = vpop.f32.mrb[0].mxu0
  %v162 = vadd.f32 %v40, %v161
  %v163 = vpop.f32.mrb[0].mxu0
  %v164 = vpop.f32.mrb[0].mxu0
  %v165 = vadd.f32 %v40, %v164
  %v166 = vpop.f32.mrb[0].mxu0
  %167 = vmatprep.mubr.bf16.mxu0 0
  %168 = vmatmul.mubr.bf16.gmra.mrb[0].mxu0 %v102
  %v169 = vpop.f32.mrb[0].mxu0
  %v170 = vadd.f32 %v40, %v169
  %v171 = vpop.f32.mrb[0].mxu0
  %v172 = vpop.f32.mrb[0].mxu0
  %v173 = vadd.f32 %v40, %v172
  %v174 = vpop.f32.mrb[0].mxu0
  %175 = vmatprep.mubr.bf16.mxu0 0
  %176 = vmatmul.mubr.bf16.gmra.mrb[0].mxu0 %v105
  %v177 = vpop.f32.mrb[0].mxu0
  %v178 = vadd.f32 %v40, %v177
  %v179 = vpop.f32.mrb[0].mxu0
  %v180 = vpop.f32.mrb[0].mxu0
  %v181 = vadd.f32 %v40, %v180
  %v182 = vpop.f32.mrb[0].mxu0
  %183 = vmatprep.mubr.bf16.mxu0 0
  %184 = vmatmul.mubr.bf16.gmra.mrb[0].mxu0 %v108
  %v185 = vpop.f32.mrb[0].mxu0
  %v186 = vadd.f32 %v40, %v185
  %v187 = vpop.f32.mrb[0].mxu0
  %v188 = vpop.f32.mrb[0].mxu0
  %v189 = vadd.f32 %v40, %v188
  %v190 = vpop.f32.mrb[0].mxu0
  %191 = vmatprep.mubr.bf16.mxu0 0
  %192 = vmatmul.mubr.bf16.gmra.mrb[0].mxu0 %v111
  %v193 = vpop.f32.mrb[0].mxu0
  %v194 = vadd.f32 %v40, %v193
  %v195 = vpop.f32.mrb[0].mxu0
  %v196 = vpop.f32.mrb[0].mxu0
  %v197 = vadd.f32 %v40, %v196
  %v198 = vpop.f32.mrb[0].mxu0
  %199 = vmatprep.mubr.bf16.mxu0 0
  %200 = vmatmul.mubr.bf16.gmra.mrb[0].mxu0 %v114
  %v201 = vpop.f32.mrb[0].mxu0
  %v202 = vadd.f32 %v40, %v201
  %v203 = vpop.f32.mrb[0].mxu0
  %v204 = vpop.f32.mrb[0].mxu0
  %v205 = vadd.f32 %v40, %v204
  %v206 = vpop.f32.mrb[0].mxu0
  %207 = vmatprep.mubr.bf16.mxu0 0
  %208 = vmatmul.mubr.bf16.gmra.mrb[0].mxu0 %v117
  %v209 = vpop.f32.mrb[0].mxu0
  %v210 = vadd.f32 %v40, %v209
  %v211 = vpop.f32.mrb[0].mxu0
  %v212 = vpop.f32.mrb[0].mxu0
  %v213 = vadd.f32 %v40, %v212
  %v214 = vpop.f32.mrb[0].mxu0
  %215 = vdwg.mxu0
  %v216 = vmax.f32 %v154, 0.0
  %v217 = vmax.f32 %v157, 0.0
  %v218 = vmax.f32 %v162, 0.0
  %v219 = vmax.f32 %v165, 0.0
  %v220 = vmax.f32 %v170, 0.0
  %v221 = vmax.f32 %v173, 0.0
  %v222 = vmax.f32 %v178, 0.0
  %v223 = vmax.f32 %v181, 0.0
  %v224 = vmax.f32 %v186, 0.0
  %v225 = vmax.f32 %v189, 0.0
  %v226 = vmax.f32 %v194, 0.0
  %v227 = vmax.f32 %v197, 0.0
  %v228 = vmax.f32 %v202, 0.0
  %v229 = vmax.f32 %v205, 0.0
  %v230 = vmax.f32 %v210, 0.0
  %v231 = vmax.f32 %v213, 0.0
  %v232 = vpack.c.bf16 %v217, %v216
  %v233 = vpack.c.bf16 %v219, %v218
  %v234 = vpack.c.bf16 %v221, %v220
  %v235 = vpack.c.bf16 %v223, %v222
  %v236 = vpack.c.bf16 %v225, %v224
  %v237 = vpack.c.bf16 %v227, %v226
  %v238 = vpack.c.bf16 %v229, %v228
  %v239 = vpack.c.bf16 %v231, %v230
  %v248 = vunpack.c.l.b16 %v232
  %v249 = vunpack.c.h.b16 %v232
  %v250 = vunpack.c.l.b16 %v233
  %v251 = vunpack.c.h.b16 %v233
  %v252 = vunpack.c.l.b16 %v234
  %v253 = vunpack.c.h.b16 %v234
  %v254 = vunpack.c.l.b16 %v235
  %v255 = vunpack.c.h.b16 %v235
  %v256 = vunpack.c.l.b16 %v236
  %v257 = vunpack.c.h.b16 %v236
  %v258 = vunpack.c.l.b16 %v237
  %v259 = vunpack.c.h.b16 %v237
  %v260 = vunpack.c.l.b16 %v238
  %v261 = vunpack.c.h.b16 %v238
  %v262 = vunpack.c.l.b16 %v239
  %v263 = vunpack.c.h.b16 %v239
  %v264 = vpack.c.b16 %v248, %v248
  %v265 = vpack.c.b16 %v249, %v249
  %v266 = vpack.c.b16 %v250, %v250
  %v267 = vpack.c.b16 %v251, %v251
  %v268 = vpack.c.b16 %v252, %v252
  %v269 = vpack.c.b16 %v253, %v253
  %v270 = vpack.c.b16 %v254, %v254
  %v271 = vpack.c.b16 %v255, %v255
  %v272 = vpack.c.b16 %v256, %v256
  %v273 = vpack.c.b16 %v257, %v257
  %v274 = vpack.c.b16 %v258, %v258
  %v275 = vpack.c.b16 %v259, %v259
  %v276 = vpack.c.b16 %v260, %v260
  %v277 = vpack.c.b16 %v261, %v261
  %v278 = vpack.c.b16 %v262, %v262
  %v279 = vpack.c.b16 %v263, %v263
  %296 = vst [vmem:[%s3] sm:$0xf] %v264
  %297 = vst [vmem:[%s3 + $0x4] sm:$0xf] %v265
  %298 = vst [vmem:[%s3 + $0x8] sm:$0xf] %v266
  %299 = vst [vmem:[%s3 + $0xc] sm:$0xf] %v267
  %300 = vst [vmem:[%s3 + $0x10] sm:$0xf] %v268
  %301 = vst [vmem:[%s3 + $0x14] sm:$0xf] %v269
  %302 = vst [vmem:[%s3 + $0x18] sm:$0xf] %v270
  %303 = vst [vmem:[%s3 + $0x1c] sm:$0xf] %v271
  %304 = vst [vmem:[%s3 + $0x20] sm:$0xf] %v272
  %305 = vst [vmem:[%s3 + $0x24] sm:$0xf] %v273
  %306 = vst [vmem:[%s3 + $0x28] sm:$0xf] %v274
  %307 = vst [vmem:[%s3 + $0x2c] sm:$0xf] %v275
  %308 = vst [vmem:[%s3 + $0x30] sm:$0xf] %v276
  %309 = vst [vmem:[%s3 + $0x34] sm:$0xf] %v277
  %310 = vst [vmem:[%s3 + $0x38] sm:$0xf] %v278
  %311 = vst [vmem:[%s3 + $0x3c] sm:$0xf] %v279
  // Predicated region
  $region14: #{amb_hand_forward.9} parent=0 // pred_check
    _
  $region15: #{amb_hand_forward.9} parent=0 // pred_check_branch
    %313 = sbr.rel (0) target = $region17
  $region16: #{amb_hand_forward.9} parent=0 // pred_region
    _
  $region17: #{amb_hand_forward.9} parent=0 // pred_fallthru
    _
  // Predicated region
  $region18: #{amb_hand_forward.9} parent=0 // pred_check
    _
  $region19: #{amb_hand_forward.9} parent=0 // pred_check_branch
    %315 = sbr.rel (0) target = $region21
  $region20: #{amb_hand_forward.9} parent=0 // pred_region
    _
  $region21: #{amb_hand_forward.9} parent=0 // pred_fallthru
    _

// kernel: amb_hand_forward.10
$region0: #{amb_hand_forward.10}
  #allocation0 [shape = 'u32[]', space=smem, size = 0x4, offset = 0x4, fixed_abs, tag = 'smem constant byte address 0x4 - core index']
  #allocation1 [shape = 'u32[144,128]{1,0:T(1,128)}', space=vmem, size = 0x12000, scoped, tag = 'internal scratch']
  %s0 = inlined_call_operand.vmem [shape: bf16[32,64], index: 0, kind: input, shape index: {}]
  %s1 = inlined_call_operand.vmem [shape: bf16[64,128], index: 1, kind: input, shape index: {}]
  %s2 = inlined_call_operand.vmem [shape: f32[1,128], index: 2, kind: input, shape index: {}]
  %s3 = inlined_call_operand.vmem [shape: bf16[32,128], index: 3, kind: output, shape index: {}]
  %s4 = sld [smem:[#allocation0]]
  $region22: #{amb_hand_forward.10} parent=0
    _
  %s6 = ssub.s32 1, %s4
  %s7 = scalar_select 0, %s6, %s4
  // Predicated region
  $region2: #{amb_hand_forward.10} parent=0 // pred_check
    _
  $region3: #{amb_hand_forward.10} parent=0 // pred_check_branch
    %9 = sbr.rel (0) target = $region5
  $region4: #{amb_hand_forward.10} parent=0 // pred_region
    _
  $region5: #{amb_hand_forward.10} parent=0 // pred_fallthru
    _
  // Predicated region
  $region6: #{amb_hand_forward.10} parent=0 // pred_check
    _
  $region7: #{amb_hand_forward.10} parent=0 // pred_check_branch
    %11 = sbr.rel (0) target = $region9
  $region8: #{amb_hand_forward.10} parent=0 // pred_region
    _
  $region9: #{amb_hand_forward.10} parent=0 // pred_fallthru
    _
  // Predicated region
  $region10: #{amb_hand_forward.10} parent=0 // pred_check
    _
  $region11: #{amb_hand_forward.10} parent=0 // pred_check_branch
    %13 = sbr.rel (0) target = $region13
  $region12: #{amb_hand_forward.10} parent=0 // pred_region
    _
  $region13: #{amb_hand_forward.10} parent=0 // pred_fallthru
    _
  %v15 = vld [vmem:[%s0] sm:$0xf]
  %v16 = vld [vmem:[%s0 + $0x4] sm:$0xf]
  %v17 = vld [vmem:[%s0 + $0x8] sm:$0xf]
  %v18 = vld [vmem:[%s0 + $0xc] sm:$0xf]
  %v19 = vld [vmem:[%s1] sm:$0xf]
  %v20 = vld [vmem:[%s1 + $0x4] sm:$0xf]
  %v21 = vld [vmem:[%s1 + $0x8] sm:$0xf]
  %v22 = vld [vmem:[%s1 + $0xc] sm:$0xf]
  %v23 = vld [vmem:[%s1 + $0x10] sm:$0xf]
  %v24 = vld [vmem:[%s1 + $0x14] sm:$0xf]
  %v25 = vld [vmem:[%s1 + $0x18] sm:$0xf]
  %v26 = vld [vmem:[%s1 + $0x1c] sm:$0xf]
  %v27 = vld [vmem:[%s2] sm:$0x1]
  %v29 = vlaneseq
  %v30 = vshrl.u32 %v29, 7
  %v31 = vsub.s32 0, %v30
  %v32 = vrot.slane %v27, %v31
  %v38 = vunpack.c.l.b16 %v15
  %v39 = vunpack.c.l.b16 %v16
  %v40 = vunpack.c.l.b16 %v17
  %v41 = vunpack.c.l.b16 %v18
  %v42 = vpack.c.b16 %v39, %v38
  %v43 = vpack.c.b16 %v41, %v40
  %v52 = vunpack.c.l.b16 %v19
  %v53 = vunpack.c.l.b16 %v20
  %v54 = vunpack.c.l.b16 %v21
  %v55 = vunpack.c.l.b16 %v22
  %v56 = vunpack.c.l.b16 %v23
  %v57 = vunpack.c.l.b16 %v24
  %v58 = vunpack.c.l.b16 %v25
  %v59 = vunpack.c.l.b16 %v26
  %v60 = vpack.c.b16 %v53, %v52
  %v61 = vpack.c.b16 %v55, %v54
  %v62 = vpack.c.b16 %v57, %v56
  %v63 = vpack.c.b16 %v59, %v58
  %vm68 = vcmask 523264
  %v70 = vsel %vm68, %v42, 0
  %v73 = vsel %vm68, %v43, 0
  %75 = vmatprep.subr.bf16.mxu0 0
  %76 = vmatpush1.bf16.msra.mxu0 %v60
  %77 = vmatprep.subr.bf16.mxu0 0
  %78 = vmatpush1.bf16.msra.mxu0 %v61
  %79 = vmatprep.subr.bf16.mxu0 0
  %80 = vmatpush1.bf16.msra.mxu0 %v62
  %81 = vmatprep.subr.bf16.mxu0 0
  %82 = vmatpush1.bf16.msra.mxu0 %v63
  %83 = vmatprep.subr.bf16.mxu0 0
  %84 = vmatpush1.bf16.msra.mxu0 0
  %85 = vmatprep.subr.bf16.mxu0 0
  %86 = vmatpush1.bf16.msra.mxu0 0
  %87 = vmatprep.subr.bf16.mxu0 0
  %88 = vmatpush1.bf16.msra.mxu0 0
  %89 = vmatprep.subr.bf16.mxu0 0
  %90 = vmatpush1.bf16.msra.mxu0 0
  %91 = vmatprep.subr.bf16.mxu0 0
  %92 = vmatpush1.bf16.msra.mxu0 0
  %93 = vmatprep.subr.bf16.mxu0 0
  %94 = vmatpush1.bf16.msra.mxu0 0
  %95 = vmatprep.subr.bf16.mxu0 0
  %96 = vmatpush1.bf16.msra.mxu0 0
  %97 = vmatprep.subr.bf16.mxu0 0
  %98 = vmatpush1.bf16.msra.mxu0 0
  %99 = vmatprep.subr.bf16.mxu0 0
  %100 = vmatpush1.bf16.msra.mxu0 0
  %101 = vmatprep.subr.bf16.mxu0 0
  %102 = vmatpush1.bf16.msra.mxu0 0
  %103 = vmatprep.subr.bf16.mxu0 0
  %104 = vmatpush1.bf16.msra.mxu0 0
  %105 = vmatprep.subr.bf16.mxu0 0
  %106 = vmatpush1.bf16.msra.mxu0 0
  %107 = vmatprep.mubr.bf16.mxu0 0
  %108 = vmatmul.mubr.bf16.gmra.mrb[0].mxu0 %v70
  %v109 = vpop.f32.mrb[0].mxu0
  %v110 = vadd.f32 %v32, %v109
  %v111 = vpop.f32.mrb[0].mxu0
  %v112 = vpop.f32.mrb[0].mxu0
  %v113 = vadd.f32 %v32, %v112
  %v114 = vpop.f32.mrb[0].mxu0
  %115 = vmatprep.mubr.bf16.mxu0 0
  %116 = vmatmul.mubr.bf16.gmra.mrb[0].mxu0 %v73
  %v117 = vpop.f32.mrb[0].mxu0
  %v118 = vadd.f32 %v32, %v117
  %v119 = vpop.f32.mrb[0].mxu0
  %v120 = vpop.f32.mrb[0].mxu0
  %v121 = vadd.f32 %v32, %v120
  %v122 = vpop.f32.mrb[0].mxu0
  %123 = vdwg.mxu0
  %v124 = vmax.f32 %v110, 0.0
  %v125 = vmax.f32 %v113, 0.0
  %v126 = vmax.f32 %v118, 0.0
  %v127 = vmax.f32 %v121, 0.0
  %v128 = vpack.c.bf16 %v125, %v124
  %v129 = vpack.c.bf16 %v127, %v126
  %v132 = vunpack.c.l.b16 %v128
  %v133 = vunpack.c.h.b16 %v128
  %v134 = vunpack.c.l.b16 %v129
  %v135 = vunpack.c.h.b16 %v129
  %v136 = vpack.c.b16 %v132, %v132
  %v137 = vpack.c.b16 %v133, %v133
  %v138 = vpack.c.b16 %v134, %v134
  %v139 = vpack.c.b16 %v135, %v135
  %144 = vst [vmem:[%s3] sm:$0xf] %v136
  %145 = vst [vmem:[%s3 + $0x4] sm:$0xf] %v137
  %146 = vst [vmem:[%s3 + $0x8] sm:$0xf] %v138
  %147 = vst [vmem:[%s3 + $0xc] sm:$0xf] %v139
  // Predicated region
  $region14: #{amb_hand_forward.10} parent=0 // pred_check
    _
  $region15: #{amb_hand_forward.10} parent=0 // pred_check_branch
    %149 = sbr.rel (0) target = $region17
  $region16: #{amb_hand_forward.10} parent=0 // pred_region
    _
  $region17: #{amb_hand_forward.10} parent=0 // pred_fallthru
    _
  // Predicated region
  $region18: #{amb_hand_forward.10} parent=0 // pred_check
    _
  $region19: #{amb_hand_forward.10} parent=0 // pred_check_branch
    %151 = sbr.rel (0) target = $region21
  $region20: #{amb_hand_forward.10} parent=0 // pred_region
    _
  $region21: #{amb_hand_forward.10} parent=0 // pred_fallthru
    _

// kernel: amb_hand_forward.11
$region0: #{amb_hand_forward.11}
  #allocation0 [shape = 'u32[]', space=smem, size = 0x4, offset = 0x4, fixed_abs, tag = 'smem constant byte address 0x4 - core index']
  #allocation1 [shape = 'u32[144,128]{1,0:T(1,128)}', space=vmem, size = 0x12000, scoped, tag = 'internal scratch']
  %s0 = inlined_call_operand.vmem [shape: bf16[8,128], index: 0, kind: input, shape index: {}]
  %s1 = inlined_call_operand.vmem [shape: bf16[128,256], index: 1, kind: input, shape index: {}]
  %s2 = inlined_call_operand.vmem [shape: f32[1,256], index: 2, kind: input, shape index: {}]
  %s3 = inlined_call_operand.vmem [shape: bf16[8,256], index: 3, kind: output, shape index: {}]
  %s4 = sld [smem:[#allocation0]]
  $region22: #{amb_hand_forward.11} parent=0
    _
  %s6 = ssub.s32 1, %s4
  %s7 = scalar_select 0, %s6, %s4
  // Predicated region
  $region2: #{amb_hand_forward.11} parent=0 // pred_check
    _
  $region3: #{amb_hand_forward.11} parent=0 // pred_check_branch
    %9 = sbr.rel (0) target = $region5
  $region4: #{amb_hand_forward.11} parent=0 // pred_region
    _
  $region5: #{amb_hand_forward.11} parent=0 // pred_fallthru
    _
  // Predicated region
  $region6: #{amb_hand_forward.11} parent=0 // pred_check
    _
  $region7: #{amb_hand_forward.11} parent=0 // pred_check_branch
    %11 = sbr.rel (0) target = $region9
  $region8: #{amb_hand_forward.11} parent=0 // pred_region
    _
  $region9: #{amb_hand_forward.11} parent=0 // pred_fallthru
    _
  // Predicated region
  $region10: #{amb_hand_forward.11} parent=0 // pred_check
    _
  $region11: #{amb_hand_forward.11} parent=0 // pred_check_branch
    %13 = sbr.rel (0) target = $region13
  $region12: #{amb_hand_forward.11} parent=0 // pred_region
    _
  $region13: #{amb_hand_forward.11} parent=0 // pred_fallthru
    _
  %v15 = vld [vmem:[%s0] sm:$0xf]
  %v16 = vld [vmem:[%s1] sm:$0xff]
  %v17 = vld [vmem:[%s1 + $0x8] sm:$0xff]
  %v18 = vld [vmem:[%s1 + $0x10] sm:$0xff]
  %v19 = vld [vmem:[%s1 + $0x18] sm:$0xff]
  %v20 = vld [vmem:[%s1 + $0x20] sm:$0xff]
  %v21 = vld [vmem:[%s1 + $0x28] sm:$0xff]
  %v22 = vld [vmem:[%s1 + $0x30] sm:$0xff]
  %v23 = vld [vmem:[%s1 + $0x38] sm:$0xff]
  %v24 = vld [vmem:[%s1 + $0x40] sm:$0xff]
  %v25 = vld [vmem:[%s1 + $0x48] sm:$0xff]
  %v26 = vld [vmem:[%s1 + $0x50] sm:$0xff]
  %v27 = vld [vmem:[%s1 + $0x58] sm:$0xff]
  %v28 = vld [vmem:[%s1 + $0x60] sm:$0xff]
  %v29 = vld [vmem:[%s1 + $0x68] sm:$0xff]
  %v30 = vld [vmem:[%s1 + $0x70] sm:$0xff]
  %v31 = vld [vmem:[%s1 + $0x78] sm:$0xff]
  %v32 = vld [vmem:[%s2] sm:$0x3]
  %v34 = vlaneseq
  %v35 = vshrl.u32 %v34, 7
  %v36 = vsub.s32 0, %v35
  %v37 = vrot.slane %v32, %v36
  %v38 = vlaneseq
  %v39 = vshrl.u32 %v38, 7
  %v40 = vsub.s32 1, %v39
  %v41 = vrot.slane %v32, %v40
  %v60 = vunpack.c.l.b16 %v16
  %v61 = vunpack.c.h.b16 %v16
  %v62 = vunpack.c.l.b16 %v17
  %v63 = vunpack.c.h.b16 %v17
  %v64 = vunpack.c.l.b16 %v18
  %v65 = vunpack.c.h.b16 %v18
  %v66 = vunpack.c.l.b16 %v19
  %v67 = vunpack.c.h.b16 %v19
  %v68 = vunpack.c.l.b16 %v20
  %v69 = vunpack.c.h.b16 %v20
  %v70 = vunpack.c.l.b16 %v21
  %v71 = vunpack.c.h.b16 %v21
  %v72 = vunpack.c.l.b16 %v22
  %v73 = vunpack.c.h.b16 %v22
  %v74 = vunpack.c.l.b16 %v23
  %v75 = vunpack.c.h.b16 %v23
  %v76 = vunpack.c.l.b16 %v24
  %v77 = vunpack.c.h.b16 %v24
  %v78 = vunpack.c.l.b16 %v25
  %v79 = vunpack.c.h.b16 %v25
  %v80 = vunpack.c.l.b16 %v26
  %v81 = vunpack.c.h.b16 %v26
  %v82 = vunpack.c.l.b16 %v27
  %v83 = vunpack.c.h.b16 %v27
  %v84 = vunpack.c.l.b16 %v28
  %v85 = vunpack.c.h.b16 %v28
  %v86 = vunpack.c.l.b16 %v29
  %v87 = vunpack.c.h.b16 %v29
  %v88 = vunpack.c.l.b16 %v30
  %v89 = vunpack.c.h.b16 %v30
  %v90 = vunpack.c.l.b16 %v31
  %v91 = vunpack.c.h.b16 %v31
  %v92 = vpack.c.b16 %v62, %v60
  %v93 = vpack.c.b16 %v63, %v61
  %v94 = vpack.c.b16 %v66, %v64
  %v95 = vpack.c.b16 %v67, %v65
  %v96 = vpack.c.b16 %v70, %v68
  %v97 = vpack.c.b16 %v71, %v69
  %v98 = vpack.c.b16 %v74, %v72
  %v99 = vpack.c.b16 %v75, %v73
  %v100 = vpack.c.b16 %v78, %v76
  %v101 = vpack.c.b16 %v79, %v77
  %v102 = vpack.c.b16 %v82, %v80
  %v103 = vpack.c.b16 %v83, %v81
  %v104 = vpack.c.b16 %v86, %v84
  %v105 = vpack.c.b16 %v87, %v85
  %v106 = vpack.c.b16 %v90, %v88
  %v107 = vpack.c.b16 %v91, %v89
  %124 = vmatprep.subr.bf16.mxu0 %v93
  %125 = vmatpush1.bf16.msra.mxu0 %v92
  %126 = vmatprep.subr.bf16.mxu0 %v95
  %127 = vmatpush1.bf16.msra.mxu0 %v94
  %128 = vmatprep.subr.bf16.mxu0 %v97
  %129 = vmatpush1.bf16.msra.mxu0 %v96
  %130 = vmatprep.subr.bf16.mxu0 %v99
  %131 = vmatpush1.bf16.msra.mxu0 %v98
  %132 = vmatprep.subr.bf16.mxu0 %v101
  %133 = vmatpush1.bf16.msra.mxu0 %v100
  %134 = vmatprep.subr.bf16.mxu0 %v103
  %135 = vmatpush1.bf16.msra.mxu0 %v102
  %136 = vmatprep.subr.bf16.mxu0 %v105
  %137 = vmatpush1.bf16.msra.mxu0 %v104
  %138 = vmatprep.subr.bf16.mxu0 %v107
  %139 = vmatpush1.bf16.msra.mxu0 %v106
  %140 = vmatprep.subr.bf16.mxu0 0
  %141 = vmatpush1.bf16.msra.mxu0 0
  %142 = vmatprep.subr.bf16.mxu0 0
  %143 = vmatpush1.bf16.msra.mxu0 0
  %144 = vmatprep.subr.bf16.mxu0 0
  %145 = vmatpush1.bf16.msra.mxu0 0
  %146 = vmatprep.subr.bf16.mxu0 0
  %147 = vmatpush1.bf16.msra.mxu0 0
  %148 = vmatprep.subr.bf16.mxu0 0
  %149 = vmatpush1.bf16.msra.mxu0 0
  %150 = vmatprep.subr.bf16.mxu0 0
  %151 = vmatpush1.bf16.msra.mxu0 0
  %152 = vmatprep.subr.bf16.mxu0 0
  %153 = vmatpush1.bf16.msra.mxu0 0
  %154 = vmatprep.subr.bf16.mxu0 0
  %155 = vmatpush1.bf16.msra.mxu0 0
  %156 = vmatprep.mubr.bf16.mxu0 0
  %157 = vmatmul.mubr.bf16.gmra.mrb[0].mxu0 %v15
  %v158 = vpop.f32.mrb[0].mxu0
  %v159 = vadd.f32 %v37, %v158
  %v160 = vpop.f32.mrb[0].mxu0
  %v161 = vadd.f32 %v41, %v160
  %v162 = vpop.f32.mrb[0].mxu0
  %v163 = vpop.f32.mrb[0].mxu0
  %164 = vdwg.mxu0
  %v165 = vmax.f32 %v159, 0.0
  %v166 = vmax.f32 %v161, 0.0
  %v167 = vpack.c.bf16 %v165, %v165
  %v168 = vpack.c.bf16 %v166, %v166
  %v171 = vunpack.c.l.b16 %v167
  %v172 = vunpack.c.l.b16 %v168
  %v173 = vpack.c.b16 %v172, %v171
  %175 = vst [vmem:[%s3] sm:$0xff] %v173
  // Predicated region
  $region14: #{amb_hand_forward.11} parent=0 // pred_check
    _
  $region15: #{amb_hand_forward.11} parent=0 // pred_check_branch
    %177 = sbr.rel (0) target = $region17
  $region16: #{amb_hand_forward.11} parent=0 // pred_region
    _
  $region17: #{amb_hand_forward.11} parent=0 // pred_fallthru
    _
  // Predicated region
  $region18: #{amb_hand_forward.11} parent=0 // pred_check
    _
  $region19: #{amb_hand_forward.11} parent=0 // pred_check_branch
    %179 = sbr.rel (0) target = $region21
  $region20: #{amb_hand_forward.11} parent=0 // pred_region
    _
  $region21: #{amb_hand_forward.11} parent=0 // pred_fallthru
    _

// kernel: amb_hand_forward.13
$region0: #{amb_hand_forward.13}
  #allocation0 [shape = 'u32[]', space=smem, size = 0x4, offset = 0x4, fixed_abs, tag = 'smem constant byte address 0x4 - core index']
  #allocation1 [shape = 'u32[144,128]{1,0:T(1,128)}', space=vmem, size = 0x12000, scoped, tag = 'internal scratch']
  %s0 = inlined_call_operand.vmem [shape: f32[16,10], index: 0, kind: input, shape index: {}]
  %s1 = inlined_call_operand.vmem [shape: f32[16,9], index: 1, kind: input, shape index: {}]
  %s2 = inlined_call_operand.vmem [shape: f32[16,3], index: 2, kind: input, shape index: {}]
  %s3 = inlined_call_operand.vmem [shape: f32[10,2688], index: 3, kind: input, shape index: {}]
  %s4 = inlined_call_operand.vmem [shape: f32[1,2688], index: 4, kind: input, shape index: {}]
  %s5 = inlined_call_operand.vmem [shape: f32[896,21], index: 5, kind: input, shape index: {}]
  %s6 = inlined_call_operand.vmem [shape: f32[3,16,896], index: 6, kind: output, shape index: {0}]
  %s7 = inlined_call_operand.vmem [shape: f32[48,21], index: 7, kind: output, shape index: {1}]
  %s8 = inlined_call_operand.vmem [shape: f32[2,16,21], index: 8, kind: output, shape index: {2}]
  %9 = xla_tuple %s6, %s7, %s8
  %s10 = sld [smem:[#allocation0]]
  $region50: #{amb_hand_forward.13} parent=0
    _
  %s12 = ssub.s32 1, %s10
  %s13 = scalar_select 0, %s12, %s10
  // Predicated region
  $region2: #{amb_hand_forward.13} parent=0 // pred_check
    _
  $region3: #{amb_hand_forward.13} parent=0 // pred_check_branch
    %15 = sbr.rel (0) target = $region5
  $region4: #{amb_hand_forward.13} parent=0 // pred_region
    _
  $region5: #{amb_hand_forward.13} parent=0 // pred_fallthru
    _
  // Predicated region
  $region6: #{amb_hand_forward.13} parent=0 // pred_check
    _
  $region7: #{amb_hand_forward.13} parent=0 // pred_check_branch
    %17 = sbr.rel (0) target = $region9
  $region8: #{amb_hand_forward.13} parent=0 // pred_region
    _
  $region9: #{amb_hand_forward.13} parent=0 // pred_fallthru
    _
  // Predicated region
  $region10: #{amb_hand_forward.13} parent=0 // pred_check
    _
  $region11: #{amb_hand_forward.13} parent=0 // pred_check_branch
    %19 = sbr.rel (0) target = $region13
  $region12: #{amb_hand_forward.13} parent=0 // pred_region
    _
  $region13: #{amb_hand_forward.13} parent=0 // pred_fallthru
    _
  // Predicated region
  $region14: #{amb_hand_forward.13} parent=0 // pred_check
    _
  $region15: #{amb_hand_forward.13} parent=0 // pred_check_branch
    %21 = sbr.rel (0) target = $region17
  $region16: #{amb_hand_forward.13} parent=0 // pred_region
    _
  $region17: #{amb_hand_forward.13} parent=0 // pred_fallthru
    _
  // Predicated region
  $region18: #{amb_hand_forward.13} parent=0 // pred_check
    _
  $region19: #{amb_hand_forward.13} parent=0 // pred_check_branch
    %23 = sbr.rel (0) target = $region21
  $region20: #{amb_hand_forward.13} parent=0 // pred_region
    _
  $region21: #{amb_hand_forward.13} parent=0 // pred_fallthru
    _
  // Predicated region
  $region22: #{amb_hand_forward.13} parent=0 // pred_check
    _
  $region23: #{amb_hand_forward.13} parent=0 // pred_check_branch
    %25 = sbr.rel (0) target = $region25
  $region24: #{amb_hand_forward.13} parent=0 // pred_region
    _
  $region25: #{amb_hand_forward.13} parent=0 // pred_fallthru
    _
  %v26 = vld [vmem:[%s0] sm:$0xff]
  %v27 = vld [vmem:[%s0 + $0x8] sm:$0xff]
  %v28 = vld [vmem:[%s1] sm:$0xff]
  %v29 = vld [vmem:[%s1 + $0x8] sm:$0xff]
  %v30 = vld [vmem:[%s2] sm:$0xff]
  %v31 = vld [vmem:[%s2 + $0x8] sm:$0xff]
  %v32 = vld [vmem:[%s3] sm:$0xff]
  %v33 = vld [vmem:[%s3 + $0x8] sm:$0xff]
  %v34 = vld [vmem:[%s3 + $0x10] sm:$0xff]
  %v35 = vld [vmem:[%s3 + $0x18] sm:$0xff]
  %v36 = vld [vmem:[%s3 + $0x20] sm:$0xff]
  %v37 = vld [vmem:[%s3 + $0x28] sm:$0xff]
  %v38 = vld [vmem:[%s3 + $0x30] sm:$0xff]
  %v39 = vld [vmem:[%s3 + $0x38] sm:$0xff]
  %v40 = vld [vmem:[%s3 + $0x40] sm:$0xff]
  %v41 = vld [vmem:[%s3 + $0x48] sm:$0xff]
  %v42 = vld [vmem:[%s3 + $0x50] sm:$0xff]
  %v43 = vld [vmem:[%s3 + $0x58] sm:$0xff]
  %v44 = vld [vmem:[%s3 + $0x60] sm:$0xff]
  %v45 = vld [vmem:[%s3 + $0x68] sm:$0xff]
  %v46 = vld [vmem:[%s3 + $0x70] sm:$0xff]
  %v47 = vld [vmem:[%s3 + $0x78] sm:$0xff]
  %v48 = vld [vmem:[%s3 + $0x80] sm:$0xff]
  %v49 = vld [vmem:[%s3 + $0x88] sm:$0xff]
  %v50 = vld [vmem:[%s3 + $0x90] sm:$0xff]
  %v51 = vld [vmem:[%s3 + $0x98] sm:$0xff]
  %v52 = vld [vmem:[%s3 + $0xa0] sm:$0xff]
  %v53 = vld [vmem:[%s3 + $0xa8] sm:$0x3]
  %v54 = vld [vmem:[%s3 + $0xb0] sm:$0x3]
  %v55 = vld [vmem:[%s3 + $0xb8] sm:$0x3]
  %v56 = vld [vmem:[%s3 + $0xc0] sm:$0x3]
  %v57 = vld [vmem:[%s3 + $0xc8] sm:$0x3]
  %v58 = vld [vmem:[%s3 + $0xd0] sm:$0x3]
  %v59 = vld [vmem:[%s3 + $0xd8] sm:$0x3]
  %v60 = vld [vmem:[%s3 + $0xe0] sm:$0x3]
  %v61 = vld [vmem:[%s3 + $0xe8] sm:$0x3]
  %v62 = vld [vmem:[%s3 + $0xf0] sm:$0x3]
  %v63 = vld [vmem:[%s3 + $0xf8] sm:$0x3]
  %v64 = vld [vmem:[%s3 + $0x100] sm:$0x3]
  %v65 = vld [vmem:[%s3 + $0x108] sm:$0x3]
  %v66 = vld [vmem:[%s3 + $0x110] sm:$0x3]
  %v67 = vld [vmem:[%s3 + $0x118] sm:$0x3]
  %v68 = vld [vmem:[%s3 + $0x120] sm:$0x3]
  %v69 = vld [vmem:[%s3 + $0x128] sm:$0x3]
  %v70 = vld [vmem:[%s3 + $0x130] sm:$0x3]
  %v71 = vld [vmem:[%s3 + $0x138] sm:$0x3]
  %v72 = vld [vmem:[%s3 + $0x140] sm:$0x3]
  %v73 = vld [vmem:[%s3 + $0x148] sm:$0x3]
  %v74 = vld [vmem:[%s4] sm:$0xff]
  %v75 = vld [vmem:[%s4 + $0x8] sm:$0xff]
  %v76 = vld [vmem:[%s4 + $0x10] sm:$0x1f]
  %v80 = vlaneseq
  %v81 = vshrl.u32 %v80, 7
  %v82 = vsub.s32 0, %v81
  %v83 = vrot.slane %v74, %v82
  %v84 = vlaneseq
  %v85 = vshrl.u32 %v84, 7
  %v86 = vsub.s32 1, %v85
  %v87 = vrot.slane %v74, %v86
  %v88 = vlaneseq
  %v89 = vshrl.u32 %v88, 7
  %v90 = vsub.s32 2, %v89
  %v91 = vrot.slane %v74, %v90
  %v92 = vlaneseq
  %v93 = vshrl.u32 %v92, 7
  %v94 = vsub.s32 3, %v93
  %v95 = vrot.slane %v74, %v94
  %v96 = vlaneseq
  %v97 = vshrl.u32 %v96, 7
  %v98 = vsub.s32 4, %v97
  %v99 = vrot.slane %v74, %v98
  %v100 = vlaneseq
  %v101 = vshrl.u32 %v100, 7
  %v102 = vsub.s32 5, %v101
  %v103 = vrot.slane %v74, %v102
  %v104 = vlaneseq
  %v105 = vshrl.u32 %v104, 7
  %v106 = vsub.s32 6, %v105
  %v107 = vrot.slane %v74, %v106
  %v108 = vlaneseq
  %v109 = vshrl.u32 %v108, 7
  %v110 = vsub.s32 7, %v109
  %v111 = vrot.slane %v74, %v110
  %v112 = vlaneseq
  %v113 = vshrl.u32 %v112, 7
  %v114 = vsub.s32 0, %v113
  %v115 = vrot.slane %v75, %v114
  %v116 = vlaneseq
  %v117 = vshrl.u32 %v116, 7
  %v118 = vsub.s32 1, %v117
  %v119 = vrot.slane %v75, %v118
  %v120 = vlaneseq
  %v121 = vshrl.u32 %v120, 7
  %v122 = vsub.s32 2, %v121
  %v123 = vrot.slane %v75, %v122
  %v124 = vlaneseq
  %v125 = vshrl.u32 %v124, 7
  %v126 = vsub.s32 3, %v125
  %v127 = vrot.slane %v75, %v126
  %v128 = vlaneseq
  %v129 = vshrl.u32 %v128, 7
  %v130 = vsub.s32 4, %v129
  %v131 = vrot.slane %v75, %v130
  %v132 = vlaneseq
  %v133 = vshrl.u32 %v132, 7
  %v134 = vsub.s32 5, %v133
  %v135 = vrot.slane %v75, %v134
  %v136 = vlaneseq
  %v137 = vshrl.u32 %v136, 7
  %v138 = vsub.s32 6, %v137
  %v139 = vrot.slane %v75, %v138
  %v140 = vlaneseq
  %v141 = vshrl.u32 %v140, 7
  %v142 = vsub.s32 7, %v141
  %v143 = vrot.slane %v75, %v142
  %v144 = vlaneseq
  %v145 = vshrl.u32 %v144, 7
  %v146 = vsub.s32 0, %v145
  %v147 = vrot.slane %v76, %v146
  %v148 = vlaneseq
  %v149 = vshrl.u32 %v148, 7
  %v150 = vsub.s32 1, %v149
  %v151 = vrot.slane %v76, %v150
  %v152 = vlaneseq
  %v153 = vshrl.u32 %v152, 7
  %v154 = vsub.s32 2, %v153
  %v155 = vrot.slane %v76, %v154
  %v156 = vlaneseq
  %v157 = vshrl.u32 %v156, 7
  %v158 = vsub.s32 3, %v157
  %v159 = vrot.slane %v76, %v158
  %v160 = vlaneseq
  %v161 = vshrl.u32 %v160, 7
  %v162 = vsub.s32 4, %v161
  %v163 = vrot.slane %v76, %v162
  %vm185 = vcmask 80896
  %v187 = vsel %vm185, %v26, 0
  %v190 = vsel %vm185, %v27, 0
  %vm192 = vcmask 1041408
  %v194 = vsel %vm192, %v53, 0
  %v197 = vsel %vm192, %v54, 0
  %v200 = vsel %vm192, %v55, 0
  %v203 = vsel %vm192, %v56, 0
  %v206 = vsel %vm192, %v57, 0
  %v209 = vsel %vm192, %v58, 0
  %v212 = vsel %vm192, %v59, 0
  %v215 = vsel %vm192, %v60, 0
  %v218 = vsel %vm192, %v61, 0
  %v221 = vsel %vm192, %v62, 0
  %v224 = vsel %vm192, %v63, 0
  %v227 = vsel %vm192, %v64, 0
  %v230 = vsel %vm192, %v65, 0
  %v233 = vsel %vm192, %v66, 0
  %v236 = vsel %vm192, %v67, 0
  %v239 = vsel %vm192, %v68, 0
  %v242 = vsel %vm192, %v69, 0
  %v245 = vsel %vm192, %v70, 0
  %v248 = vsel %vm192, %v71, 0
  %v251 = vsel %vm192, %v72, 0
  %v254 = vsel %vm192, %v73, 0
  %256 = vmatprep.subr.mxu0 %v33
  %257 = vmatpush1.msra.mxu0 %v32
  %258 = vmatprep.subr.mxu0 %v197
  %259 = vmatpush1.msra.mxu0 %v194
  %260 = vmatprep.subr.mxu0 0.0
  %261 = vmatpush1.msra.mxu0 0.0
  %262 = vmatprep.subr.mxu0 0.0
  %263 = vmatpush1.msra.mxu0 0.0
  %264 = vmatprep.subr.mxu0 0.0
  %265 = vmatpush1.msra.mxu0 0.0
  %266 = vmatprep.subr.mxu0 0.0
  %267 = vmatpush1.msra.mxu0 0.0
  %268 = vmatprep.subr.mxu0 0.0
  %269 = vmatpush1.msra.mxu0 0.0
  %270 = vmatprep.subr.mxu0 0.0
  %271 = vmatpush1.msra.mxu0 0.0
  %272 = vmatprep.subr.mxu0 0.0
  %273 = vmatpush1.msra.mxu0 0.0
  %274 = vmatprep.subr.mxu0 0.0
  %275 = vmatpush1.msra.mxu0 0.0
  %276 = vmatprep.subr.mxu0 0.0
  %277 = vmatpush1.msra.mxu0 0.0
  %278 = vmatprep.subr.mxu0 0.0
  %279 = vmatpush1.msra.mxu0 0.0
  %280 = vmatprep.subr.mxu0 0.0
  %281 = vmatpush1.msra.mxu0 0.0
  %282 = vmatprep.subr.mxu0 0.0
  %283 = vmatpush1.msra.mxu0 0.0
  %284 = vmatprep.subr.mxu0 0.0
  %285 = vmatpush1.msra.mxu0 0.0
  %286 = vmatprep.subr.mxu0 0.0
  %287 = vmatpush1.msra.mxu0 0.0
  %288 = vmatprep.subr.mxu0 0.0
  %289 = vmatpush1.msra.mxu0 0.0
  %290 = vmatprep.subr.mxu0 0.0
  %291 = vmatpush1.msra.mxu0 0.0
  %292 = vmatprep.subr.mxu0 0.0
  %293 = vmatpush1.msra.mxu0 0.0
  %294 = vmatprep.subr.mxu0 0.0
  %295 = vmatpush1.msra.mxu0 0.0
  %296 = vmatprep.subr.mxu0 0.0
  %297 = vmatpush1.msra.mxu0 0.0
  %298 = vmatprep.subr.mxu0 0.0
  %299 = vmatpush1.msra.mxu0 0.0
  %300 = vmatprep.subr.mxu0 0.0
  %301 = vmatpush1.msra.mxu0 0.0
  %302 = vmatprep.subr.mxu0 0.0
  %303 = vmatpush1.msra.mxu0 0.0
  %304 = vmatprep.subr.mxu0 0.0
  %305 = vmatpush1.msra.mxu0 0.0
  %306 = vmatprep.subr.mxu0 0.0
  %307 = vmatpush1.msra.mxu0 0.0
  %308 = vmatprep.subr.mxu0 0.0
  %309 = vmatpush1.msra.mxu0 0.0
  %310 = vmatprep.subr.mxu0 0.0
  %311 = vmatpush1.msra.mxu0 0.0
  %312 = vmatprep.subr.mxu0 0.0
  %313 = vmatpush1.msra.mxu0 0.0
  %314 = vmatprep.subr.mxu0 0.0
  %315 = vmatpush1.msra.mxu0 0.0
  %316 = vmatprep.subr.mxu0 0.0
  %317 = vmatpush1.msra.mxu0 0.0
  %318 = vmatprep.subr.mxu0 0.0
  %319 = vmatpush1.msra.mxu0 0.0
  %320 = vmatprep.mubr.f32.mxu0 0.0
  %321 = vmatmul.mubr.f32.gmra.mrb[0].mxu0 %v187
  %v322 = vpop.f32.mrb[0].mxu0
  %v323 = vadd.f32 %v83, %v322
  %v324 = vpop.f32.mrb[0].mxu0
  %v325 = vadd.f32 %v87, %v324
  %326 = vmatprep.mubr.f32.mxu0 0.0
  %327 = vmatmul.mubr.f32.gmra.mrb[0].mxu0 %v190
  %v328 = vpop.f32.mrb[0].mxu0
  %v329 = vadd.f32 %v83, %v328
  %v330 = vpop.f32.mrb[0].mxu0
  %v331 = vadd.f32 %v87, %v330
  %332 = vdwg.mxu0
  %333 = vmatprep.subr.mxu0 %v35
  %334 = vmatpush1.msra.mxu0 %v34
  %335 = vmatprep.subr.mxu0 %v203
  %336 = vmatpush1.msra.mxu0 %v200
  %337 = vmatprep.subr.mxu0 0.0
  %338 = vmatpush1.msra.mxu0 0.0
  %339 = vmatprep.subr.mxu0 0.0
  %340 = vmatpush1.msra.mxu0 0.0
  %341 = vmatprep.subr.mxu0 0.0
  %342 = vmatpush1.msra.mxu0 0.0
  %343 = vmatprep.subr.mxu0 0.0
  %344 = vmatpush1.msra.mxu0 0.0
  %345 = vmatprep.subr.mxu0 0.0
  %346 = vmatpush1.msra.mxu0 0.0
  %347 = vmatprep.subr.mxu0 0.0
  %348 = vmatpush1.msra.mxu0 0.0
  %349 = vmatprep.subr.mxu0 0.0
  %350 = vmatpush1.msra.mxu0 0.0
  %351 = vmatprep.subr.mxu0 0.0
  %352 = vmatpush1.msra.mxu0 0.0
  %353 = vmatprep.subr.mxu0 0.0
  %354 = vmatpush1.msra.mxu0 0.0
  %355 = vmatprep.subr.mxu0 0.0
  %356 = vmatpush1.msra.mxu0 0.0
  %357 = vmatprep.subr.mxu0 0.0
  %358 = vmatpush1.msra.mxu0 0.0
  %359 = vmatprep.subr.mxu0 0.0
  %360 = vmatpush1.msra.mxu0 0.0
  %361 = vmatprep.subr.mxu0 0.0
  %362 = vmatpush1.msra.mxu0 0.0
  %363 = vmatprep.subr.mxu0 0.0
  %364 = vmatpush1.msra.mxu0 0.0
  %365 = vmatprep.subr.mxu0 0.0
  %366 = vmatpush1.msra.mxu0 0.0
  %367 = vmatprep.subr.mxu0 0.0
  %368 = vmatpush1.msra.mxu0 0.0
  %369 = vmatprep.subr.mxu0 0.0
  %370 = vmatpush1.msra.mxu0 0.0
  %371 = vmatprep.subr.mxu0 0.0
  %372 = vmatpush1.msra.mxu0 0.0
  %373 = vmatprep.subr.mxu0 0.0
  %374 = vmatpush1.msra.mxu0 0.0
  %375 = vmatprep.subr.mxu0 0.0
  %376 = vmatpush1.msra.mxu0 0.0
  %377 = vmatprep.subr.mxu0 0.0
  %378 = vmatpush1.msra.mxu0 0.0
  %379 = vmatprep.subr.mxu0 0.0
  %380 = vmatpush1.msra.mxu0 0.0
  %381 = vmatprep.subr.mxu0 0.0
  %382 = vmatpush1.msra.mxu0 0.0
  %383 = vmatprep.subr.mxu0 0.0
  %384 = vmatpush1.msra.mxu0 0.0
  %385 = vmatprep.subr.mxu0 0.0
  %386 = vmatpush1.msra.mxu0 0.0
  %387 = vmatprep.subr.mxu0 0.0
  %388 = vmatpush1.msra.mxu0 0.0
  %389 = vmatprep.subr.mxu0 0.0
  %390 = vmatpush1.msra.mxu0 0.0
  %391 = vmatprep.subr.mxu0 0.0
  %392 = vmatpush1.msra.mxu0 0.0
  %393 = vmatprep.subr.mxu0 0.0
  %394 = vmatpush1.msra.mxu0 0.0
  %395 = vmatprep.subr.mxu0 0.0
  %396 = vmatpush1.msra.mxu0 0.0
  %397 = vmatprep.mubr.f32.mxu0 0.0
  %398 = vmatmul.mubr.f32.gmra.mrb[0].mxu0 %v187
  %v399 = vpop.f32.mrb[0].mxu0
  %v400 = vadd.f32 %v91, %v399
  %v401 = vpop.f32.mrb[0].mxu0
  %v402 = vadd.f32 %v95, %v401
  %403 = vmatprep.mubr.f32.mxu0 0.0
  %404 = vmatmul.mubr.f32.gmra.mrb[0].mxu0 %v190
  %v405 = vpop.f32.mrb[0].mxu0
  %v406 = vadd.f32 %v91, %v405
  %v407 = vpop.f32.mrb[0].mxu0
  %v408 = vadd.f32 %v95, %v407
  %409 = vdwg.mxu0
  %410 = vmatprep.subr.mxu0 %v37
  %411 = vmatpush1.msra.mxu0 %v36
  %412 = vmatprep.subr.mxu0 %v209
  %413 = vmatpush1.msra.mxu0 %v206
  %414 = vmatprep.subr.mxu0 0.0
  %415 = vmatpush1.msra.mxu0 0.0
  %416 = vmatprep.subr.mxu0 0.0
  %417 = vmatpush1.msra.mxu0 0.0
  %418 = vmatprep.subr.mxu0 0.0
  %419 = vmatpush1.msra.mxu0 0.0
  %420 = vmatprep.subr.mxu0 0.0
  %421 = vmatpush1.msra.mxu0 0.0
  %422 = vmatprep.subr.mxu0 0.0
  %423 = vmatpush1.msra.mxu0 0.0
  %424 = vmatprep.subr.mxu0 0.0
  %425 = vmatpush1.msra.mxu0 0.0
  %426 = vmatprep.subr.mxu0 0.0
  %427 = vmatpush1.msra.mxu0 0.0
  %428 = vmatprep.subr.mxu0 0.0
  %429 = vmatpush1.msra.mxu0 0.0
  %430 = vmatprep.subr.mxu0 0.0
  %431 = vmatpush1.msra.mxu0 0.0
  %432 = vmatprep.subr.mxu0 0.0
  %433 = vmatpush1.msra.mxu0 0.0
  %434 = vmatprep.subr.mxu0 0.0
  %435 = vmatpush1.msra.mxu0 0.0
  %436 = vmatprep.subr.mxu0 0.0
  %437 = vmatpush1.msra.mxu0 0.0
  %438 = vmatprep.subr.mxu0 0.0
  %439 = vmatpush1.msra.mxu0 0.0
  %440 = vmatprep.subr.mxu0 0.0
  %441 = vmatpush1.msra.mxu0 0.0
  %442 = vmatprep.subr.mxu0 0.0
  %443 = vmatpush1.msra.mxu0 0.0
  %444 = vmatprep.subr.mxu0 0.0
  %445 = vmatpush1.msra.mxu0 0.0
  %446 = vmatprep.subr.mxu0 0.0
  %447 = vmatpush1.msra.mxu0 0.0
  %448 = vmatprep.subr.mxu0 0.0
  %449 = vmatpush1.msra.mxu0 0.0
  %450 = vmatprep.subr.mxu0 0.0
  %451 = vmatpush1.msra.mxu0 0.0
  %452 = vmatprep.subr.mxu0 0.0
  %453 = vmatpush1.msra.mxu0 0.0
  %454 = vmatprep.subr.mxu0 0.0
  %455 = vmatpush1.msra.mxu0 0.0
  %456 = vmatprep.subr.mxu0 0.0
  %457 = vmatpush1.msra.mxu0 0.0
  %458 = vmatprep.subr.mxu0 0.0
  %459 = vmatpush1.msra.mxu0 0.0
  %460 = vmatprep.subr.mxu0 0.0
  %461 = vmatpush1.msra.mxu0 0.0
  %462 = vmatprep.subr.mxu0 0.0
  %463 = vmatpush1.msra.mxu0 0.0
  %464 = vmatprep.subr.mxu0 0.0
  %465 = vmatpush1.msra.mxu0 0.0
  %466 = vmatprep.subr.mxu0 0.0
  %467 = vmatpush1.msra.mxu0 0.0
  %468 = vmatprep.subr.mxu0 0.0
  %469 = vmatpush1.msra.mxu0 0.0
  %470 = vmatprep.subr.mxu0 0.0
  %471 = vmatpush1.msra.mxu0 0.0
  %472 = vmatprep.subr.mxu0 0.0
  %473 = vmatpush1.msra.mxu0 0.0
  %474 = vmatprep.mubr.f32.mxu0 0.0
  %475 = vmatmul.mubr.f32.gmra.mrb[0].mxu0 %v187
  %v476 = vpop.f32.mrb[0].mxu0
  %v477 = vadd.f32 %v99, %v476
  %v478 = vpop.f32.mrb[0].mxu0
  %v479 = vadd.f32 %v103, %v478
  %480 = vmatprep.mubr.f32.mxu0 0.0
  %481 = vmatmul.mubr.f32.gmra.mrb[0].mxu0 %v190
  %v482 = vpop.f32.mrb[0].mxu0
  %v483 = vadd.f32 %v99, %v482
  %v484 = vpop.f32.mrb[0].mxu0
  %v485 = vadd.f32 %v103, %v484
  %486 = vdwg.mxu0
  %487 = vmatprep.subr.mxu0 %v39
  %488 = vmatpush1.msra.mxu0 %v38
  %489 = vmatprep.subr.mxu0 %v215
  %490 = vmatpush1.msra.mxu0 %v212
  %491 = vmatprep.subr.mxu0 0.0
  %492 = vmatpush1.msra.mxu0 0.0
  %493 = vmatprep.subr.mxu0 0.0
  %494 = vmatpush1.msra.mxu0 0.0
  %495 = vmatprep.subr.mxu0 0.0
  %496 = vmatpush1.msra.mxu0 0.0
  %497 = vmatprep.subr.mxu0 0.0
  %498 = vmatpush1.msra.mxu0 0.0
  %499 = vmatprep.subr.mxu0 0.0
  %500 = vmatpush1.msra.mxu0 0.0
  %501 = vmatprep.subr.mxu0 0.0
  %502 = vmatpush1.msra.mxu0 0.0
  %503 = vmatprep.subr.mxu0 0.0
  %504 = vmatpush1.msra.mxu0 0.0
  %505 = vmatprep.subr.mxu0 0.0
  %506 = vmatpush1.msra.mxu0 0.0
  %507 = vmatprep.subr.mxu0 0.0
  %508 = vmatpush1.msra.mxu0 0.0
  %509 = vmatprep.subr.mxu0 0.0
  %510 = vmatpush1.msra.mxu0 0.0
  %511 = vmatprep.subr.mxu0 0.0
  %512 = vmatpush1.msra.mxu0 0.0
  %513 = vmatprep.subr.mxu0 0.0
  %514 = vmatpush1.msra.mxu0 0.0
  %515 = vmatprep.subr.mxu0 0.0
  %516 = vmatpush1.msra.mxu0 0.0
  %517 = vmatprep.subr.mxu0 0.0
  %518 = vmatpush1.msra.mxu0 0.0
  %519 = vmatprep.subr.mxu0 0.0
  %520 = vmatpush1.msra.mxu0 0.0
  %521 = vmatprep.subr.mxu0 0.0
  %522 = vmatpush1.msra.mxu0 0.0
  %523 = vmatprep.subr.mxu0 0.0
  %524 = vmatpush1.msra.mxu0 0.0
  %525 = vmatprep.subr.mxu0 0.0
  %526 = vmatpush1.msra.mxu0 0.0
  %527 = vmatprep.subr.mxu0 0.0
  %528 = vmatpush1.msra.mxu0 0.0
  %529 = vmatprep.subr.mxu0 0.0
  %530 = vmatpush1.msra.mxu0 0.0
  %531 = vmatprep.subr.mxu0 0.0
  %532 = vmatpush1.msra.mxu0 0.0
  %533 = vmatprep.subr.mxu0 0.0
  %534 = vmatpush1.msra.mxu0 0.0
  %535 = vmatprep.subr.mxu0 0.0
  %536 = vmatpush1.msra.mxu0 0.0
  %537 = vmatprep.subr.mxu0 0.0
  %538 = vmatpush1.msra.mxu0 0.0
  %539 = vmatprep.subr.mxu0 0.0
  %540 = vmatpush1.msra.mxu0 0.0
  %541 = vmatprep.subr.mxu0 0.0
  %542 = vmatpush1.msra.mxu0 0.0
  %543 = vmatprep.subr.mxu0 0.0
  %544 = vmatpush1.msra.mxu0 0.0
  %545 = vmatprep.subr.mxu0 0.0
  %546 = vmatpush1.msra.mxu0 0.0
  %547 = vmatprep.subr.mxu0 0.0
  %548 = vmatpush1.msra.mxu0 0.0
  %549 = vmatprep.subr.mxu0 0.0
  %550 = vmatpush1.msra.mxu0 0.0
  %551 = vmatprep.mubr.f32.mxu0 0.0
  %552 = vmatmul.mubr.f32.gmra.mrb[0].mxu0 %v187
  %v553 = vpop.f32.mrb[0].mxu0
  %v554 = vadd.f32 %v107, %v553
  %v555 = vpop.f32.mrb[0].mxu0
  %v556 = vadd.f32 %v111, %v555
  %557 = vmatprep.mubr.f32.mxu0 0.0
  %558 = vmatmul.mubr.f32.gmra.mrb[0].mxu0 %v190
  %v559 = vpop.f32.mrb[0].mxu0
  %v560 = vadd.f32 %v107, %v559
  %v561 = vpop.f32.mrb[0].mxu0
  %v562 = vadd.f32 %v111, %v561
  %563 = vdwg.mxu0
  %564 = vmatprep.subr.mxu0 %v41
  %565 = vmatpush1.msra.mxu0 %v40
  %566 = vmatprep.subr.mxu0 %v221
  %567 = vmatpush1.msra.mxu0 %v218
  %568 = vmatprep.subr.mxu0 0.0
  %569 = vmatpush1.msra.mxu0 0.0
  %570 = vmatprep.subr.mxu0 0.0
  %571 = vmatpush1.msra.mxu0 0.0
  %572 = vmatprep.subr.mxu0 0.0
  %573 = vmatpush1.msra.mxu0 0.0
  %574 = vmatprep.subr.mxu0 0.0
  %575 = vmatpush1.msra.mxu0 0.0
  %576 = vmatprep.subr.mxu0 0.0
  %577 = vmatpush1.msra.mxu0 0.0
  %578 = vmatprep.subr.mxu0 0.0
  %579 = vmatpush1.msra.mxu0 0.0
  %580 = vmatprep.subr.mxu0 0.0
  %581 = vmatpush1.msra.mxu0 0.0
  %582 = vmatprep.subr.mxu0 0.0
  %583 = vmatpush1.msra.mxu0 0.0
  %584 = vmatprep.subr.mxu0 0.0
  %585 = vmatpush1.msra.mxu0 0.0
  %586 = vmatprep.subr.mxu0 0.0
  %587 = vmatpush1.msra.mxu0 0.0
  %588 = vmatprep.subr.mxu0 0.0
  %589 = vmatpush1.msra.mxu0 0.0
  %590 = vmatprep.subr.mxu0 0.0
  %591 = vmatpush1.msra.mxu0 0.0
  %592 = vmatprep.subr.mxu0 0.0
  %593 = vmatpush1.msra.mxu0 0.0
  %594 = vmatprep.subr.mxu0 0.0
  %595 = vmatpush1.msra.mxu0 0.0
  %596 = vmatprep.subr.mxu0 0.0
  %597 = vmatpush1.msra.mxu0 0.0
  %598 = vmatprep.subr.mxu0 0.0
  %599 = vmatpush1.msra.mxu0 0.0
  %600 = vmatprep.subr.mxu0 0.0
  %601 = vmatpush1.msra.mxu0 0.0
  %602 = vmatprep.subr.mxu0 0.0
  %603 = vmatpush1.msra.mxu0 0.0
  %604 = vmatprep.subr.mxu0 0.0
  %605 = vmatpush1.msra.mxu0 0.0
  %606 = vmatprep.subr.mxu0 0.0
  %607 = vmatpush1.msra.mxu0 0.0
  %608 = vmatprep.subr.mxu0 0.0
  %609 = vmatpush1.msra.mxu0 0.0
  %610 = vmatprep.subr.mxu0 0.0
  %611 = vmatpush1.msra.mxu0 0.0
  %612 = vmatprep.subr.mxu0 0.0
  %613 = vmatpush1.msra.mxu0 0.0
  %614 = vmatprep.subr.mxu0 0.0
  %615 = vmatpush1.msra.mxu0 0.0
  %616 = vmatprep.subr.mxu0 0.0
  %617 = vmatpush1.msra.mxu0 0.0
  %618 = vmatprep.subr.mxu0 0.0
  %619 = vmatpush1.msra.mxu0 0.0
  %620 = vmatprep.subr.mxu0 0.0
  %621 = vmatpush1.msra.mxu0 0.0
  %622 = vmatprep.subr.mxu0 0.0
  %623 = vmatpush1.msra.mxu0 0.0
  %624 = vmatprep.subr.mxu0 0.0
  %625 = vmatpush1.msra.mxu0 0.0
  %626 = vmatprep.subr.mxu0 0.0
  %627 = vmatpush1.msra.mxu0 0.0
  %628 = vmatprep.mubr.f32.mxu0 0.0
  %629 = vmatmul.mubr.f32.gmra.mrb[0].mxu0 %v187
  %v630 = vpop.f32.mrb[0].mxu0
  %v631 = vadd.f32 %v115, %v630
  %v632 = vpop.f32.mrb[0].mxu0
  %v633 = vadd.f32 %v119, %v632
  %634 = vmatprep.mubr.f32.mxu0 0.0
  %635 = vmatmul.mubr.f32.gmra.mrb[0].mxu0 %v190
  %v636 = vpop.f32.mrb[0].mxu0
  %v637 = vadd.f32 %v115, %v636
  %v638 = vpop.f32.mrb[0].mxu0
  %v639 = vadd.f32 %v119, %v638
  %640 = vdwg.mxu0
  %641 = vmatprep.subr.mxu0 %v43
  %642 = vmatpush1.msra.mxu0 %v42
  %643 = vmatprep.subr.mxu0 %v227
  %644 = vmatpush1.msra.mxu0 %v224
  %645 = vmatprep.subr.mxu0 0.0
  %646 = vmatpush1.msra.mxu0 0.0
  %647 = vmatprep.subr.mxu0 0.0
  %648 = vmatpush1.msra.mxu0 0.0
  %649 = vmatprep.subr.mxu0 0.0
  %650 = vmatpush1.msra.mxu0 0.0
  %651 = vmatprep.subr.mxu0 0.0
  %652 = vmatpush1.msra.mxu0 0.0
  %653 = vmatprep.subr.mxu0 0.0
  %654 = vmatpush1.msra.mxu0 0.0
  %655 = vmatprep.subr.mxu0 0.0
  %656 = vmatpush1.msra.mxu0 0.0
  %657 = vmatprep.subr.mxu0 0.0
  %658 = vmatpush1.msra.mxu0 0.0
  %659 = vmatprep.subr.mxu0 0.0
  %660 = vmatpush1.msra.mxu0 0.0
  %661 = vmatprep.subr.mxu0 0.0
  %662 = vmatpush1.msra.mxu0 0.0
  %663 = vmatprep.subr.mxu0 0.0
  %664 = vmatpush1.msra.mxu0 0.0
  %665 = vmatprep.subr.mxu0 0.0
  %666 = vmatpush1.msra.mxu0 0.0
  %667 = vmatprep.subr.mxu0 0.0
  %668 = vmatpush1.msra.mxu0 0.0
  %669 = vmatprep.subr.mxu0 0.0
  %670 = vmatpush1.msra.mxu0 0.0
  %671 = vmatprep.subr.mxu0 0.0
  %672 = vmatpush1.msra.mxu0 0.0
  %673 = vmatprep.subr.mxu0 0.0
  %674 = vmatpush1.msra.mxu0 0.0
  %675 = vmatprep.subr.mxu0 0.0
  %676 = vmatpush1.msra.mxu0 0.0
  %677 = vmatprep.subr.mxu0 0.0
  %678 = vmatpush1.msra.mxu0 0.0
  %679 = vmatprep.subr.mxu0 0.0
  %680 = vmatpush1.msra.mxu0 0.0
  %681 = vmatprep.subr.mxu0 0.0
  %682 = vmatpush1.msra.mxu0 0.0
  %683 = vmatprep.subr.mxu0 0.0
  %684 = vmatpush1.msra.mxu0 0.0
  %685 = vmatprep.subr.mxu0 0.0
  %686 = vmatpush1.msra.mxu0 0.0
  %687 = vmatprep.subr.mxu0 0.0
  %688 = vmatpush1.msra.mxu0 0.0
  %689 = vmatprep.subr.mxu0 0.0
  %690 = vmatpush1.msra.mxu0 0.0
  %691 = vmatprep.subr.mxu0 0.0
  %692 = vmatpush1.msra.mxu0 0.0
  %693 = vmatprep.subr.mxu0 0.0
  %694 = vmatpush1.msra.mxu0 0.0
  %695 = vmatprep.subr.mxu0 0.0
  %696 = vmatpush1.msra.mxu0 0.0
  %697 = vmatprep.subr.mxu0 0.0
  %698 = vmatpush1.msra.mxu0 0.0
  %699 = vmatprep.subr.mxu0 0.0
  %700 = vmatpush1.msra.mxu0 0.0
  %701 = vmatprep.subr.mxu0 0.0
  %702 = vmatpush1.msra.mxu0 0.0
  %703 = vmatprep.subr.mxu0 0.0
  %704 = vmatpush1.msra.mxu0 0.0
  %705 = vmatprep.mubr.f32.mxu0 0.0
  %706 = vmatmul.mubr.f32.gmra.mrb[0].mxu0 %v187
  %v707 = vpop.f32.mrb[0].mxu0
  %v708 = vadd.f32 %v123, %v707
  %v709 = vpop.f32.mrb[0].mxu0
  %v710 = vadd.f32 %v127, %v709
  %711 = vmatprep.mubr.f32.mxu0 0.0
  %712 = vmatmul.mubr.f32.gmra.mrb[0].mxu0 %v190
  %v713 = vpop.f32.mrb[0].mxu0
  %v714 = vadd.f32 %v123, %v713
  %v715 = vpop.f32.mrb[0].mxu0
  %v716 = vadd.f32 %v127, %v715
  %717 = vdwg.mxu0
  %718 = vmatprep.subr.mxu0 %v45
  %719 = vmatpush1.msra.mxu0 %v44
  %720 = vmatprep.subr.mxu0 %v233
  %721 = vmatpush1.msra.mxu0 %v230
  %722 = vmatprep.subr.mxu0 0.0
  %723 = vmatpush1.msra.mxu0 0.0
  %724 = vmatprep.subr.mxu0 0.0
  %725 = vmatpush1.msra.mxu0 0.0
  %726 = vmatprep.subr.mxu0 0.0
  %727 = vmatpush1.msra.mxu0 0.0
  %728 = vmatprep.subr.mxu0 0.0
  %729 = vmatpush1.msra.mxu0 0.0
  %730 = vmatprep.subr.mxu0 0.0
  %731 = vmatpush1.msra.mxu0 0.0
  %732 = vmatprep.subr.mxu0 0.0
  %733 = vmatpush1.msra.mxu0 0.0
  %734 = vmatprep.subr.mxu0 0.0
  %735 = vmatpush1.msra.mxu0 0.0
  %736 = vmatprep.subr.mxu0 0.0
  %737 = vmatpush1.msra.mxu0 0.0
  %738 = vmatprep.subr.mxu0 0.0
  %739 = vmatpush1.msra.mxu0 0.0
  %740 = vmatprep.subr.mxu0 0.0
  %741 = vmatpush1.msra.mxu0 0.0
  %742 = vmatprep.subr.mxu0 0.0
  %743 = vmatpush1.msra.mxu0 0.0
  %744 = vmatprep.subr.mxu0 0.0
  %745 = vmatpush1.msra.mxu0 0.0
  %746 = vmatprep.subr.mxu0 0.0
  %747 = vmatpush1.msra.mxu0 0.0
  %748 = vmatprep.subr.mxu0 0.0
  %749 = vmatpush1.msra.mxu0 0.0
  %750 = vmatprep.subr.mxu0 0.0
  %751 = vmatpush1.msra.mxu0 0.0
  %752 = vmatprep.subr.mxu0 0.0
  %753 = vmatpush1.msra.mxu0 0.0
  %754 = vmatprep.subr.mxu0 0.0
  %755 = vmatpush1.msra.mxu0 0.0
  %756 = vmatprep.subr.mxu0 0.0
  %757 = vmatpush1.msra.mxu0 0.0
  %758 = vmatprep.subr.mxu0 0.0
  %759 = vmatpush1.msra.mxu0 0.0
  %760 = vmatprep.subr.mxu0 0.0
  %761 = vmatpush1.msra.mxu0 0.0
  %762 = vmatprep.subr.mxu0 0.0
  %763 = vmatpush1.msra.mxu0 0.0
  %764 = vmatprep.subr.mxu0 0.0
  %765 = vmatpush1.msra.mxu0 0.0
  %766 = vmatprep.subr.mxu0 0.0
  %767 = vmatpush1.msra.mxu0 0.0
  %768 = vmatprep.subr.mxu0 0.0
  %769 = vmatpush1.msra.mxu0 0.0
  %770 = vmatprep.subr.mxu0 0.0
  %771 = vmatpush1.msra.mxu0 0.0
  %772 = vmatprep.subr.mxu0 0.0
  %773 = vmatpush1.msra.mxu0 0.0
  %774 = vmatprep.subr.mxu0 0.0
  %775 = vmatpush1.msra.mxu0 0.0
  %776 = vmatprep.subr.mxu0 0.0
  %777 = vmatpush1.msra.mxu0 0.0
  %778 = vmatprep.subr.mxu0 0.0
  %779 = vmatpush1.msra.mxu0 0.0
  %780 = vmatprep.subr.mxu0 0.0
  %781 = vmatpush1.msra.mxu0 0.0
  %782 = vmatprep.mubr.f32.mxu0 0.0
  %783 = vmatmul.mubr.f32.gmra.mrb[0].mxu0 %v187
  %v784 = vpop.f32.mrb[0].mxu0
  %v785 = vadd.f32 %v131, %v784
  %v786 = vpop.f32.mrb[0].mxu0
  %v787 = vadd.f32 %v135, %v786
  %788 = vmatprep.mubr.f32.mxu0 0.0
  %789 = vmatmul.mubr.f32.gmra.mrb[0].mxu0 %v190
  %v790 = vpop.f32.mrb[0].mxu0
  %v791 = vadd.f32 %v131, %v790
  %v792 = vpop.f32.mrb[0].mxu0
  %v793 = vadd.f32 %v135, %v792
  %794 = vdwg.mxu0
  %795 = vmatprep.subr.mxu0 %v47
  %796 = vmatpush1.msra.mxu0 %v46
  %797 = vmatprep.subr.mxu0 %v239
  %798 = vmatpush1.msra.mxu0 %v236
  %799 = vmatprep.subr.mxu0 0.0
  %800 = vmatpush1.msra.mxu0 0.0
  %801 = vmatprep.subr.mxu0 0.0
  %802 = vmatpush1.msra.mxu0 0.0
  %803 = vmatprep.subr.mxu0 0.0
  %804 = vmatpush1.msra.mxu0 0.0
  %805 = vmatprep.subr.mxu0 0.0
  %806 = vmatpush1.msra.mxu0 0.0
  %807 = vmatprep.subr.mxu0 0.0
  %808 = vmatpush1.msra.mxu0 0.0
  %809 = vmatprep.subr.mxu0 0.0
  %810 = vmatpush1.msra.mxu0 0.0
  %811 = vmatprep.subr.mxu0 0.0
  %812 = vmatpush1.msra.mxu0 0.0
  %813 = vmatprep.subr.mxu0 0.0
  %814 = vmatpush1.msra.mxu0 0.0
  %815 = vmatprep.subr.mxu0 0.0
  %816 = vmatpush1.msra.mxu0 0.0
  %817 = vmatprep.subr.mxu0 0.0
  %818 = vmatpush1.msra.mxu0 0.0
  %819 = vmatprep.subr.mxu0 0.0
  %820 = vmatpush1.msra.mxu0 0.0
  %821 = vmatprep.subr.mxu0 0.0
  %822 = vmatpush1.msra.mxu0 0.0
  %823 = vmatprep.subr.mxu0 0.0
  %824 = vmatpush1.msra.mxu0 0.0
  %825 = vmatprep.subr.mxu0 0.0
  %826 = vmatpush1.msra.mxu0 0.0
  %827 = vmatprep.subr.mxu0 0.0
  %828 = vmatpush1.msra.mxu0 0.0
  %829 = vmatprep.subr.mxu0 0.0
  %830 = vmatpush1.msra.mxu0 0.0
  %831 = vmatprep.subr.mxu0 0.0
  %832 = vmatpush1.msra.mxu0 0.0
  %833 = vmatprep.subr.mxu0 0.0
  %834 = vmatpush1.msra.mxu0 0.0
  %835 = vmatprep.subr.mxu0 0.0
  %836 = vmatpush1.msra.mxu0 0.0
  %837 = vmatprep.subr.mxu0 0.0
  %838 = vmatpush1.msra.mxu0 0.0
  %839 = vmatprep.subr.mxu0 0.0
  %840 = vmatpush1.msra.mxu0 0.0
  %841 = vmatprep.subr.mxu0 0.0
  %842 = vmatpush1.msra.mxu0 0.0
  %843 = vmatprep.subr.mxu0 0.0
  %844 = vmatpush1.msra.mxu0 0.0
  %845 = vmatprep.subr.mxu0 0.0
  %846 = vmatpush1.msra.mxu0 0.0
  %847 = vmatprep.subr.mxu0 0.0
  %848 = vmatpush1.msra.mxu0 0.0
  %849 = vmatprep.subr.mxu0 0.0
  %850 = vmatpush1.msra.mxu0 0.0
  %851 = vmatprep.subr.mxu0 0.0
  %852 = vmatpush1.msra.mxu0 0.0
  %853 = vmatprep.subr.mxu0 0.0
  %854 = vmatpush1.msra.mxu0 0.0
  %855 = vmatprep.subr.mxu0 0.0
  %856 = vmatpush1.msra.mxu0 0.0
  %857 = vmatprep.subr.mxu0 0.0
  %858 = vmatpush1.msra.mxu0 0.0
  %859 = vmatprep.mubr.f32.mxu0 0.0
  %860 = vmatmul.mubr.f32.gmra.mrb[0].mxu0 %v187
  %v861 = vpop.f32.mrb[0].mxu0
  %v862 = vadd.f32 %v139, %v861
  %v863 = vpop.f32.mrb[0].mxu0
  %v864 = vadd.f32 %v143, %v863
  %865 = vmatprep.mubr.f32.mxu0 0.0
  %866 = vmatmul.mubr.f32.gmra.mrb[0].mxu0 %v190
  %v867 = vpop.f32.mrb[0].mxu0
  %v868 = vadd.f32 %v139, %v867
  %v869 = vpop.f32.mrb[0].mxu0
  %v870 = vadd.f32 %v143, %v869
  %871 = vdwg.mxu0
  %872 = vmatprep.subr.mxu0 %v49
  %873 = vmatpush1.msra.mxu0 %v48
  %874 = vmatprep.subr.mxu0 %v245
  %875 = vmatpush1.msra.mxu0 %v242
  %876 = vmatprep.subr.mxu0 0.0
  %877 = vmatpush1.msra.mxu0 0.0
  %878 = vmatprep.subr.mxu0 0.0
  %879 = vmatpush1.msra.mxu0 0.0
  %880 = vmatprep.subr.mxu0 0.0
  %881 = vmatpush1.msra.mxu0 0.0
  %882 = vmatprep.subr.mxu0 0.0
  %883 = vmatpush1.msra.mxu0 0.0
  %884 = vmatprep.subr.mxu0 0.0
  %885 = vmatpush1.msra.mxu0 0.0
  %886 = vmatprep.subr.mxu0 0.0
  %887 = vmatpush1.msra.mxu0 0.0
  %888 = vmatprep.subr.mxu0 0.0
  %889 = vmatpush1.msra.mxu0 0.0
  %890 = vmatprep.subr.mxu0 0.0
  %891 = vmatpush1.msra.mxu0 0.0
  %892 = vmatprep.subr.mxu0 0.0
  %893 = vmatpush1.msra.mxu0 0.0
  %894 = vmatprep.subr.mxu0 0.0
  %895 = vmatpush1.msra.mxu0 0.0
  %896 = vmatprep.subr.mxu0 0.0
  %897 = vmatpush1.msra.mxu0 0.0
  %898 = vmatprep.subr.mxu0 0.0
  %899 = vmatpush1.msra.mxu0 0.0
  %900 = vmatprep.subr.mxu0 0.0
  %901 = vmatpush1.msra.mxu0 0.0
  %902 = vmatprep.subr.mxu0 0.0
  %903 = vmatpush1.msra.mxu0 0.0
  %904 = vmatprep.subr.mxu0 0.0
  %905 = vmatpush1.msra.mxu0 0.0
  %906 = vmatprep.subr.mxu0 0.0
  %907 = vmatpush1.msra.mxu0 0.0
  %908 = vmatprep.subr.mxu0 0.0
  %909 = vmatpush1.msra.mxu0 0.0
  %910 = vmatprep.subr.mxu0 0.0
  %911 = vmatpush1.msra.mxu0 0.0
  %912 = vmatprep.subr.mxu0 0.0
  %913 = vmatpush1.msra.mxu0 0.0
  %914 = vmatprep.subr.mxu0 0.0
  %915 = vmatpush1.msra.mxu0 0.0
  %916 = vmatprep.subr.mxu0 0.0
  %917 = vmatpush1.msra.mxu0 0.0
  %918 = vmatprep.subr.mxu0 0.0
  %919 = vmatpush1.msra.mxu0 0.0
  %920 = vmatprep.subr.mxu0 0.0
  %921 = vmatpush1.msra.mxu0 0.0
  %922 = vmatprep.subr.mxu0 0.0
  %923 = vmatpush1.msra.mxu0 0.0
  %924 = vmatprep.subr.mxu0 0.0
  %925 = vmatpush1.msra.mxu0 0.0
  %926 = vmatprep.subr.mxu0 0.0
  %927 = vmatpush1.msra.mxu0 0.0
  %928 = vmatprep.subr.mxu0 0.0
  %929 = vmatpush1.msra.mxu0 0.0
  %930 = vmatprep.subr.mxu0 0.0
  %931 = vmatpush1.msra.mxu0 0.0
  %932 = vmatprep.subr.mxu0 0.0
  %933 = vmatpush1.msra.mxu0 0.0
  %934 = vmatprep.subr.mxu0 0.0
  %935 = vmatpush1.msra.mxu0 0.0
  %936 = vmatprep.mubr.f32.mxu0 0.0
  %937 = vmatmul.mubr.f32.gmra.mrb[0].mxu0 %v187
  %v938 = vpop.f32.mrb[0].mxu0
  %v939 = vadd.f32 %v147, %v938
  %v940 = vpop.f32.mrb[0].mxu0
  %v941 = vadd.f32 %v151, %v940
  %942 = vmatprep.mubr.f32.mxu0 0.0
  %943 = vmatmul.mubr.f32.gmra.mrb[0].mxu0 %v190
  %v944 = vpop.f32.mrb[0].mxu0
  %v945 = vadd.f32 %v147, %v944
  %v946 = vpop.f32.mrb[0].mxu0
  %v947 = vadd.f32 %v151, %v946
  %948 = vdwg.mxu0
  %949 = vmatprep.subr.mxu0 %v51
  %950 = vmatpush1.msra.mxu0 %v50
  %951 = vmatprep.subr.mxu0 %v251
  %952 = vmatpush1.msra.mxu0 %v248
  %953 = vmatprep.subr.mxu0 0.0
  %954 = vmatpush1.msra.mxu0 0.0
  %955 = vmatprep.subr.mxu0 0.0
  %956 = vmatpush1.msra.mxu0 0.0
  %957 = vmatprep.subr.mxu0 0.0
  %958 = vmatpush1.msra.mxu0 0.0
  %959 = vmatprep.subr.mxu0 0.0
  %960 = vmatpush1.msra.mxu0 0.0
  %961 = vmatprep.subr.mxu0 0.0
  %962 = vmatpush1.msra.mxu0 0.0
  %963 = vmatprep.subr.mxu0 0.0
  %964 = vmatpush1.msra.mxu0 0.0
  %965 = vmatprep.subr.mxu0 0.0
  %966 = vmatpush1.msra.mxu0 0.0
  %967 = vmatprep.subr.mxu0 0.0
  %968 = vmatpush1.msra.mxu0 0.0
  %969 = vmatprep.subr.mxu0 0.0
  %970 = vmatpush1.msra.mxu0 0.0
  %971 = vmatprep.subr.mxu0 0.0
  %972 = vmatpush1.msra.mxu0 0.0
  %973 = vmatprep.subr.mxu0 0.0
  %974 = vmatpush1.msra.mxu0 0.0
  %975 = vmatprep.subr.mxu0 0.0
  %976 = vmatpush1.msra.mxu0 0.0
  %977 = vmatprep.subr.mxu0 0.0
  %978 = vmatpush1.msra.mxu0 0.0
  %979 = vmatprep.subr.mxu0 0.0
  %980 = vmatpush1.msra.mxu0 0.0
  %981 = vmatprep.subr.mxu0 0.0
  %982 = vmatpush1.msra.mxu0 0.0
  %983 = vmatprep.subr.mxu0 0.0
  %984 = vmatpush1.msra.mxu0 0.0
  %985 = vmatprep.subr.mxu0 0.0
  %986 = vmatpush1.msra.mxu0 0.0
  %987 = vmatprep.subr.mxu0 0.0
  %988 = vmatpush1.msra.mxu0 0.0
  %989 = vmatprep.subr.mxu0 0.0
  %990 = vmatpush1.msra.mxu0 0.0
  %991 = vmatprep.subr.mxu0 0.0
  %992 = vmatpush1.msra.mxu0 0.0
  %993 = vmatprep.subr.mxu0 0.0
  %994 = vmatpush1.msra.mxu0 0.0
  %995 = vmatprep.subr.mxu0 0.0
  %996 = vmatpush1.msra.mxu0 0.0
  %997 = vmatprep.subr.mxu0 0.0
  %998 = vmatpush1.msra.mxu0 0.0
  %999 = vmatprep.subr.mxu0 0.0
  %1000 = vmatpush1.msra.mxu0 0.0
  %1001 = vmatprep.subr.mxu0 0.0
  %1002 = vmatpush1.msra.mxu0 0.0
  %1003 = vmatprep.subr.mxu0 0.0
  %1004 = vmatpush1.msra.mxu0 0.0
  %1005 = vmatprep.subr.mxu0 0.0
  %1006 = vmatpush1.msra.mxu0 0.0
  %1007 = vmatprep.subr.mxu0 0.0
  %1008 = vmatpush1.msra.mxu0 0.0
  %1009 = vmatprep.subr.mxu0 0.0
  %1010 = vmatpush1.msra.mxu0 0.0
  %1011 = vmatprep.subr.mxu0 0.0
  %1012 = vmatpush1.msra.mxu0 0.0
  %1013 = vmatprep.mubr.f32.mxu0 0.0
  %1014 = vmatmul.mubr.f32.gmra.mrb[0].mxu0 %v187
  %v1015 = vpop.f32.mrb[0].mxu0
  %v1016 = vadd.f32 %v155, %v1015
  %v1017 = vpop.f32.mrb[0].mxu0
  %v1018 = vadd.f32 %v159, %v1017
  %1019 = vmatprep.mubr.f32.mxu0 0.0
  %1020 = vmatmul.mubr.f32.gmra.mrb[0].mxu0 %v190
  %v1021 = vpop.f32.mrb[0].mxu0
  %v1022 = vadd.f32 %v155, %v1021
  %v1023 = vpop.f32.mrb[0].mxu0
  %v1024 = vadd.f32 %v159, %v1023
  %1025 = vdwg.mxu0
  %1026 = vmatprep.subr.mxu0 0.0
  %1027 = vmatpush1.msra.mxu0 %v52
  %1028 = vmatprep.subr.mxu0 0.0
  %1029 = vmatpush1.msra.mxu0 %v254
  %1030 = vmatprep.subr.mxu0 0.0
  %1031 = vmatpush1.msra.mxu0 0.0
  %1032 = vmatprep.subr.mxu0 0.0
  %1033 = vmatpush1.msra.mxu0 0.0
  %1034 = vmatprep.subr.mxu0 0.0
  %1035 = vmatpush1.msra.mxu0 0.0
  %1036 = vmatprep.subr.mxu0 0.0
  %1037 = vmatpush1.msra.mxu0 0.0
  %1038 = vmatprep.subr.mxu0 0.0
  %1039 = vmatpush1.msra.mxu0 0.0
  %1040 = vmatprep.subr.mxu0 0.0
  %1041 = vmatpush1.msra.mxu0 0.0
  %1042 = vmatprep.subr.mxu0 0.0
  %1043 = vmatpush1.msra.mxu0 0.0
  %1044 = vmatprep.subr.mxu0 0.0
  %1045 = vmatpush1.msra.mxu0 0.0
  %1046 = vmatprep.subr.mxu0 0.0
  %1047 = vmatpush1.msra.mxu0 0.0
  %1048 = vmatprep.subr.mxu0 0.0
  %1049 = vmatpush1.msra.mxu0 0.0
  %1050 = vmatprep.subr.mxu0 0.0
  %1051 = vmatpush1.msra.mxu0 0.0
  %1052 = vmatprep.subr.mxu0 0.0
  %1053 = vmatpush1.msra.mxu0 0.0
  %1054 = vmatprep.subr.mxu0 0.0
  %1055 = vmatpush1.msra.mxu0 0.0
  %1056 = vmatprep.subr.mxu0 0.0
  %1057 = vmatpush1.msra.mxu0 0.0
  %1058 = vmatprep.subr.mxu0 0.0
  %1059 = vmatpush1.msra.mxu0 0.0
  %1060 = vmatprep.subr.mxu0 0.0
  %1061 = vmatpush1.msra.mxu0 0.0
  %1062 = vmatprep.subr.mxu0 0.0
  %1063 = vmatpush1.msra.mxu0 0.0
  %1064 = vmatprep.subr.mxu0 0.0
  %1065 = vmatpush1.msra.mxu0 0.0
  %1066 = vmatprep.subr.mxu0 0.0
  %1067 = vmatpush1.msra.mxu0 0.0
  %1068 = vmatprep.subr.mxu0 0.0
  %1069 = vmatpush1.msra.mxu0 0.0
  %1070 = vmatprep.subr.mxu0 0.0
  %1071 = vmatpush1.msra.mxu0 0.0
  %1072 = vmatprep.subr.mxu0 0.0
  %1073 = vmatpush1.msra.mxu0 0.0
  %1074 = vmatprep.subr.mxu0 0.0
  %1075 = vmatpush1.msra.mxu0 0.0
  %1076 = vmatprep.subr.mxu0 0.0
  %1077 = vmatpush1.msra.mxu0 0.0
  %1078 = vmatprep.subr.mxu0 0.0
  %1079 = vmatpush1.msra.mxu0 0.0
  %1080 = vmatprep.subr.mxu0 0.0
  %1081 = vmatpush1.msra.mxu0 0.0
  %1082 = vmatprep.subr.mxu0 0.0
  %1083 = vmatpush1.msra.mxu0 0.0
  %1084 = vmatprep.subr.mxu0 0.0
  %1085 = vmatpush1.msra.mxu0 0.0
  %1086 = vmatprep.subr.mxu0 0.0
  %1087 = vmatpush1.msra.mxu0 0.0
  %1088 = vmatprep.subr.mxu0 0.0
  %1089 = vmatpush1.msra.mxu0 0.0
  %1090 = vmatprep.mubr.f32.mxu0 0.0
  %1091 = vmatmul.mubr.f32.gmra.mrb[0].mxu0 %v187
  %v1092 = vpop.f32.mrb[0].mxu0
  %v1093 = vadd.f32 %v163, %v1092
  %v1094 = vpop.f32.mrb[0].mxu0
  %1095 = vmatprep.mubr.f32.mxu0 0.0
  %1096 = vmatmul.mubr.f32.gmra.mrb[0].mxu0 %v190
  %v1097 = vpop.f32.mrb[0].mxu0
  %v1098 = vadd.f32 %v163, %v1097
  %v1099 = vpop.f32.mrb[0].mxu0
  %1100 = vdwg.mxu0
  %1102 = vset.pattern.permute.xlu0 0
  %1103 = vperm.xlu0 %1102, %v28
  %v1104 = vpop.permute.xlu0 %1103
  %1107 = vset.pattern.permute.xlu0 0
  %1108 = vperm.xlu0 %1107, %v29
  %v1109 = vpop.permute.xlu0 %1108
  %v1111 = vmul.f32 %v1104, %v323
  %v1112 = vmul.f32 %v1104, %v325
  %v1113 = vmul.f32 %v1104, %v400
  %v1114 = vmul.f32 %v1104, %v402
  %v1115 = vmul.f32 %v1104, %v477
  %v1116 = vmul.f32 %v1104, %v479
  %v1117 = vmul.f32 %v1104, %v554
  %v1118 = vmul.f32 %v1109, %v329
  %v1119 = vmul.f32 %v1109, %v331
  %v1120 = vmul.f32 %v1109, %v406
  %v1121 = vmul.f32 %v1109, %v408
  %v1122 = vmul.f32 %v1109, %v483
  %v1123 = vmul.f32 %v1109, %v485
  %v1124 = vmul.f32 %v1109, %v560
  %1125 = vset.pattern.permute.xlu0 1
  %1126 = vperm.xlu0 %1125, %v28
  %v1127 = vpop.permute.xlu0 %1126
  %1129 = vset.pattern.permute.xlu0 1
  %1130 = vperm.xlu0 %1129, %v29
  %v1131 = vpop.permute.xlu0 %1130
  %v1133 = vmul.f32 %v1127, %v556
  %v1134 = vmul.f32 %v1127, %v631
  %v1135 = vmul.f32 %v1127, %v633
  %v1136 = vmul.f32 %v1127, %v708
  %v1137 = vmul.f32 %v1127, %v710
  %v1138 = vmul.f32 %v1127, %v785
  %v1139 = vmul.f32 %v1127, %v787
  %v1140 = vmul.f32 %v1131, %v562
  %v1141 = vmul.f32 %v1131, %v637
  %v1142 = vmul.f32 %v1131, %v639
  %v1143 = vmul.f32 %v1131, %v714
  %v1144 = vmul.f32 %v1131, %v716
  %v1145 = vmul.f32 %v1131, %v791
  %v1146 = vmul.f32 %v1131, %v793
  %v1147 = vadd.f32 %v1111, %v1133
  %v1148 = vadd.f32 %v1112, %v1134
  %v1149 = vadd.f32 %v1113, %v1135
  %v1150 = vadd.f32 %v1114, %v1136
  %v1151 = vadd.f32 %v1115, %v1137
  %v1152 = vadd.f32 %v1116, %v1138
  %v1153 = vadd.f32 %v1117, %v1139
  %v1154 = vadd.f32 %v1118, %v1140
  %v1155 = vadd.f32 %v1119, %v1141
  %v1156 = vadd.f32 %v1120, %v1142
  %v1157 = vadd.f32 %v1121, %v1143
  %v1158 = vadd.f32 %v1122, %v1144
  %v1159 = vadd.f32 %v1123, %v1145
  %v1160 = vadd.f32 %v1124, %v1146
  %1161 = vset.pattern.permute.xlu0 2
  %1162 = vperm.xlu0 %1161, %v28
  %v1163 = vpop.permute.xlu0 %1162
  %1165 = vset.pattern.permute.xlu0 2
  %1166 = vperm.xlu0 %1165, %v29
  %v1167 = vpop.permute.xlu0 %1166
  %v1169 = vmul.f32 %v1163, %v862
  %v1170 = vmul.f32 %v1163, %v864
  %v1171 = vmul.f32 %v1163, %v939
  %v1172 = vmul.f32 %v1163, %v941
  %v1173 = vmul.f32 %v1163, %v1016
  %v1174 = vmul.f32 %v1163, %v1018
  %v1175 = vmul.f32 %v1163, %v1093
  %v1176 = vmul.f32 %v1167, %v868
  %v1177 = vmul.f32 %v1167, %v870
  %v1178 = vmul.f32 %v1167, %v945
  %v1179 = vmul.f32 %v1167, %v947
  %v1180 = vmul.f32 %v1167, %v1022
  %v1181 = vmul.f32 %v1167, %v1024
  %v1182 = vmul.f32 %v1167, %v1098
  %v1183 = vadd.f32 %v1147, %v1169
  %v1184 = vadd.f32 %v1148, %v1170
  %v1185 = vadd.f32 %v1149, %v1171
  %v1186 = vadd.f32 %v1150, %v1172
  %v1187 = vadd.f32 %v1151, %v1173
  %v1188 = vadd.f32 %v1152, %v1174
  %v1189 = vadd.f32 %v1153, %v1175
  %v1190 = vadd.f32 %v1154, %v1176
  %v1191 = vadd.f32 %v1155, %v1177
  %v1192 = vadd.f32 %v1156, %v1178
  %v1193 = vadd.f32 %v1157, %v1179
  %v1194 = vadd.f32 %v1158, %v1180
  %v1195 = vadd.f32 %v1159, %v1181
  %v1196 = vadd.f32 %v1160, %v1182
  %1197 = vst [vmem:[%s6] sm:$0xff] %v1183
  %1198 = vst [vmem:[%s6 + $0x8] sm:$0xff] %v1184
  %1199 = vst [vmem:[%s6 + $0x10] sm:$0xff] %v1185
  %1200 = vst [vmem:[%s6 + $0x18] sm:$0xff] %v1186
  %1201 = vst [vmem:[%s6 + $0x20] sm:$0xff] %v1187
  %1202 = vst [vmem:[%s6 + $0x28] sm:$0xff] %v1188
  %1203 = vst [vmem:[%s6 + $0x30] sm:$0xff] %v1189
  %1204 = vst [vmem:[%s6 + $0x38] sm:$0xff] %v1190
  %1205 = vst [vmem:[%s6 + $0x40] sm:$0xff] %v1191
  %1206 = vst [vmem:[%s6 + $0x48] sm:$0xff] %v1192
  %1207 = vst [vmem:[%s6 + $0x50] sm:$0xff] %v1193
  %1208 = vst [vmem:[%s6 + $0x58] sm:$0xff] %v1194
  %1209 = vst [vmem:[%s6 + $0x60] sm:$0xff] %v1195
  %1210 = vst [vmem:[%s6 + $0x68] sm:$0xff] %v1196
  %1211 = vset.pattern.permute.xlu0 3
  %1212 = vperm.xlu0 %1211, %v28
  %v1213 = vpop.permute.xlu0 %1212
  %1215 = vset.pattern.permute.xlu0 3
  %1216 = vperm.xlu0 %1215, %v29
  %v1217 = vpop.permute.xlu0 %1216
  %v1219 = vmul.f32 %v1213, %v323
  %v1220 = vmul.f32 %v1213, %v325
  %v1221 = vmul.f32 %v1213, %v400
  %v1222 = vmul.f32 %v1213, %v402
  %v1223 = vmul.f32 %v1213, %v477
  %v1224 = vmul.f32 %v1213, %v479
  %v1225 = vmul.f32 %v1213, %v554
  %v1226 = vmul.f32 %v1217, %v329
  %v1227 = vmul.f32 %v1217, %v331
  %v1228 = vmul.f32 %v1217, %v406
  %v1229 = vmul.f32 %v1217, %v408
  %v1230 = vmul.f32 %v1217, %v483
  %v1231 = vmul.f32 %v1217, %v485
  %v1232 = vmul.f32 %v1217, %v560
  %1233 = vset.pattern.permute.xlu0 4
  %1234 = vperm.xlu0 %1233, %v28
  %v1235 = vpop.permute.xlu0 %1234
  %1237 = vset.pattern.permute.xlu0 4
  %1238 = vperm.xlu0 %1237, %v29
  %v1239 = vpop.permute.xlu0 %1238
  %v1241 = vmul.f32 %v1235, %v556
  %v1242 = vmul.f32 %v1235, %v631
  %v1243 = vmul.f32 %v1235, %v633
  %v1244 = vmul.f32 %v1235, %v708
  %v1245 = vmul.f32 %v1235, %v710
  %v1246 = vmul.f32 %v1235, %v785
  %v1247 = vmul.f32 %v1235, %v787
  %v1248 = vmul.f32 %v1239, %v562
  %v1249 = vmul.f32 %v1239, %v637
  %v1250 = vmul.f32 %v1239, %v639
  %v1251 = vmul.f32 %v1239, %v714
  %v1252 = vmul.f32 %v1239, %v716
  %v1253 = vmul.f32 %v1239, %v791
  %v1254 = vmul.f32 %v1239, %v793
  %v1255 = vadd.f32 %v1219, %v1241
  %v1256 = vadd.f32 %v1220, %v1242
  %v1257 = vadd.f32 %v1221, %v1243
  %v1258 = vadd.f32 %v1222, %v1244
  %v1259 = vadd.f32 %v1223, %v1245
  %v1260 = vadd.f32 %v1224, %v1246
  %v1261 = vadd.f32 %v1225, %v1247
  %v1262 = vadd.f32 %v1226, %v1248
  %v1263 = vadd.f32 %v1227, %v1249
  %v1264 = vadd.f32 %v1228, %v1250
  %v1265 = vadd.f32 %v1229, %v1251
  %v1266 = vadd.f32 %v1230, %v1252
  %v1267 = vadd.f32 %v1231, %v1253
  %v1268 = vadd.f32 %v1232, %v1254
  %1269 = vset.pattern.permute.xlu0 5
  %1270 = vperm.xlu0 %1269, %v28
  %v1271 = vpop.permute.xlu0 %1270
  %1273 = vset.pattern.permute.xlu0 5
  %1274 = vperm.xlu0 %1273, %v29
  %v1275 = vpop.permute.xlu0 %1274
  %v1277 = vmul.f32 %v1271, %v862
  %v1278 = vmul.f32 %v1271, %v864
  %v1279 = vmul.f32 %v1271, %v939
  %v1280 = vmul.f32 %v1271, %v941
  %v1281 = vmul.f32 %v1271, %v1016
  %v1282 = vmul.f32 %v1271, %v1018
  %v1283 = vmul.f32 %v1271, %v1093
  %v1284 = vmul.f32 %v1275, %v868
  %v1285 = vmul.f32 %v1275, %v870
  %v1286 = vmul.f32 %v1275, %v945
  %v1287 = vmul.f32 %v1275, %v947
  %v1288 = vmul.f32 %v1275, %v1022
  %v1289 = vmul.f32 %v1275, %v1024
  %v1290 = vmul.f32 %v1275, %v1098
  %v1291 = vadd.f32 %v1255, %v1277
  %v1292 = vadd.f32 %v1256, %v1278
  %v1293 = vadd.f32 %v1257, %v1279
  %v1294 = vadd.f32 %v1258, %v1280
  %v1295 = vadd.f32 %v1259, %v1281
  %v1296 = vadd.f32 %v1260, %v1282
  %v1297 = vadd.f32 %v1261, %v1283
  %v1298 = vadd.f32 %v1262, %v1284
  %v1299 = vadd.f32 %v1263, %v1285
  %v1300 = vadd.f32 %v1264, %v1286
  %v1301 = vadd.f32 %v1265, %v1287
  %v1302 = vadd.f32 %v1266, %v1288
  %v1303 = vadd.f32 %v1267, %v1289
  %v1304 = vadd.f32 %v1268, %v1290
  %s1305 = scalar_lea.vmem %s6, 112
  %1306 = vst [vmem:[%s1305] sm:$0xff] %v1291
  %1307 = vst [vmem:[%s1305 + $0x8] sm:$0xff] %v1292
  %1308 = vst [vmem:[%s1305 + $0x10] sm:$0xff] %v1293
  %1309 = vst [vmem:[%s1305 + $0x18] sm:$0xff] %v1294
  %1310 = vst [vmem:[%s1305 + $0x20] sm:$0xff] %v1295
  %1311 = vst [vmem:[%s1305 + $0x28] sm:$0xff] %v1296
  %1312 = vst [vmem:[%s1305 + $0x30] sm:$0xff] %v1297
  %1313 = vst [vmem:[%s1305 + $0x38] sm:$0xff] %v1298
  %1314 = vst [vmem:[%s1305 + $0x40] sm:$0xff] %v1299
  %1315 = vst [vmem:[%s1305 + $0x48] sm:$0xff] %v1300
  %1316 = vst [vmem:[%s1305 + $0x50] sm:$0xff] %v1301
  %1317 = vst [vmem:[%s1305 + $0x58] sm:$0xff] %v1302
  %1318 = vst [vmem:[%s1305 + $0x60] sm:$0xff] %v1303
  %1319 = vst [vmem:[%s1305 + $0x68] sm:$0xff] %v1304
  %1320 = vset.pattern.permute.xlu0 6
  %1321 = vperm.xlu0 %1320, %v28
  %v1322 = vpop.permute.xlu0 %1321
  %1324 = vset.pattern.permute.xlu0 6
  %1325 = vperm.xlu0 %1324, %v29
  %v1326 = vpop.permute.xlu0 %1325
  %v1328 = vmul.f32 %v1322, %v323
  %v1329 = vmul.f32 %v1322, %v325
  %v1330 = vmul.f32 %v1322, %v400
  %v1331 = vmul.f32 %v1322, %v402
  %v1332 = vmul.f32 %v1322, %v477
  %v1333 = vmul.f32 %v1322, %v479
  %v1334 = vmul.f32 %v1322, %v554
  %v1335 = vmul.f32 %v1326, %v329
  %v1336 = vmul.f32 %v1326, %v331
  %v1337 = vmul.f32 %v1326, %v406
  %v1338 = vmul.f32 %v1326, %v408
  %v1339 = vmul.f32 %v1326, %v483
  %v1340 = vmul.f32 %v1326, %v485
  %v1341 = vmul.f32 %v1326, %v560
  %1342 = vset.pattern.permute.xlu0 7
  %1343 = vperm.xlu0 %1342, %v28
  %v1344 = vpop.permute.xlu0 %1343
  %1346 = vset.pattern.permute.xlu0 7
  %1347 = vperm.xlu0 %1346, %v29
  %v1348 = vpop.permute.xlu0 %1347
  %v1350 = vmul.f32 %v1344, %v556
  %v1351 = vmul.f32 %v1344, %v631
  %v1352 = vmul.f32 %v1344, %v633
  %v1353 = vmul.f32 %v1344, %v708
  %v1354 = vmul.f32 %v1344, %v710
  %v1355 = vmul.f32 %v1344, %v785
  %v1356 = vmul.f32 %v1344, %v787
  %v1357 = vmul.f32 %v1348, %v562
  %v1358 = vmul.f32 %v1348, %v637
  %v1359 = vmul.f32 %v1348, %v639
  %v1360 = vmul.f32 %v1348, %v714
  %v1361 = vmul.f32 %v1348, %v716
  %v1362 = vmul.f32 %v1348, %v791
  %v1363 = vmul.f32 %v1348, %v793
  %v1364 = vadd.f32 %v1328, %v1350
  %v1365 = vadd.f32 %v1329, %v1351
  %v1366 = vadd.f32 %v1330, %v1352
  %v1367 = vadd.f32 %v1331, %v1353
  %v1368 = vadd.f32 %v1332, %v1354
  %v1369 = vadd.f32 %v1333, %v1355
  %v1370 = vadd.f32 %v1334, %v1356
  %v1371 = vadd.f32 %v1335, %v1357
  %v1372 = vadd.f32 %v1336, %v1358
  %v1373 = vadd.f32 %v1337, %v1359
  %v1374 = vadd.f32 %v1338, %v1360
  %v1375 = vadd.f32 %v1339, %v1361
  %v1376 = vadd.f32 %v1340, %v1362
  %v1377 = vadd.f32 %v1341, %v1363
  %1378 = vset.pattern.permute.xlu0 8
  %1379 = vperm.xlu0 %1378, %v28
  %v1380 = vpop.permute.xlu0 %1379
  %1382 = vset.pattern.permute.xlu0 8
  %1383 = vperm.xlu0 %1382, %v29
  %v1384 = vpop.permute.xlu0 %1383
  %v1386 = vmul.f32 %v1380, %v862
  %v1387 = vmul.f32 %v1380, %v864
  %v1388 = vmul.f32 %v1380, %v939
  %v1389 = vmul.f32 %v1380, %v941
  %v1390 = vmul.f32 %v1380, %v1016
  %v1391 = vmul.f32 %v1380, %v1018
  %v1392 = vmul.f32 %v1380, %v1093
  %v1393 = vmul.f32 %v1384, %v868
  %v1394 = vmul.f32 %v1384, %v870
  %v1395 = vmul.f32 %v1384, %v945
  %v1396 = vmul.f32 %v1384, %v947
  %v1397 = vmul.f32 %v1384, %v1022
  %v1398 = vmul.f32 %v1384, %v1024
  %v1399 = vmul.f32 %v1384, %v1098
  %v1400 = vadd.f32 %v1364, %v1386
  %v1401 = vadd.f32 %v1365, %v1387
  %v1402 = vadd.f32 %v1366, %v1388
  %v1403 = vadd.f32 %v1367, %v1389
  %v1404 = vadd.f32 %v1368, %v1390
  %v1405 = vadd.f32 %v1369, %v1391
  %v1406 = vadd.f32 %v1370, %v1392
  %v1407 = vadd.f32 %v1371, %v1393
  %v1408 = vadd.f32 %v1372, %v1394
  %v1409 = vadd.f32 %v1373, %v1395
  %v1410 = vadd.f32 %v1374, %v1396
  %v1411 = vadd.f32 %v1375, %v1397
  %v1412 = vadd.f32 %v1376, %v1398
  %v1413 = vadd.f32 %v1377, %v1399
  %s1414 = scalar_lea.vmem %s6, 224
  %1415 = vst [vmem:[%s1414] sm:$0xff] %v1400
  %1416 = vst [vmem:[%s1414 + $0x8] sm:$0xff] %v1401
  %1417 = vst [vmem:[%s1414 + $0x10] sm:$0xff] %v1402
  %1418 = vst [vmem:[%s1414 + $0x18] sm:$0xff] %v1403
  %1419 = vst [vmem:[%s1414 + $0x20] sm:$0xff] %v1404
  %1420 = vst [vmem:[%s1414 + $0x28] sm:$0xff] %v1405
  %1421 = vst [vmem:[%s1414 + $0x30] sm:$0xff] %v1406
  %1422 = vst [vmem:[%s1414 + $0x38] sm:$0xff] %v1407
  %1423 = vst [vmem:[%s1414 + $0x40] sm:$0xff] %v1408
  %1424 = vst [vmem:[%s1414 + $0x48] sm:$0xff] %v1409
  %1425 = vst [vmem:[%s1414 + $0x50] sm:$0xff] %v1410
  %1426 = vst [vmem:[%s1414 + $0x58] sm:$0xff] %v1411
  %1427 = vst [vmem:[%s1414 + $0x60] sm:$0xff] %v1412
  %1428 = vst [vmem:[%s1414 + $0x68] sm:$0xff] %v1413
  %v1429 = vld [vmem:[%s6] sm:$0xff]
  %v1430 = vld [vmem:[%s6 + $0x8] sm:$0xff]
  %v1431 = vld [vmem:[%s6 + $0x10] sm:$0xff]
  %v1432 = vld [vmem:[%s6 + $0x18] sm:$0xff]
  %v1433 = vld [vmem:[%s6 + $0x20] sm:$0xff]
  %v1434 = vld [vmem:[%s6 + $0x28] sm:$0xff]
  %v1435 = vld [vmem:[%s6 + $0x30] sm:$0xff]
  %v1436 = vld [vmem:[%s6 + $0x38] sm:$0xff]
  %v1437 = vld [vmem:[%s6 + $0x40] sm:$0xff]
  %v1438 = vld [vmem:[%s6 + $0x48] sm:$0xff]
  %v1439 = vld [vmem:[%s6 + $0x50] sm:$0xff]
  %v1440 = vld [vmem:[%s6 + $0x58] sm:$0xff]
  %v1441 = vld [vmem:[%s6 + $0x60] sm:$0xff]
  %v1442 = vld [vmem:[%s6 + $0x68] sm:$0xff]
  %v1443 = vld [vmem:[%s6 + $0x70] sm:$0xff]
  %v1444 = vld [vmem:[%s6 + $0x78] sm:$0xff]
  %v1445 = vld [vmem:[%s6 + $0x80] sm:$0xff]
  %v1446 = vld [vmem:[%s6 + $0x88] sm:$0xff]
  %v1447 = vld [vmem:[%s6 + $0x90] sm:$0xff]
  %v1448 = vld [vmem:[%s6 + $0x98] sm:$0xff]
  %v1449 = vld [vmem:[%s6 + $0xa0] sm:$0xff]
  %v1450 = vld [vmem:[%s6 + $0xa8] sm:$0xff]
  %v1451 = vld [vmem:[%s6 + $0xb0] sm:$0xff]
  %v1452 = vld [vmem:[%s6 + $0xb8] sm:$0xff]
  %v1453 = vld [vmem:[%s6 + $0xc0] sm:$0xff]
  %v1454 = vld [vmem:[%s6 + $0xc8] sm:$0xff]
  %v1455 = vld [vmem:[%s6 + $0xd0] sm:$0xff]
  %v1456 = vld [vmem:[%s6 + $0xd8] sm:$0xff]
  %v1457 = vld [vmem:[%s6 + $0xe0] sm:$0xff]
  %v1458 = vld [vmem:[%s6 + $0xe8] sm:$0xff]
  %v1459 = vld [vmem:[%s6 + $0xf0] sm:$0xff]
  %v1460 = vld [vmem:[%s6 + $0xf8] sm:$0xff]
  %v1461 = vld [vmem:[%s6 + $0x100] sm:$0xff]
  %v1462 = vld [vmem:[%s6 + $0x108] sm:$0xff]
  %v1463 = vld [vmem:[%s6 + $0x110] sm:$0xff]
  %v1464 = vld [vmem:[%s6 + $0x118] sm:$0xff]
  %v1465 = vld [vmem:[%s6 + $0x120] sm:$0xff]
  %v1466 = vld [vmem:[%s6 + $0x128] sm:$0xff]
  %v1467 = vld [vmem:[%s6 + $0x130] sm:$0xff]
  %v1468 = vld [vmem:[%s6 + $0x138] sm:$0xff]
  %v1469 = vld [vmem:[%s6 + $0x140] sm:$0xff]
  %v1470 = vld [vmem:[%s6 + $0x148] sm:$0xff]
  %v1471 = vld [vmem:[%s5] sm:$0xff]
  %v1472 = vld [vmem:[%s5 + $0x8] sm:$0xff]
  %v1473 = vld [vmem:[%s5 + $0x10] sm:$0xff]
  %v1474 = vld [vmem:[%s5 + $0x18] sm:$0xff]
  %v1475 = vld [vmem:[%s5 + $0x20] sm:$0xff]
  %v1476 = vld [vmem:[%s5 + $0x28] sm:$0xff]
  %v1477 = vld [vmem:[%s5 + $0x30] sm:$0xff]
  %v1478 = vld [vmem:[%s5 + $0x38] sm:$0xff]
  %v1479 = vld [vmem:[%s5 + $0x40] sm:$0xff]
  %v1480 = vld [vmem:[%s5 + $0x48] sm:$0xff]
  %v1481 = vld [vmem:[%s5 + $0x50] sm:$0xff]
  %v1482 = vld [vmem:[%s5 + $0x58] sm:$0xff]
  %v1483 = vld [vmem:[%s5 + $0x60] sm:$0xff]
  %v1484 = vld [vmem:[%s5 + $0x68] sm:$0xff]
  %v1485 = vld [vmem:[%s5 + $0x70] sm:$0xff]
  %v1486 = vld [vmem:[%s5 + $0x78] sm:$0xff]
  %v1487 = vld [vmem:[%s5 + $0x80] sm:$0xff]
  %v1488 = vld [vmem:[%s5 + $0x88] sm:$0xff]
  %v1489 = vld [vmem:[%s5 + $0x90] sm:$0xff]
  %v1490 = vld [vmem:[%s5 + $0x98] sm:$0xff]
  %v1491 = vld [vmem:[%s5 + $0xa0] sm:$0xff]
  %v1492 = vld [vmem:[%s5 + $0xa8] sm:$0xff]
  %v1493 = vld [vmem:[%s5 + $0xb0] sm:$0xff]
  %v1494 = vld [vmem:[%s5 + $0xb8] sm:$0xff]
  %v1495 = vld [vmem:[%s5 + $0xc0] sm:$0xff]
  %v1496 = vld [vmem:[%s5 + $0xc8] sm:$0xff]
  %v1497 = vld [vmem:[%s5 + $0xd0] sm:$0xff]
  %v1498 = vld [vmem:[%s5 + $0xd8] sm:$0xff]
  %v1499 = vld [vmem:[%s5 + $0xe0] sm:$0xff]
  %v1500 = vld [vmem:[%s5 + $0xe8] sm:$0xff]
  %v1501 = vld [vmem:[%s5 + $0xf0] sm:$0xff]
  %v1502 = vld [vmem:[%s5 + $0xf8] sm:$0xff]
  %v1503 = vld [vmem:[%s5 + $0x100] sm:$0xff]
  %v1504 = vld [vmem:[%s5 + $0x108] sm:$0xff]
  %v1505 = vld [vmem:[%s5 + $0x110] sm:$0xff]
  %v1506 = vld [vmem:[%s5 + $0x118] sm:$0xff]
  %v1507 = vld [vmem:[%s5 + $0x120] sm:$0xff]
  %v1508 = vld [vmem:[%s5 + $0x128] sm:$0xff]
  %v1509 = vld [vmem:[%s5 + $0x130] sm:$0xff]
  %v1510 = vld [vmem:[%s5 + $0x138] sm:$0xff]
  %v1511 = vld [vmem:[%s5 + $0x140] sm:$0xff]
  %v1512 = vld [vmem:[%s5 + $0x148] sm:$0xff]
  %v1513 = vld [vmem:[%s5 + $0x150] sm:$0xff]
  %v1514 = vld [vmem:[%s5 + $0x158] sm:$0xff]
  %v1515 = vld [vmem:[%s5 + $0x160] sm:$0xff]
  %v1516 = vld [vmem:[%s5 + $0x168] sm:$0xff]
  %v1517 = vld [vmem:[%s5 + $0x170] sm:$0xff]
  %v1518 = vld [vmem:[%s5 + $0x178] sm:$0xff]
  %v1519 = vld [vmem:[%s5 + $0x180] sm:$0xff]
  %v1520 = vld [vmem:[%s5 + $0x188] sm:$0xff]
  %v1521 = vld [vmem:[%s5 + $0x190] sm:$0xff]
  %v1522 = vld [vmem:[%s5 + $0x198] sm:$0xff]
  %v1523 = vld [vmem:[%s5 + $0x1a0] sm:$0xff]
  %v1524 = vld [vmem:[%s5 + $0x1a8] sm:$0xff]
  %v1525 = vld [vmem:[%s5 + $0x1b0] sm:$0xff]
  %v1526 = vld [vmem:[%s5 + $0x1b8] sm:$0xff]
  %v1527 = vld [vmem:[%s5 + $0x1c0] sm:$0xff]
  %v1528 = vld [vmem:[%s5 + $0x1c8] sm:$0xff]
  %v1529 = vld [vmem:[%s5 + $0x1d0] sm:$0xff]
  %v1530 = vld [vmem:[%s5 + $0x1d8] sm:$0xff]
  %v1531 = vld [vmem:[%s5 + $0x1e0] sm:$0xff]
  %v1532 = vld [vmem:[%s5 + $0x1e8] sm:$0xff]
  %v1533 = vld [vmem:[%s5 + $0x1f0] sm:$0xff]
  %v1534 = vld [vmem:[%s5 + $0x1f8] sm:$0xff]
  %v1535 = vld [vmem:[%s5 + $0x200] sm:$0xff]
  %v1536 = vld [vmem:[%s5 + $0x208] sm:$0xff]
  %v1537 = vld [vmem:[%s5 + $0x210] sm:$0xff]
  %v1538 = vld [vmem:[%s5 + $0x218] sm:$0xff]
  %v1539 = vld [vmem:[%s5 + $0x220] sm:$0xff]
  %v1540 = vld [vmem:[%s5 + $0x228] sm:$0xff]
  %v1541 = vld [vmem:[%s5 + $0x230] sm:$0xff]
  %v1542 = vld [vmem:[%s5 + $0x238] sm:$0xff]
  %v1543 = vld [vmem:[%s5 + $0x240] sm:$0xff]
  %v1544 = vld [vmem:[%s5 + $0x248] sm:$0xff]
  %v1545 = vld [vmem:[%s5 + $0x250] sm:$0xff]
  %v1546 = vld [vmem:[%s5 + $0x258] sm:$0xff]
  %v1547 = vld [vmem:[%s5 + $0x260] sm:$0xff]
  %v1548 = vld [vmem:[%s5 + $0x268] sm:$0xff]
  %v1549 = vld [vmem:[%s5 + $0x270] sm:$0xff]
  %v1550 = vld [vmem:[%s5 + $0x278] sm:$0xff]
  %v1551 = vld [vmem:[%s5 + $0x280] sm:$0xff]
  %v1552 = vld [vmem:[%s5 + $0x288] sm:$0xff]
  %v1553 = vld [vmem:[%s5 + $0x290] sm:$0xff]
  %v1554 = vld [vmem:[%s5 + $0x298] sm:$0xff]
  %v1555 = vld [vmem:[%s5 + $0x2a0] sm:$0xff]
  %v1556 = vld [vmem:[%s5 + $0x2a8] sm:$0xff]
  %v1557 = vld [vmem:[%s5 + $0x2b0] sm:$0xff]
  %v1558 = vld [vmem:[%s5 + $0x2b8] sm:$0xff]
  %v1559 = vld [vmem:[%s5 + $0x2c0] sm:$0xff]
  %v1560 = vld [vmem:[%s5 + $0x2c8] sm:$0xff]
  %v1561 = vld [vmem:[%s5 + $0x2d0] sm:$0xff]
  %v1562 = vld [vmem:[%s5 + $0x2d8] sm:$0xff]
  %v1563 = vld [vmem:[%s5 + $0x2e0] sm:$0xff]
  %v1564 = vld [vmem:[%s5 + $0x2e8] sm:$0xff]
  %v1565 = vld [vmem:[%s5 + $0x2f0] sm:$0xff]
  %v1566 = vld [vmem:[%s5 + $0x2f8] sm:$0xff]
  %v1567 = vld [vmem:[%s5 + $0x300] sm:$0xff]
  %v1568 = vld [vmem:[%s5 + $0x308] sm:$0xff]
  %v1569 = vld [vmem:[%s5 + $0x310] sm:$0xff]
  %v1570 = vld [vmem:[%s5 + $0x318] sm:$0xff]
  %v1571 = vld [vmem:[%s5 + $0x320] sm:$0xff]
  %v1572 = vld [vmem:[%s5 + $0x328] sm:$0xff]
  %v1573 = vld [vmem:[%s5 + $0x330] sm:$0xff]
  %v1574 = vld [vmem:[%s5 + $0x338] sm:$0xff]
  %v1575 = vld [vmem:[%s5 + $0x340] sm:$0xff]
  %v1576 = vld [vmem:[%s5 + $0x348] sm:$0xff]
  %v1577 = vld [vmem:[%s5 + $0x350] sm:$0xff]
  %v1578 = vld [vmem:[%s5 + $0x358] sm:$0xff]
  %v1579 = vld [vmem:[%s5 + $0x360] sm:$0xff]
  %v1580 = vld [vmem:[%s5 + $0x368] sm:$0xff]
  %v1581 = vld [vmem:[%s5 + $0x370] sm:$0xff]
  %v1582 = vld [vmem:[%s5 + $0x378] sm:$0xff]
  %1583 = vmatprep.subr.mxu0 0.0
  %1584 = vmatpush1.msra.mxu0 %v1471
  %1585 = vmatprep.subr.mxu0 0.0
  %1586 = vmatpush1.msra.mxu0 %v1472
  %1587 = vmatprep.subr.mxu0 0.0
  %1588 = vmatpush1.msra.mxu0 %v1473
  %1589 = vmatprep.subr.mxu0 0.0
  %1590 = vmatpush1.msra.mxu0 %v1474
  %1591 = vmatprep.subr.mxu0 0.0
  %1592 = vmatpush1.msra.mxu0 %v1475
  %1593 = vmatprep.subr.mxu0 0.0
  %1594 = vmatpush1.msra.mxu0 %v1476
  %1595 = vmatprep.subr.mxu0 0.0
  %1596 = vmatpush1.msra.mxu0 %v1477
  %1597 = vmatprep.subr.mxu0 0.0
  %1598 = vmatpush1.msra.mxu0 %v1478
  %1599 = vmatprep.subr.mxu0 0.0
  %1600 = vmatpush1.msra.mxu0 %v1479
  %1601 = vmatprep.subr.mxu0 0.0
  %1602 = vmatpush1.msra.mxu0 %v1480
  %1603 = vmatprep.subr.mxu0 0.0
  %1604 = vmatpush1.msra.mxu0 %v1481
  %1605 = vmatprep.subr.mxu0 0.0
  %1606 = vmatpush1.msra.mxu0 %v1482
  %1607 = vmatprep.subr.mxu0 0.0
  %1608 = vmatpush1.msra.mxu0 %v1483
  %1609 = vmatprep.subr.mxu0 0.0
  %1610 = vmatpush1.msra.mxu0 %v1484
  %1611 = vmatprep.subr.mxu0 0.0
  %1612 = vmatpush1.msra.mxu0 %v1485
  %1613 = vmatprep.subr.mxu0 0.0
  %1614 = vmatpush1.msra.mxu0 %v1486
  %1615 = vmatprep.subr.mxu0 0.0
  %1616 = vmatpush1.msra.mxu0 %v1487
  %1617 = vmatprep.subr.mxu0 0.0
  %1618 = vmatpush1.msra.mxu0 %v1488
  %1619 = vmatprep.subr.mxu0 0.0
  %1620 = vmatpush1.msra.mxu0 %v1489
  %1621 = vmatprep.subr.mxu0 0.0
  %1622 = vmatpush1.msra.mxu0 %v1490
  %1623 = vmatprep.subr.mxu0 0.0
  %1624 = vmatpush1.msra.mxu0 %v1491
  %1625 = vmatprep.subr.mxu0 0.0
  %1626 = vmatpush1.msra.mxu0 %v1492
  %1627 = vmatprep.subr.mxu0 0.0
  %1628 = vmatpush1.msra.mxu0 %v1493
  %1629 = vmatprep.subr.mxu0 0.0
  %1630 = vmatpush1.msra.mxu0 %v1494
  %1631 = vmatprep.subr.mxu0 0.0
  %1632 = vmatpush1.msra.mxu0 %v1495
  %1633 = vmatprep.subr.mxu0 0.0
  %1634 = vmatpush1.msra.mxu0 %v1496
  %1635 = vmatprep.subr.mxu0 0.0
  %1636 = vmatpush1.msra.mxu0 %v1497
  %1637 = vmatprep.subr.mxu0 0.0
  %1638 = vmatpush1.msra.mxu0 %v1498
  %1639 = vmatprep.subr.mxu0 0.0
  %1640 = vmatpush1.msra.mxu0 %v1499
  %1641 = vmatprep.subr.mxu0 0.0
  %1642 = vmatpush1.msra.mxu0 %v1500
  %1643 = vmatprep.subr.mxu0 0.0
  %1644 = vmatpush1.msra.mxu0 %v1501
  %1645 = vmatprep.subr.mxu0 0.0
  %1646 = vmatpush1.msra.mxu0 %v1502
  %1647 = vmatprep.mubr.f32.mxu0 %v1430
  %1648 = vmatmul.mubr.f32.gmra.mrb[0].mxu0 %v1429
  %v1649 = vpop.f32.mrb[0].mxu0
  %v1650 = vadd.f32 0.0, %v1649
  %v1651 = vpop.f32.mrb[0].mxu0
  %1652 = vmatprep.mubr.f32.mxu0 %v1437
  %1653 = vmatmul.mubr.f32.gmra.mrb[0].mxu0 %v1436
  %v1654 = vpop.f32.mrb[0].mxu0
  %v1655 = vadd.f32 0.0, %v1654
  %v1656 = vpop.f32.mrb[0].mxu0
  %1657 = vmatprep.mubr.f32.mxu0 %v1444
  %1658 = vmatmul.mubr.f32.gmra.mrb[0].mxu0 %v1443
  %v1659 = vpop.f32.mrb[0].mxu0
  %v1660 = vadd.f32 0.0, %v1659
  %v1661 = vpop.f32.mrb[0].mxu0
  %1662 = vmatprep.mubr.f32.mxu0 %v1451
  %1663 = vmatmul.mubr.f32.gmra.mrb[0].mxu0 %v1450
  %v1664 = vpop.f32.mrb[0].mxu0
  %v1665 = vadd.f32 0.0, %v1664
  %v1666 = vpop.f32.mrb[0].mxu0
  %1667 = vmatprep.mubr.f32.mxu0 %v1458
  %1668 = vmatmul.mubr.f32.gmra.mrb[0].mxu0 %v1457
  %v1669 = vpop.f32.mrb[0].mxu0
  %v1670 = vadd.f32 0.0, %v1669
  %v1671 = vpop.f32.mrb[0].mxu0
  %1672 = vmatprep.mubr.f32.mxu0 %v1465
  %1673 = vmatmul.mubr.f32.gmra.mrb[0].mxu0 %v1464
  %v1674 = vpop.f32.mrb[0].mxu0
  %v1675 = vadd.f32 0.0, %v1674
  %v1676 = vpop.f32.mrb[0].mxu0
  %1677 = vdwg.mxu0
  %1678 = vmatprep.subr.mxu0 0.0
  %1679 = vmatpush1.msra.mxu0 %v1503
  %1680 = vmatprep.subr.mxu0 0.0
  %1681 = vmatpush1.msra.mxu0 %v1504
  %1682 = vmatprep.subr.mxu0 0.0
  %1683 = vmatpush1.msra.mxu0 %v1505
  %1684 = vmatprep.subr.mxu0 0.0
  %1685 = vmatpush1.msra.mxu0 %v1506
  %1686 = vmatprep.subr.mxu0 0.0
  %1687 = vmatpush1.msra.mxu0 %v1507
  %1688 = vmatprep.subr.mxu0 0.0
  %1689 = vmatpush1.msra.mxu0 %v1508
  %1690 = vmatprep.subr.mxu0 0.0
  %1691 = vmatpush1.msra.mxu0 %v1509
  %1692 = vmatprep.subr.mxu0 0.0
  %1693 = vmatpush1.msra.mxu0 %v1510
  %1694 = vmatprep.subr.mxu0 0.0
  %1695 = vmatpush1.msra.mxu0 %v1511
  %1696 = vmatprep.subr.mxu0 0.0
  %1697 = vmatpush1.msra.mxu0 %v1512
  %1698 = vmatprep.subr.mxu0 0.0
  %1699 = vmatpush1.msra.mxu0 %v1513
  %1700 = vmatprep.subr.mxu0 0.0
  %1701 = vmatpush1.msra.mxu0 %v1514
  %1702 = vmatprep.subr.mxu0 0.0
  %1703 = vmatpush1.msra.mxu0 %v1515
  %1704 = vmatprep.subr.mxu0 0.0
  %1705 = vmatpush1.msra.mxu0 %v1516
  %1706 = vmatprep.subr.mxu0 0.0
  %1707 = vmatpush1.msra.mxu0 %v1517
  %1708 = vmatprep.subr.mxu0 0.0
  %1709 = vmatpush1.msra.mxu0 %v1518
  %1710 = vmatprep.subr.mxu0 0.0
  %1711 = vmatpush1.msra.mxu0 %v1519
  %1712 = vmatprep.subr.mxu0 0.0
  %1713 = vmatpush1.msra.mxu0 %v1520
  %1714 = vmatprep.subr.mxu0 0.0
  %1715 = vmatpush1.msra.mxu0 %v1521
  %1716 = vmatprep.subr.mxu0 0.0
  %1717 = vmatpush1.msra.mxu0 %v1522
  %1718 = vmatprep.subr.mxu0 0.0
  %1719 = vmatpush1.msra.mxu0 %v1523
  %1720 = vmatprep.subr.mxu0 0.0
  %1721 = vmatpush1.msra.mxu0 %v1524
  %1722 = vmatprep.subr.mxu0 0.0
  %1723 = vmatpush1.msra.mxu0 %v1525
  %1724 = vmatprep.subr.mxu0 0.0
  %1725 = vmatpush1.msra.mxu0 %v1526
  %1726 = vmatprep.subr.mxu0 0.0
  %1727 = vmatpush1.msra.mxu0 %v1527
  %1728 = vmatprep.subr.mxu0 0.0
  %1729 = vmatpush1.msra.mxu0 %v1528
  %1730 = vmatprep.subr.mxu0 0.0
  %1731 = vmatpush1.msra.mxu0 %v1529
  %1732 = vmatprep.subr.mxu0 0.0
  %1733 = vmatpush1.msra.mxu0 %v1530
  %1734 = vmatprep.subr.mxu0 0.0
  %1735 = vmatpush1.msra.mxu0 %v1531
  %1736 = vmatprep.subr.mxu0 0.0
  %1737 = vmatpush1.msra.mxu0 %v1532
  %1738 = vmatprep.subr.mxu0 0.0
  %1739 = vmatpush1.msra.mxu0 %v1533
  %1740 = vmatprep.subr.mxu0 0.0
  %1741 = vmatpush1.msra.mxu0 %v1534
  %1742 = vmatprep.mubr.f32.mxu0 %v1432
  %1743 = vmatmul.mubr.f32.gmra.mrb[0].mxu0 %v1431
  %v1744 = vpop.f32.mrb[0].mxu0
  %v1745 = vadd.f32 %v1650, %v1744
  %v1746 = vpop.f32.mrb[0].mxu0
  %1747 = vmatprep.mubr.f32.mxu0 %v1439
  %1748 = vmatmul.mubr.f32.gmra.mrb[0].mxu0 %v1438
  %v1749 = vpop.f32.mrb[0].mxu0
  %v1750 = vadd.f32 %v1655, %v1749
  %v1751 = vpop.f32.mrb[0].mxu0
  %1752 = vmatprep.mubr.f32.mxu0 %v1446
  %1753 = vmatmul.mubr.f32.gmra.mrb[0].mxu0 %v1445
  %v1754 = vpop.f32.mrb[0].mxu0
  %v1755 = vadd.f32 %v1660, %v1754
  %v1756 = vpop.f32.mrb[0].mxu0
  %1757 = vmatprep.mubr.f32.mxu0 %v1453
  %1758 = vmatmul.mubr.f32.gmra.mrb[0].mxu0 %v1452
  %v1759 = vpop.f32.mrb[0].mxu0
  %v1760 = vadd.f32 %v1665, %v1759
  %v1761 = vpop.f32.mrb[0].mxu0
  %1762 = vmatprep.mubr.f32.mxu0 %v1460
  %1763 = vmatmul.mubr.f32.gmra.mrb[0].mxu0 %v1459
  %v1764 = vpop.f32.mrb[0].mxu0
  %v1765 = vadd.f32 %v1670, %v1764
  %v1766 = vpop.f32.mrb[0].mxu0
  %1767 = vmatprep.mubr.f32.mxu0 %v1467
  %1768 = vmatmul.mubr.f32.gmra.mrb[0].mxu0 %v1466
  %v1769 = vpop.f32.mrb[0].mxu0
  %v1770 = vadd.f32 %v1675, %v1769
  %v1771 = vpop.f32.mrb[0].mxu0
  %1772 = vdwg.mxu0
  %1773 = vmatprep.subr.mxu0 0.0
  %1774 = vmatpush1.msra.mxu0 %v1535
  %1775 = vmatprep.subr.mxu0 0.0
  %1776 = vmatpush1.msra.mxu0 %v1536
  %1777 = vmatprep.subr.mxu0 0.0
  %1778 = vmatpush1.msra.mxu0 %v1537
  %1779 = vmatprep.subr.mxu0 0.0
  %1780 = vmatpush1.msra.mxu0 %v1538
  %1781 = vmatprep.subr.mxu0 0.0
  %1782 = vmatpush1.msra.mxu0 %v1539
  %1783 = vmatprep.subr.mxu0 0.0
  %1784 = vmatpush1.msra.mxu0 %v1540
  %1785 = vmatprep.subr.mxu0 0.0
  %1786 = vmatpush1.msra.mxu0 %v1541
  %1787 = vmatprep.subr.mxu0 0.0
  %1788 = vmatpush1.msra.mxu0 %v1542
  %1789 = vmatprep.subr.mxu0 0.0
  %1790 = vmatpush1.msra.mxu0 %v1543
  %1791 = vmatprep.subr.mxu0 0.0
  %1792 = vmatpush1.msra.mxu0 %v1544
  %1793 = vmatprep.subr.mxu0 0.0
  %1794 = vmatpush1.msra.mxu0 %v1545
  %1795 = vmatprep.subr.mxu0 0.0
  %1796 = vmatpush1.msra.mxu0 %v1546
  %1797 = vmatprep.subr.mxu0 0.0
  %1798 = vmatpush1.msra.mxu0 %v1547
  %1799 = vmatprep.subr.mxu0 0.0
  %1800 = vmatpush1.msra.mxu0 %v1548
  %1801 = vmatprep.subr.mxu0 0.0
  %1802 = vmatpush1.msra.mxu0 %v1549
  %1803 = vmatprep.subr.mxu0 0.0
  %1804 = vmatpush1.msra.mxu0 %v1550
  %1805 = vmatprep.subr.mxu0 0.0
  %1806 = vmatpush1.msra.mxu0 %v1551
  %1807 = vmatprep.subr.mxu0 0.0
  %1808 = vmatpush1.msra.mxu0 %v1552
  %1809 = vmatprep.subr.mxu0 0.0
  %1810 = vmatpush1.msra.mxu0 %v1553
  %1811 = vmatprep.subr.mxu0 0.0
  %1812 = vmatpush1.msra.mxu0 %v1554
  %1813 = vmatprep.subr.mxu0 0.0
  %1814 = vmatpush1.msra.mxu0 %v1555
  %1815 = vmatprep.subr.mxu0 0.0
  %1816 = vmatpush1.msra.mxu0 %v1556
  %1817 = vmatprep.subr.mxu0 0.0
  %1818 = vmatpush1.msra.mxu0 %v1557
  %1819 = vmatprep.subr.mxu0 0.0
  %1820 = vmatpush1.msra.mxu0 %v1558
  %1821 = vmatprep.subr.mxu0 0.0
  %1822 = vmatpush1.msra.mxu0 %v1559
  %1823 = vmatprep.subr.mxu0 0.0
  %1824 = vmatpush1.msra.mxu0 %v1560
  %1825 = vmatprep.subr.mxu0 0.0
  %1826 = vmatpush1.msra.mxu0 %v1561
  %1827 = vmatprep.subr.mxu0 0.0
  %1828 = vmatpush1.msra.mxu0 %v1562
  %1829 = vmatprep.subr.mxu0 0.0
  %1830 = vmatpush1.msra.mxu0 %v1563
  %1831 = vmatprep.subr.mxu0 0.0
  %1832 = vmatpush1.msra.mxu0 %v1564
  %1833 = vmatprep.subr.mxu0 0.0
  %1834 = vmatpush1.msra.mxu0 %v1565
  %1835 = vmatprep.subr.mxu0 0.0
  %1836 = vmatpush1.msra.mxu0 %v1566
  %1837 = vmatprep.mubr.f32.mxu0 %v1434
  %1838 = vmatmul.mubr.f32.gmra.mrb[0].mxu0 %v1433
  %v1839 = vpop.f32.mrb[0].mxu0
  %v1840 = vadd.f32 %v1745, %v1839
  %v1841 = vpop.f32.mrb[0].mxu0
  %1842 = vmatprep.mubr.f32.mxu0 %v1441
  %1843 = vmatmul.mubr.f32.gmra.mrb[0].mxu0 %v1440
  %v1844 = vpop.f32.mrb[0].mxu0
  %v1845 = vadd.f32 %v1750, %v1844
  %v1846 = vpop.f32.mrb[0].mxu0
  %1847 = vmatprep.mubr.f32.mxu0 %v1448
  %1848 = vmatmul.mubr.f32.gmra.mrb[0].mxu0 %v1447
  %v1849 = vpop.f32.mrb[0].mxu0
  %v1850 = vadd.f32 %v1755, %v1849
  %v1851 = vpop.f32.mrb[0].mxu0
  %1852 = vmatprep.mubr.f32.mxu0 %v1455
  %1853 = vmatmul.mubr.f32.gmra.mrb[0].mxu0 %v1454
  %v1854 = vpop.f32.mrb[0].mxu0
  %v1855 = vadd.f32 %v1760, %v1854
  %v1856 = vpop.f32.mrb[0].mxu0
  %1857 = vmatprep.mubr.f32.mxu0 %v1462
  %1858 = vmatmul.mubr.f32.gmra.mrb[0].mxu0 %v1461
  %v1859 = vpop.f32.mrb[0].mxu0
  %v1860 = vadd.f32 %v1765, %v1859
  %v1861 = vpop.f32.mrb[0].mxu0
  %1862 = vmatprep.mubr.f32.mxu0 %v1469
  %1863 = vmatmul.mubr.f32.gmra.mrb[0].mxu0 %v1468
  %v1864 = vpop.f32.mrb[0].mxu0
  %v1865 = vadd.f32 %v1770, %v1864
  %v1866 = vpop.f32.mrb[0].mxu0
  %1867 = vdwg.mxu0
  %1868 = vmatprep.subr.mxu0 0.0
  %1869 = vmatpush1.msra.mxu0 %v1567
  %1870 = vmatprep.subr.mxu0 0.0
  %1871 = vmatpush1.msra.mxu0 %v1568
  %1872 = vmatprep.subr.mxu0 0.0
  %1873 = vmatpush1.msra.mxu0 %v1569
  %1874 = vmatprep.subr.mxu0 0.0
  %1875 = vmatpush1.msra.mxu0 %v1570
  %1876 = vmatprep.subr.mxu0 0.0
  %1877 = vmatpush1.msra.mxu0 %v1571
  %1878 = vmatprep.subr.mxu0 0.0
  %1879 = vmatpush1.msra.mxu0 %v1572
  %1880 = vmatprep.subr.mxu0 0.0
  %1881 = vmatpush1.msra.mxu0 %v1573
  %1882 = vmatprep.subr.mxu0 0.0
  %1883 = vmatpush1.msra.mxu0 %v1574
  %1884 = vmatprep.subr.mxu0 0.0
  %1885 = vmatpush1.msra.mxu0 %v1575
  %1886 = vmatprep.subr.mxu0 0.0
  %1887 = vmatpush1.msra.mxu0 %v1576
  %1888 = vmatprep.subr.mxu0 0.0
  %1889 = vmatpush1.msra.mxu0 %v1577
  %1890 = vmatprep.subr.mxu0 0.0
  %1891 = vmatpush1.msra.mxu0 %v1578
  %1892 = vmatprep.subr.mxu0 0.0
  %1893 = vmatpush1.msra.mxu0 %v1579
  %1894 = vmatprep.subr.mxu0 0.0
  %1895 = vmatpush1.msra.mxu0 %v1580
  %1896 = vmatprep.subr.mxu0 0.0
  %1897 = vmatpush1.msra.mxu0 %v1581
  %1898 = vmatprep.subr.mxu0 0.0
  %1899 = vmatpush1.msra.mxu0 %v1582
  %1900 = vmatprep.subr.mxu0 0.0
  %1901 = vmatpush1.msra.mxu0 0.0
  %1902 = vmatprep.subr.mxu0 0.0
  %1903 = vmatpush1.msra.mxu0 0.0
  %1904 = vmatprep.subr.mxu0 0.0
  %1905 = vmatpush1.msra.mxu0 0.0
  %1906 = vmatprep.subr.mxu0 0.0
  %1907 = vmatpush1.msra.mxu0 0.0
  %1908 = vmatprep.subr.mxu0 0.0
  %1909 = vmatpush1.msra.mxu0 0.0
  %1910 = vmatprep.subr.mxu0 0.0
  %1911 = vmatpush1.msra.mxu0 0.0
  %1912 = vmatprep.subr.mxu0 0.0
  %1913 = vmatpush1.msra.mxu0 0.0
  %1914 = vmatprep.subr.mxu0 0.0
  %1915 = vmatpush1.msra.mxu0 0.0
  %1916 = vmatprep.subr.mxu0 0.0
  %1917 = vmatpush1.msra.mxu0 0.0
  %1918 = vmatprep.subr.mxu0 0.0
  %1919 = vmatpush1.msra.mxu0 0.0
  %1920 = vmatprep.subr.mxu0 0.0
  %1921 = vmatpush1.msra.mxu0 0.0
  %1922 = vmatprep.subr.mxu0 0.0
  %1923 = vmatpush1.msra.mxu0 0.0
  %1924 = vmatprep.subr.mxu0 0.0
  %1925 = vmatpush1.msra.mxu0 0.0
  %1926 = vmatprep.subr.mxu0 0.0
  %1927 = vmatpush1.msra.mxu0 0.0
  %1928 = vmatprep.subr.mxu0 0.0
  %1929 = vmatpush1.msra.mxu0 0.0
  %1930 = vmatprep.subr.mxu0 0.0
  %1931 = vmatpush1.msra.mxu0 0.0
  %1932 = vmatprep.mubr.f32.mxu0 0.0
  %1933 = vmatmul.mubr.f32.gmra.mrb[0].mxu0 %v1435
  %v1934 = vpop.f32.mrb[0].mxu0
  %v1935 = vadd.f32 %v1840, %v1934
  %v1936 = vpop.f32.mrb[0].mxu0
  %1937 = vmatprep.mubr.f32.mxu0 0.0
  %1938 = vmatmul.mubr.f32.gmra.mrb[0].mxu0 %v1442
  %v1939 = vpop.f32.mrb[0].mxu0
  %v1940 = vadd.f32 %v1845, %v1939
  %v1941 = vpop.f32.mrb[0].mxu0
  %1942 = vmatprep.mubr.f32.mxu0 0.0
  %1943 = vmatmul.mubr.f32.gmra.mrb[0].mxu0 %v1449
  %v1944 = vpop.f32.mrb[0].mxu0
  %v1945 = vadd.f32 %v1850, %v1944
  %v1946 = vpop.f32.mrb[0].mxu0
  %1947 = vmatprep.mubr.f32.mxu0 0.0
  %1948 = vmatmul.mubr.f32.gmra.mrb[0].mxu0 %v1456
  %v1949 = vpop.f32.mrb[0].mxu0
  %v1950 = vadd.f32 %v1855, %v1949
  %v1951 = vpop.f32.mrb[0].mxu0
  %1952 = vmatprep.mubr.f32.mxu0 0.0
  %1953 = vmatmul.mubr.f32.gmra.mrb[0].mxu0 %v1463
  %v1954 = vpop.f32.mrb[0].mxu0
  %v1955 = vadd.f32 %v1860, %v1954
  %v1956 = vpop.f32.mrb[0].mxu0
  %1957 = vmatprep.mubr.f32.mxu0 0.0
  %1958 = vmatmul.mubr.f32.gmra.mrb[0].mxu0 %v1470
  %v1959 = vpop.f32.mrb[0].mxu0
  %v1960 = vadd.f32 %v1865, %v1959
  %v1961 = vpop.f32.mrb[0].mxu0
  %1962 = vdwg.mxu0
  %vm1963 = vcmask 171008
  %1964 = vst.msk [vmem:[%s7] sm:$0xff] %vm1963, %v1935
  %1965 = vst.msk [vmem:[%s7 + $0x8] sm:$0xff] %vm1963, %v1940
  %1966 = vst.msk [vmem:[%s7 + $0x10] sm:$0xff] %vm1963, %v1945
  %1967 = vst.msk [vmem:[%s7 + $0x18] sm:$0xff] %vm1963, %v1950
  %1968 = vst.msk [vmem:[%s7 + $0x20] sm:$0xff] %vm1963, %v1955
  %1969 = vst.msk [vmem:[%s7 + $0x28] sm:$0xff] %vm1963, %v1960
  %v1970 = vmul.f32 %v30, 1000.0
  %v1971 = vmul.f32 %v31, 1000.0
  %1973 = vset.pattern.permute.xlu0 0
  %1974 = vperm.xlu0 %1973, %v1970
  %v1975 = vpop.permute.xlu0 %1974
  %1978 = vset.pattern.permute.xlu0 0
  %1979 = vperm.xlu0 %1978, %v1971
  %v1980 = vpop.permute.xlu0 %1979
  %v1982 = vmul.f32 %v1935, %v1975
  %v1983 = vmul.f32 %v1940, %v1980
  %1985 = vset.pattern.permute.xlu0 1
  %1986 = vperm.xlu0 %1985, %v30
  %v1987 = vpop.permute.xlu0 %1986
  %1990 = vset.pattern.permute.xlu0 1
  %1991 = vperm.xlu0 %1990, %v31
  %v1992 = vpop.permute.xlu0 %1991
  %v1994 = vadd.f32 %v1982, %v1987
  %v1995 = vadd.f32 %v1983, %v1992
  %1996 = vst.msk [vmem:[%s8] sm:$0xff] %vm1963, %v1994
  %1997 = vst.msk [vmem:[%s8 + $0x8] sm:$0xff] %vm1963, %v1995
  %v1998 = vmul.f32 %v1945, %v1975
  %v1999 = vmul.f32 %v1950, %v1980
  %2000 = vset.pattern.permute.xlu0 2
  %2001 = vperm.xlu0 %2000, %v30
  %v2002 = vpop.permute.xlu0 %2001
  %2004 = vset.pattern.permute.xlu0 2
  %2005 = vperm.xlu0 %2004, %v31
  %v2006 = vpop.permute.xlu0 %2005
  %v2008 = vadd.f32 %v1998, %v2002
  %v2009 = vadd.f32 %v1999, %v2006
  %s2010 = scalar_lea.vmem %s8, 16
  %2011 = vst.msk [vmem:[%s2010] sm:$0xff] %vm1963, %v2008
  %2012 = vst.msk [vmem:[%s2010 + $0x8] sm:$0xff] %vm1963, %v2009
  // Predicated region
  $region26: #{amb_hand_forward.13} parent=0 // pred_check
    _
  $region27: #{amb_hand_forward.13} parent=0 // pred_check_branch
    %2014 = sbr.rel (0) target = $region29
  $region28: #{amb_hand_forward.13} parent=0 // pred_region
    _
  $region29: #{amb_hand_forward.13} parent=0 // pred_fallthru
    _
  // Predicated region
  $region30: #{amb_hand_forward.13} parent=0 // pred_check
    _
  $region31: #{amb_hand_forward.13} parent=0 // pred_check_branch
    %2016 = sbr.rel (0) target = $region33
  $region32: #{amb_hand_forward.13} parent=0 // pred_region
    _
  $region33: #{amb_hand_forward.13} parent=0 // pred_fallthru
    _
  // Predicated region
  $region34: #{amb_hand_forward.13} parent=0 // pred_check
    _
  $region35: #{amb_hand_forward.13} parent=0 // pred_check_branch
    %2018 = sbr.rel (0) target = $region37
  $region36: #{amb_hand_forward.13} parent=0 // pred_region
    _
  $region37: #{amb_hand_forward.13} parent=0 // pred_fallthru
    _
  // Predicated region
  $region38: #{amb_hand_forward.13} parent=0 // pred_check
    _
  $region39: #{amb_hand_forward.13} parent=0 // pred_check_branch
    %2020 = sbr.rel (0) target = $region41
  $region40: #{amb_hand_forward.13} parent=0 // pred_region
    _
  $region41: #{amb_hand_forward.13} parent=0 // pred_fallthru
    _
  // Predicated region
  $region42: #{amb_hand_forward.13} parent=0 // pred_check
    _
  $region43: #{amb_hand_forward.13} parent=0 // pred_check_branch
    %2022 = sbr.rel (0) target = $region45
  $region44: #{amb_hand_forward.13} parent=0 // pred_region
    _
  $region45: #{amb_hand_forward.13} parent=0 // pred_fallthru
    _
  // Predicated region
  $region46: #{amb_hand_forward.13} parent=0 // pred_check
    _
  $region47: #{amb_hand_forward.13} parent=0 // pred_check_branch
    %2024 = sbr.rel (0) target = $region49
  $region48: #{amb_hand_forward.13} parent=0 // pred_region
    _
  $region49: #{amb_hand_forward.13} parent=0 // pred_fallthru
    _

</llo_original>
